<compile_context>
chip_gen: v7x
topology: tpu7x:2x2x1
jax: 0.10.0
libtpu: 0.0.40
codegen_flags: <defaults>
</compile_context>

<pallas_src>
import jax
import jax.numpy as jnp
from jax.experimental import pallas as pl
from jax.experimental.pallas import tpu as pltpu

NUM_OUTPUT_BUCKETS = 8
HL_SIZE = 1024
INPUT_SIZE = 768


def _leaky_screlu(x, l=0.01):
    x_low = x * l
    x_high = l * (x - 1.0) + 1.0
    y = x * x
    y = jnp.where(x < 0.0, x_low, y)
    y = jnp.where(x > 1.0, x_high, y)
    return y


def _flip_perm():
    # index permutation equivalent to flip over (color, rank) of the
    # (2, 6, 8, 8) feature layout; it is its own inverse.
    idx = jnp.arange(INPUT_SIZE, dtype=jnp.int32).reshape(2, 6, 8, 8)
    return jnp.flip(idx, axis=(0, 2)).reshape(INPUT_SIZE)


def nnue_kernel(x_ref, btm_ref, bucket_ref,
                w1_ref, w1f_ref, b1_ref,
                w2a_ref, w2b_ref, b2_ref,
                out_ref):
    x = x_ref[...]                      # (TM, 768) bf16 ({0,1} exactly)
    btm = btm_ref[...]                  # (TM, 1) int32
    bucket = bucket_ref[...]            # (TM, 1) int32, already clamped to [0,7]

    # ---- accumulator layer (flip folded into w1f) --------------------------
    w1 = w1_ref[...]                    # (768, 1024) bf16
    w1f = w1f_ref[...]                  # (768, 1024) bf16
    b1 = b1_ref[...]                    # (1, 1024) f32

    acc_white = jnp.dot(x, w1, preferred_element_type=jnp.float32) + b1
    acc_black = jnp.dot(x, w1f, preferred_element_type=jnp.float32) + b1

    aw = _leaky_screlu(acc_white)       # (TM, 1024) f32
    ab = _leaky_screlu(acc_black)       # (TM, 1024) f32

    # ---- output layer: compute both (normal / flipped) orderings -----------
    w2a = w2a_ref[...]                  # (1024, 8) f32 (first 1024 inputs of W2)
    w2b = w2b_ref[...]                  # (1024, 8) f32 (last 1024 inputs of W2)
    b2 = b2_ref[...]                    # (1, 8) f32

    ev_normal = (jnp.dot(aw, w2a, preferred_element_type=jnp.float32)
                 + jnp.dot(ab, w2b, preferred_element_type=jnp.float32) + b2)
    ev_flipped = (jnp.dot(ab, w2a, preferred_element_type=jnp.float32)
                  + jnp.dot(aw, w2b, preferred_element_type=jnp.float32) + b2)

    is_black = btm > 0                                  # (TM, 1)
    evals = jnp.where(is_black, ev_flipped, ev_normal)  # (TM, 8) select on 8 lanes

    # ---- per-row bucket gather + side-to-move sign fix ----------------------
    lane_ids = jax.lax.broadcasted_iota(jnp.int32, evals.shape, 1)
    onehot = (lane_ids == bucket).astype(jnp.float32)
    stm_eval = jnp.sum(evals * onehot, axis=1, keepdims=True)   # (TM, 1)

    out_ref[...] = jnp.where(is_black, -stm_eval, stm_eval)


def nnue_forward(x, black_to_move, W1, b1, W2, b2, tm=256):
    """x: (B, 768) f32, black_to_move: (B, 1) bool.
    W1: (1024, 768), b1: (1024,), W2: (8, 2048), b2: (8,) (PyTorch layout)."""
    B = x.shape[0]

    # ---- glue / prep (cheap XLA work, kept off the kernel critical path) ----
    # output bucket from occupancy (max over 12 piece planes, sum over squares)
    occ = jnp.max(x.reshape(B, 12, 64), axis=1)
    n_pieces = jnp.sum(occ, axis=1, keepdims=True)                 # (B, 1)
    div = 31.0 / NUM_OUTPUT_BUCKETS
    bucket = ((n_pieces - 2.0) / div).astype(jnp.int32)
    bucket = jnp.clip(bucket, 0, NUM_OUTPUT_BUCKETS - 1)           # (B, 1) i32

    btm_i32 = black_to_move.astype(jnp.int32).reshape(B, 1)

    # fold the color+rank flip into a permuted weight copy
    perm = _flip_perm()
    w1_t = W1.T.astype(jnp.bfloat16)                               # (768, 1024)
    w1f_t = W1.T[perm, :].astype(jnp.bfloat16)                     # (768, 1024)
    b1_2d = b1.reshape(1, HL_SIZE).astype(jnp.float32)
    w2a = W2[:, :HL_SIZE].T.astype(jnp.float32)                    # (1024, 8)
    w2b = W2[:, HL_SIZE:].T.astype(jnp.float32)                    # (1024, 8)
    b2_2d = b2.reshape(1, NUM_OUTPUT_BUCKETS).astype(jnp.float32)

    x_bf16 = x.astype(jnp.bfloat16)                                # exact: {0,1}

    # ---- batch tiling --------------------------------------------------------
    if B >= tm:
        TM = tm
    else:
        TM = max(8, ((B + 7) // 8) * 8)
    Bp = ((B + TM - 1) // TM) * TM
    if Bp != B:
        pad = Bp - B
        x_bf16 = jnp.pad(x_bf16, ((0, pad), (0, 0)))
        btm_i32 = jnp.pad(btm_i32, ((0, pad), (0, 0)))
        bucket = jnp.pad(bucket, ((0, pad), (0, 0)))

    out = pl.pallas_call(
        nnue_kernel,
        out_shape=jax.ShapeDtypeStruct((Bp, 1), jnp.float32),
        grid_spec=pltpu.PrefetchScalarGridSpec(
            num_scalar_prefetch=0,
            grid=(Bp // TM,),
            in_specs=[
                pl.BlockSpec((TM, INPUT_SIZE), lambda i: (i, 0)),          # x
                pl.BlockSpec((TM, 1), lambda i: (i, 0)),                   # btm
                pl.BlockSpec((TM, 1), lambda i: (i, 0)),                   # bucket
                pl.BlockSpec((INPUT_SIZE, HL_SIZE), lambda i: (0, 0)),     # W1
                pl.BlockSpec((INPUT_SIZE, HL_SIZE), lambda i: (0, 0)),     # W1 flip
                pl.BlockSpec((1, HL_SIZE), lambda i: (0, 0)),              # b1
                pl.BlockSpec((HL_SIZE, NUM_OUTPUT_BUCKETS), lambda i: (0, 0)),  # W2a
                pl.BlockSpec((HL_SIZE, NUM_OUTPUT_BUCKETS), lambda i: (0, 0)),  # W2b
                pl.BlockSpec((1, NUM_OUTPUT_BUCKETS), lambda i: (0, 0)),   # b2
            ],
            out_specs=pl.BlockSpec((TM, 1), lambda i: (i, 0)),
        ),
        compiler_params=pltpu.CompilerParams(
            dimension_semantics=("parallel",),
            vmem_limit_bytes=32 * 1024 * 1024,   # budgeted for v7x's 64 MiB VMEM
        ),
    )(x_bf16, btm_i32, bucket, w1_t, w1f_t, b1_2d, w2a, w2b, b2_2d)

    return out[:B]


nnue_forward_jit = jax.jit(nnue_forward)


# ---------------- pure-JAX references -------------------------------------------
def nnue_reference(x, black_to_move, W1, b1, W2, b2, layer1_dtype=jnp.float32):
    """Mirrors the PyTorch module. layer1_dtype=bf16 matches kernel numerics."""
    B = x.shape[0]
    occ = jnp.max(x.reshape(B, 12, 8, 8), axis=1)
    n_pieces = occ.reshape(B, 64).sum(axis=1)
    div = 31.0 / NUM_OUTPUT_BUCKETS
    bucket = jnp.minimum(((n_pieces - 2.0) / div).astype(jnp.int32),
                         NUM_OUTPUT_BUCKETS - 1)
    xg = x.reshape(B, 2, 6, 8, 8)
    xf = jnp.flip(xg, axis=(1, 3)).reshape(B, INPUT_SIZE)
    w1t = W1.T.astype(layer1_dtype)
    acc_w = jnp.dot(x.astype(layer1_dtype), w1t,
                    preferred_element_type=jnp.float32) + b1
    acc_b = jnp.dot(xf.astype(layer1_dtype), w1t,
                    preferred_element_type=jnp.float32) + b1
    acc_n = jnp.concatenate([acc_w, acc_b], axis=1)
    acc_f = jnp.concatenate([acc_b, acc_w], axis=1)
    acc = jnp.where(black_to_move, acc_f, acc_n)
    acc = _leaky_screlu(acc)
    evals = acc @ W2.T + b2
    stm = jnp.take_along_axis(evals, bucket[:, None], axis=1)
    return jnp.where(black_to_move, -stm, stm)


if __name__ == "__main__":
    B = 8
    key = jax.random.PRNGKey(0)
    kx, kb, kw1, kb1, kw2, kb2 = jax.random.split(key, 6)

    # sparse binary board features; force both kings so piece count >= 2
    x = (jax.random.uniform(kx, (B, INPUT_SIZE)) < 0.05).astype(jnp.float32)
    x = x.at[:, 5 * 64 + 4].set(1.0)     # white king on e1
    x = x.at[:, 11 * 64 + 60].set(1.0)   # black king on e8
    black_to_move = jax.random.bernoulli(kb, 0.5, (B, 1))

    # deterministic parameter init (PyTorch nn.Linear shapes)
    bound1 = 1.0 / (INPUT_SIZE ** 0.5)
    W1 = jax.random.uniform(kw1, (HL_SIZE, INPUT_SIZE), jnp.float32, -bound1, bound1)
    b1 = jax.random.uniform(kb1, (HL_SIZE,), jnp.float32, -bound1, bound1)
    bound2 = 1.0 / ((2 * HL_SIZE) ** 0.5)
    W2 = jax.random.uniform(kw2, (NUM_OUTPUT_BUCKETS, 2 * HL_SIZE), jnp.float32,
                            -bound2, bound2)
    b2 = jax.random.uniform(kb2, (NUM_OUTPUT_BUCKETS,), jnp.float32, -bound2, bound2)

    out = nnue_forward_jit(x, black_to_move, W1, b1, W2, b2)
    out = jax.block_until_ready(out)
    assert out.shape == (B, 1)

    # tight check against a reference with the same bf16 layer-1 numerics
    ref_bf16 = nnue_reference(x, black_to_move, W1, b1, W2, b2,
                              layer1_dtype=jnp.bfloat16)
    assert jnp.allclose(out, ref_bf16, atol=1e-4, rtol=1e-4), (out, ref_bf16)

    # loose check against the full-f32 PyTorch-equivalent reference
    ref_f32 = nnue_reference(x, black_to_move, W1, b1, W2, b2)
    assert jnp.allclose(out, ref_f32, atol=1e-2, rtol=1e-2), (out, ref_f32)

    print("KERNEL_OK")
</pallas_src>

<mosaic_0001>
module attributes {stable_mosaic.version = 11 : i64} {
  func.func @nnue_kernel(%arg0: i32, %arg1: memref<8x768xbf16, #tpu.memory_space<vmem>>, %arg2: memref<8x1xi32, #tpu.memory_space<vmem>>, %arg3: memref<8x1xi32, #tpu.memory_space<vmem>>, %arg4: memref<768x1024xbf16, #tpu.memory_space<vmem>>, %arg5: memref<768x1024xbf16, #tpu.memory_space<vmem>>, %arg6: memref<1x1024xf32, #tpu.memory_space<vmem>>, %arg7: memref<1024x8xf32, #tpu.memory_space<vmem>>, %arg8: memref<1024x8xf32, #tpu.memory_space<vmem>>, %arg9: memref<1x8xf32, #tpu.memory_space<vmem>>, %arg10: memref<8x1xf32, #tpu.memory_space<vmem>>) attributes {dimension_semantics = [#tpu.dimension_semantics<parallel>], iteration_bounds = array<i64: 1>, scalar_prefetch = 0 : i64, scratch_operands = 0 : i64, tpu.core_type = #tpu.core_type<tc>, window_params = [{transform_indices = @transform_0, window_bounds = array<i64: 8, 768>}, {transform_indices = @transform_1, window_bounds = array<i64: 8, 1>}, {transform_indices = @transform_2, window_bounds = array<i64: 8, 1>}, {pipeline_mode = #tpu.pipeline_mode<synchronous>, transform_indices = @transform_3, window_bounds = array<i64: 768, 1024>}, {pipeline_mode = #tpu.pipeline_mode<synchronous>, transform_indices = @transform_4, window_bounds = array<i64: 768, 1024>}, {pipeline_mode = #tpu.pipeline_mode<synchronous>, transform_indices = @transform_5, window_bounds = array<i64: 1, 1024>}, {pipeline_mode = #tpu.pipeline_mode<synchronous>, transform_indices = @transform_6, window_bounds = array<i64: 1024, 8>}, {pipeline_mode = #tpu.pipeline_mode<synchronous>, transform_indices = @transform_7, window_bounds = array<i64: 1024, 8>}, {pipeline_mode = #tpu.pipeline_mode<synchronous>, transform_indices = @transform_8, window_bounds = array<i64: 1, 8>}, {transform_indices = @transform_9, window_bounds = array<i64: 8, 1>}]} {
    %c0 = arith.constant 0 : index
    %c0_0 = arith.constant 0 : index
    %0 = vector.load %arg1[%c0, %c0_0] : memref<8x768xbf16, #tpu.memory_space<vmem>>, vector<8x768xbf16>
    %c0_1 = arith.constant 0 : index
    %c0_2 = arith.constant 0 : index
    %1 = vector.load %arg2[%c0_1, %c0_2] : memref<8x1xi32, #tpu.memory_space<vmem>>, vector<8x1xi32>
    %c0_3 = arith.constant 0 : index
    %c0_4 = arith.constant 0 : index
    %2 = vector.load %arg3[%c0_3, %c0_4] : memref<8x1xi32, #tpu.memory_space<vmem>>, vector<8x1xi32>
    %c0_5 = arith.constant 0 : index
    %c0_6 = arith.constant 0 : index
    %3 = vector.load %arg4[%c0_5, %c0_6] : memref<768x1024xbf16, #tpu.memory_space<vmem>>, vector<768x1024xbf16>
    %c0_7 = arith.constant 0 : index
    %c0_8 = arith.constant 0 : index
    %4 = vector.load %arg5[%c0_7, %c0_8] : memref<768x1024xbf16, #tpu.memory_space<vmem>>, vector<768x1024xbf16>
    %c0_9 = arith.constant 0 : index
    %c0_10 = arith.constant 0 : index
    %5 = vector.load %arg6[%c0_9, %c0_10] : memref<1x1024xf32, #tpu.memory_space<vmem>>, vector<1x1024xf32>
    %cst = arith.constant dense<0.000000e+00> : vector<8x1024xf32>
    %6 = tpu.matmul %0, %3, %cst {dimension_numbers = #tpu.dot_dimension_numbers<[1], [0], [0], [1], [0, 0, 1, 1], [], []>} : vector<8x768xbf16>, vector<768x1024xbf16>, vector<8x1024xf32> -> vector<8x1024xf32>
    %7 = vector.broadcast %5 : vector<1x1024xf32> to vector<8x1024xf32>
    %8 = arith.addf %6, %7 : vector<8x1024xf32>
    %cst_11 = arith.constant dense<0.000000e+00> : vector<8x1024xf32>
    %9 = tpu.matmul %0, %4, %cst_11 {dimension_numbers = #tpu.dot_dimension_numbers<[1], [0], [0], [1], [0, 0, 1, 1], [], []>} : vector<8x768xbf16>, vector<768x1024xbf16>, vector<8x1024xf32> -> vector<8x1024xf32>
    %10 = vector.broadcast %5 : vector<1x1024xf32> to vector<8x1024xf32>
    %11 = arith.addf %9, %10 : vector<8x1024xf32>
    %cst_12 = arith.constant 0.00999999977 : f32
    %12 = vector.broadcast %cst_12 : f32 to vector<8x1024xf32>
    %13 = arith.mulf %8, %12 : vector<8x1024xf32>
    %cst_13 = arith.constant 1.000000e+00 : f32
    %14 = vector.broadcast %cst_13 : f32 to vector<8x1024xf32>
    %15 = arith.subf %8, %14 : vector<8x1024xf32>
    %cst_14 = arith.constant 0.00999999977 : f32
    %16 = vector.broadcast %cst_14 : f32 to vector<8x1024xf32>
    %17 = arith.mulf %16, %15 : vector<8x1024xf32>
    %cst_15 = arith.constant 1.000000e+00 : f32
    %18 = vector.broadcast %cst_15 : f32 to vector<8x1024xf32>
    %19 = arith.addf %17, %18 : vector<8x1024xf32>
    %20 = arith.mulf %8, %8 : vector<8x1024xf32>
    %cst_16 = arith.constant 0.000000e+00 : f32
    %21 = vector.broadcast %cst_16 : f32 to vector<8x1024xf32>
    %22 = arith.cmpf olt, %8, %21 : vector<8x1024xf32>
    %23 = arith.select %22, %13, %20 : vector<8x1024xi1>, vector<8x1024xf32>
    %cst_17 = arith.constant 1.000000e+00 : f32
    %24 = vector.broadcast %cst_17 : f32 to vector<8x1024xf32>
    %25 = arith.cmpf ogt, %8, %24 : vector<8x1024xf32>
    %26 = arith.select %25, %19, %23 : vector<8x1024xi1>, vector<8x1024xf32>
    %cst_18 = arith.constant 0.00999999977 : f32
    %27 = vector.broadcast %cst_18 : f32 to vector<8x1024xf32>
    %28 = arith.mulf %11, %27 : vector<8x1024xf32>
    %cst_19 = arith.constant 1.000000e+00 : f32
    %29 = vector.broadcast %cst_19 : f32 to vector<8x1024xf32>
    %30 = arith.subf %11, %29 : vector<8x1024xf32>
    %cst_20 = arith.constant 0.00999999977 : f32
    %31 = vector.broadcast %cst_20 : f32 to vector<8x1024xf32>
    %32 = arith.mulf %31, %30 : vector<8x1024xf32>
    %cst_21 = arith.constant 1.000000e+00 : f32
    %33 = vector.broadcast %cst_21 : f32 to vector<8x1024xf32>
    %34 = arith.addf %32, %33 : vector<8x1024xf32>
    %35 = arith.mulf %11, %11 : vector<8x1024xf32>
    %cst_22 = arith.constant 0.000000e+00 : f32
    %36 = vector.broadcast %cst_22 : f32 to vector<8x1024xf32>
    %37 = arith.cmpf olt, %11, %36 : vector<8x1024xf32>
    %38 = arith.select %37, %28, %35 : vector<8x1024xi1>, vector<8x1024xf32>
    %cst_23 = arith.constant 1.000000e+00 : f32
    %39 = vector.broadcast %cst_23 : f32 to vector<8x1024xf32>
    %40 = arith.cmpf ogt, %11, %39 : vector<8x1024xf32>
    %41 = arith.select %40, %34, %38 : vector<8x1024xi1>, vector<8x1024xf32>
    %c0_24 = arith.constant 0 : index
    %c0_25 = arith.constant 0 : index
    %42 = vector.load %arg7[%c0_24, %c0_25] : memref<1024x8xf32, #tpu.memory_space<vmem>>, vector<1024x8xf32>
    %c0_26 = arith.constant 0 : index
    %c0_27 = arith.constant 0 : index
    %43 = vector.load %arg8[%c0_26, %c0_27] : memref<1024x8xf32, #tpu.memory_space<vmem>>, vector<1024x8xf32>
    %c0_28 = arith.constant 0 : index
    %c0_29 = arith.constant 0 : index
    %44 = vector.load %arg9[%c0_28, %c0_29] : memref<1x8xf32, #tpu.memory_space<vmem>>, vector<1x8xf32>
    %cst_30 = arith.constant dense<0.000000e+00> : vector<8x8xf32>
    %45 = tpu.matmul %26, %42, %cst_30 {dimension_numbers = #tpu.dot_dimension_numbers<[1], [0], [0], [1], [0, 0, 1, 1], [], []>} : vector<8x1024xf32>, vector<1024x8xf32>, vector<8x8xf32> -> vector<8x8xf32>
    %cst_31 = arith.constant dense<0.000000e+00> : vector<8x8xf32>
    %46 = tpu.matmul %41, %43, %cst_31 {dimension_numbers = #tpu.dot_dimension_numbers<[1], [0], [0], [1], [0, 0, 1, 1], [], []>} : vector<8x1024xf32>, vector<1024x8xf32>, vector<8x8xf32> -> vector<8x8xf32>
    %47 = arith.addf %45, %46 : vector<8x8xf32>
    %48 = vector.broadcast %44 : vector<1x8xf32> to vector<8x8xf32>
    %49 = arith.addf %47, %48 : vector<8x8xf32>
    %cst_32 = arith.constant dense<0.000000e+00> : vector<8x8xf32>
    %50 = tpu.matmul %41, %42, %cst_32 {dimension_numbers = #tpu.dot_dimension_numbers<[1], [0], [0], [1], [0, 0, 1, 1], [], []>} : vector<8x1024xf32>, vector<1024x8xf32>, vector<8x8xf32> -> vector<8x8xf32>
    %cst_33 = arith.constant dense<0.000000e+00> : vector<8x8xf32>
    %51 = tpu.matmul %26, %43, %cst_33 {dimension_numbers = #tpu.dot_dimension_numbers<[1], [0], [0], [1], [0, 0, 1, 1], [], []>} : vector<8x1024xf32>, vector<1024x8xf32>, vector<8x8xf32> -> vector<8x8xf32>
    %52 = arith.addf %50, %51 : vector<8x8xf32>
    %53 = vector.broadcast %44 : vector<1x8xf32> to vector<8x8xf32>
    %54 = arith.addf %52, %53 : vector<8x8xf32>
    %c0_i32 = arith.constant 0 : i32
    %55 = vector.broadcast %c0_i32 : i32 to vector<8x1xi32>
    %56 = arith.cmpi sgt, %1, %55 : vector<8x1xi32>
    %57 = vector.shape_cast %56 : vector<8x1xi1> to vector<8x1xi1>
    %58 = vector.broadcast %57 : vector<8x1xi1> to vector<8x8xi1>
    %59 = arith.select %58, %54, %49 : vector<8x8xi1>, vector<8x8xf32>
    %60 = tpu.iota {dimensions = array<i32: 1>} : vector<8x8xi32>
    %61 = vector.broadcast %2 : vector<8x1xi32> to vector<8x8xi32>
    %62 = arith.cmpi eq, %60, %61 : vector<8x8xi32>
    %63 = arith.extui %62 : vector<8x8xi1> to vector<8x8xi32>
    %64 = arith.sitofp %63 : vector<8x8xi32> to vector<8x8xf32>
    %65 = arith.mulf %59, %64 : vector<8x8xf32>
    %cst_34 = arith.constant dense<0.000000e+00> : vector<8xf32>
    %66 = vector.multi_reduction <add>, %65, %cst_34 [1] : vector<8x8xf32> to vector<8xf32>
    %67 = vector.shape_cast %66 : vector<8xf32> to vector<8x1xf32>
    %cst_35 = arith.constant 0.000000e+00 : f32
    %68 = vector.broadcast %cst_35 : f32 to vector<8x1xf32>
    %69 = arith.subf %68, %67 : vector<8x1xf32>
    %70 = arith.select %56, %69, %67 : vector<8x1xi1>, vector<8x1xf32>
    %c0_36 = arith.constant 0 : index
    %c0_37 = arith.constant 0 : index
    %71 = vector.load %arg10[%c0_36, %c0_37] : memref<8x1xf32, #tpu.memory_space<vmem>>, vector<8x1xf32>
    tpu.vector_store %arg10[%c0_36, %c0_37], %70 {strides = array<i32>} : memref<8x1xf32, #tpu.memory_space<vmem>>, vector<8x1xf32>,
    return
  }
  func.func @transform_0(%arg0: i32) -> (i32, i32) {
    %c0_i32 = arith.constant 0 : i32
    %c0_i32_0 = arith.constant 0 : i32
    return %arg0, %c0_i32 : i32, i32
  }
  func.func @transform_1(%arg0: i32) -> (i32, i32) {
    %c0_i32 = arith.constant 0 : i32
    %c0_i32_0 = arith.constant 0 : i32
    return %arg0, %c0_i32 : i32, i32
  }
  func.func @transform_2(%arg0: i32) -> (i32, i32) {
    %c0_i32 = arith.constant 0 : i32
    %c0_i32_0 = arith.constant 0 : i32
    return %arg0, %c0_i32 : i32, i32
  }
  func.func @transform_3(%arg0: i32) -> (i32, i32) {
    %c0_i32 = arith.constant 0 : i32
    %c0_i32_0 = arith.constant 0 : i32
    %c0_i32_1 = arith.constant 0 : i32
    return %c0_i32, %c0_i32_0 : i32, i32
  }
  func.func @transform_4(%arg0: i32) -> (i32, i32) {
    %c0_i32 = arith.constant 0 : i32
    %c0_i32_0 = arith.constant 0 : i32
    %c0_i32_1 = arith.constant 0 : i32
    return %c0_i32, %c0_i32_0 : i32, i32
  }
  func.func @transform_5(%arg0: i32) -> (i32, i32) {
    %c0_i32 = arith.constant 0 : i32
    %c0_i32_0 = arith.constant 0 : i32
    %c0_i32_1 = arith.constant 0 : i32
    return %c0_i32, %c0_i32_0 : i32, i32
  }
  func.func @transform_6(%arg0: i32) -> (i32, i32) {
    %c0_i32 = arith.constant 0 : i32
    %c0_i32_0 = arith.constant 0 : i32
    %c0_i32_1 = arith.constant 0 : i32
    return %c0_i32, %c0_i32_0 : i32, i32
  }
  func.func @transform_7(%arg0: i32) -> (i32, i32) {
    %c0_i32 = arith.constant 0 : i32
    %c0_i32_0 = arith.constant 0 : i32
    %c0_i32_1 = arith.constant 0 : i32
    return %c0_i32, %c0_i32_0 : i32, i32
  }
  func.func @transform_8(%arg0: i32) -> (i32, i32) {
    %c0_i32 = arith.constant 0 : i32
    %c0_i32_0 = arith.constant 0 : i32
    %c0_i32_1 = arith.constant 0 : i32
    return %c0_i32, %c0_i32_0 : i32, i32
  }
  func.func @transform_9(%arg0: i32) -> (i32, i32) {
    %c0_i32 = arith.constant 0 : i32
    %c0_i32_0 = arith.constant 0 : i32
    return %arg0, %c0_i32 : i32, i32
  }
}

</mosaic_0001>

<llo_original>
// kernel: nnue_forward.1
$region0: #{nnue_forward.1}
  #allocation0 [shape = 'u32[]', space=smem, size = 0x4, offset = 0x4, fixed_abs, tag = 'smem constant byte address 0x4 - core index']
  #allocation1 [shape = 'u32[144,128]{1,0:T(1,128)}', space=vmem, size = 0x12000, scoped, tag = 'internal scratch']
  %s0 = inlined_call_operand.vmem [shape: bf16[8,768], index: 0, kind: input, shape index: {}]
  %s1 = inlined_call_operand.vmem [shape: s32[8,1], index: 1, kind: input, shape index: {}]
  %s2 = inlined_call_operand.vmem [shape: s32[8,1], index: 2, kind: input, shape index: {}]
  %s3 = inlined_call_operand.vmem [shape: bf16[768,1024], index: 3, kind: input, shape index: {}]
  %s4 = inlined_call_operand.vmem [shape: bf16[768,1024], index: 4, kind: input, shape index: {}]
  %s5 = inlined_call_operand.vmem [shape: f32[1,1024], index: 5, kind: input, shape index: {}]
  %s6 = inlined_call_operand.vmem [shape: f32[1024,8], index: 6, kind: input, shape index: {}]
  %s7 = inlined_call_operand.vmem [shape: f32[1024,8], index: 7, kind: input, shape index: {}]
  %s8 = inlined_call_operand.vmem [shape: f32[1,8], index: 8, kind: input, shape index: {}]
  %s9 = inlined_call_operand.vmem [shape: f32[8,1], index: 9, kind: output, shape index: {}]
  %s10 = sld [smem:[#allocation0]]
  $region46: #{nnue_forward.1} parent=0
    _
  %s12 = ssub.s32 1, %s10
  %s13 = scalar_select 0, %s12, %s10
  // Predicated region
  $region2: #{nnue_forward.1} parent=0 // pred_check
    _
  $region3: #{nnue_forward.1} parent=0 // pred_check_branch
    %15 = sbr.rel (0) target = $region5
  $region4: #{nnue_forward.1} parent=0 // pred_region
    _
  $region5: #{nnue_forward.1} parent=0 // pred_fallthru
    _
  // Predicated region
  $region6: #{nnue_forward.1} parent=0 // pred_check
    _
  $region7: #{nnue_forward.1} parent=0 // pred_check_branch
    %17 = sbr.rel (0) target = $region9
  $region8: #{nnue_forward.1} parent=0 // pred_region
    _
  $region9: #{nnue_forward.1} parent=0 // pred_fallthru
    _
  // Predicated region
  $region10: #{nnue_forward.1} parent=0 // pred_check
    _
  $region11: #{nnue_forward.1} parent=0 // pred_check_branch
    %19 = sbr.rel (0) target = $region13
  $region12: #{nnue_forward.1} parent=0 // pred_region
    _
  $region13: #{nnue_forward.1} parent=0 // pred_fallthru
    _
  // Predicated region
  $region14: #{nnue_forward.1} parent=0 // pred_check
    _
  $region15: #{nnue_forward.1} parent=0 // pred_check_branch
    %21 = sbr.rel (0) target = $region17
  $region16: #{nnue_forward.1} parent=0 // pred_region
    _
  $region17: #{nnue_forward.1} parent=0 // pred_fallthru
    _
  // Predicated region
  $region18: #{nnue_forward.1} parent=0 // pred_check
    _
  $region19: #{nnue_forward.1} parent=0 // pred_check_branch
    %23 = sbr.rel (0) target = $region21
  $region20: #{nnue_forward.1} parent=0 // pred_region
    _
  $region21: #{nnue_forward.1} parent=0 // pred_fallthru
    _
  // Predicated region
  $region22: #{nnue_forward.1} parent=0 // pred_check
    _
  $region23: #{nnue_forward.1} parent=0 // pred_check_branch
    %25 = sbr.rel (0) target = $region25
  $region24: #{nnue_forward.1} parent=0 // pred_region
    _
  $region25: #{nnue_forward.1} parent=0 // pred_fallthru
    _
  // Predicated region
  $region26: #{nnue_forward.1} parent=0 // pred_check
    _
  $region27: #{nnue_forward.1} parent=0 // pred_check_branch
    %27 = sbr.rel (0) target = $region29
  $region28: #{nnue_forward.1} parent=0 // pred_region
    _
  $region29: #{nnue_forward.1} parent=0 // pred_fallthru
    _
  // Predicated region
  $region30: #{nnue_forward.1} parent=0 // pred_check
    _
  $region31: #{nnue_forward.1} parent=0 // pred_check_branch
    %29 = sbr.rel (0) target = $region33
  $region32: #{nnue_forward.1} parent=0 // pred_region
    _
  $region33: #{nnue_forward.1} parent=0 // pred_fallthru
    _
  // Predicated region
  $region34: #{nnue_forward.1} parent=0 // pred_check
    _
  $region35: #{nnue_forward.1} parent=0 // pred_check_branch
    %31 = sbr.rel (0) target = $region37
  $region36: #{nnue_forward.1} parent=0 // pred_region
    _
  $region37: #{nnue_forward.1} parent=0 // pred_fallthru
    _
  %v32 = vld [vmem:[%s0] sm:$0xff]
  %v33 = vld [vmem:[%s0 + $0x8] sm:$0xff]
  %v34 = vld [vmem:[%s0 + $0x10] sm:$0xff]
  %v35 = vld [vmem:[%s1] sm:$0xff]
  %v36 = vld [vmem:[%s2] sm:$0xff]
  %v37 = vld [vmem:[%s3] sm:$0xff]
  %v38 = vld [vmem:[%s3 + $0x8] sm:$0xff]
  %v39 = vld [vmem:[%s3 + $0x10] sm:$0xff]
  %v40 = vld [vmem:[%s3 + $0x18] sm:$0xff]
  %v41 = vld [vmem:[%s3 + $0x20] sm:$0xff]
  %v42 = vld [vmem:[%s3 + $0x28] sm:$0xff]
  %v43 = vld [vmem:[%s3 + $0x30] sm:$0xff]
  %v44 = vld [vmem:[%s3 + $0x38] sm:$0xff]
  %v45 = vld [vmem:[%s3 + $0x40] sm:$0xff]
  %v46 = vld [vmem:[%s3 + $0x48] sm:$0xff]
  %v47 = vld [vmem:[%s3 + $0x50] sm:$0xff]
  %v48 = vld [vmem:[%s3 + $0x58] sm:$0xff]
  %v49 = vld [vmem:[%s3 + $0x60] sm:$0xff]
  %v50 = vld [vmem:[%s3 + $0x68] sm:$0xff]
  %v51 = vld [vmem:[%s3 + $0x70] sm:$0xff]
  %v52 = vld [vmem:[%s3 + $0x78] sm:$0xff]
  %v53 = vld [vmem:[%s3 + $0x80] sm:$0xff]
  %v54 = vld [vmem:[%s3 + $0x88] sm:$0xff]
  %v55 = vld [vmem:[%s3 + $0x90] sm:$0xff]
  %v56 = vld [vmem:[%s3 + $0x98] sm:$0xff]
  %v57 = vld [vmem:[%s3 + $0xa0] sm:$0xff]
  %v58 = vld [vmem:[%s3 + $0xa8] sm:$0xff]
  %v59 = vld [vmem:[%s3 + $0xb0] sm:$0xff]
  %v60 = vld [vmem:[%s3 + $0xb8] sm:$0xff]
  %v61 = vld [vmem:[%s3 + $0xc0] sm:$0xff]
  %v62 = vld [vmem:[%s3 + $0xc8] sm:$0xff]
  %v63 = vld [vmem:[%s3 + $0xd0] sm:$0xff]
  %v64 = vld [vmem:[%s3 + $0xd8] sm:$0xff]
  %v65 = vld [vmem:[%s3 + $0xe0] sm:$0xff]
  %v66 = vld [vmem:[%s3 + $0xe8] sm:$0xff]
  %v67 = vld [vmem:[%s3 + $0xf0] sm:$0xff]
  %v68 = vld [vmem:[%s3 + $0xf8] sm:$0xff]
  %v69 = vld [vmem:[%s3 + $0x100] sm:$0xff]
  %v70 = vld [vmem:[%s3 + $0x108] sm:$0xff]
  %v71 = vld [vmem:[%s3 + $0x110] sm:$0xff]
  %v72 = vld [vmem:[%s3 + $0x118] sm:$0xff]
  %v73 = vld [vmem:[%s3 + $0x120] sm:$0xff]
  %v74 = vld [vmem:[%s3 + $0x128] sm:$0xff]
  %v75 = vld [vmem:[%s3 + $0x130] sm:$0xff]
  %v76 = vld [vmem:[%s3 + $0x138] sm:$0xff]
  %v77 = vld [vmem:[%s3 + $0x140] sm:$0xff]
  %v78 = vld [vmem:[%s3 + $0x148] sm:$0xff]
  %v79 = vld [vmem:[%s3 + $0x150] sm:$0xff]
  %v80 = vld [vmem:[%s3 + $0x158] sm:$0xff]
  %v81 = vld [vmem:[%s3 + $0x160] sm:$0xff]
  %v82 = vld [vmem:[%s3 + $0x168] sm:$0xff]
  %v83 = vld [vmem:[%s3 + $0x170] sm:$0xff]
  %v84 = vld [vmem:[%s3 + $0x178] sm:$0xff]
  %v85 = vld [vmem:[%s3 + $0x180] sm:$0xff]
  %v86 = vld [vmem:[%s3 + $0x188] sm:$0xff]
  %v87 = vld [vmem:[%s3 + $0x190] sm:$0xff]
  %v88 = vld [vmem:[%s3 + $0x198] sm:$0xff]
  %v89 = vld [vmem:[%s3 + $0x1a0] sm:$0xff]
  %v90 = vld [vmem:[%s3 + $0x1a8] sm:$0xff]
  %v91 = vld [vmem:[%s3 + $0x1b0] sm:$0xff]
  %v92 = vld [vmem:[%s3 + $0x1b8] sm:$0xff]
  %v93 = vld [vmem:[%s3 + $0x1c0] sm:$0xff]
  %v94 = vld [vmem:[%s3 + $0x1c8] sm:$0xff]
  %v95 = vld [vmem:[%s3 + $0x1d0] sm:$0xff]
  %v96 = vld [vmem:[%s3 + $0x1d8] sm:$0xff]
  %v97 = vld [vmem:[%s3 + $0x1e0] sm:$0xff]
  %v98 = vld [vmem:[%s3 + $0x1e8] sm:$0xff]
  %v99 = vld [vmem:[%s3 + $0x1f0] sm:$0xff]
  %v100 = vld [vmem:[%s3 + $0x1f8] sm:$0xff]
  %v101 = vld [vmem:[%s3 + $0x200] sm:$0xff]
  %v102 = vld [vmem:[%s3 + $0x208] sm:$0xff]
  %v103 = vld [vmem:[%s3 + $0x210] sm:$0xff]
  %v104 = vld [vmem:[%s3 + $0x218] sm:$0xff]
  %v105 = vld [vmem:[%s3 + $0x220] sm:$0xff]
  %v106 = vld [vmem:[%s3 + $0x228] sm:$0xff]
  %v107 = vld [vmem:[%s3 + $0x230] sm:$0xff]
  %v108 = vld [vmem:[%s3 + $0x238] sm:$0xff]
  %v109 = vld [vmem:[%s3 + $0x240] sm:$0xff]
  %v110 = vld [vmem:[%s3 + $0x248] sm:$0xff]
  %v111 = vld [vmem:[%s3 + $0x250] sm:$0xff]
  %v112 = vld [vmem:[%s3 + $0x258] sm:$0xff]
  %v113 = vld [vmem:[%s3 + $0x260] sm:$0xff]
  %v114 = vld [vmem:[%s3 + $0x268] sm:$0xff]
  %v115 = vld [vmem:[%s3 + $0x270] sm:$0xff]
  %v116 = vld [vmem:[%s3 + $0x278] sm:$0xff]
  %v117 = vld [vmem:[%s3 + $0x280] sm:$0xff]
  %v118 = vld [vmem:[%s3 + $0x288] sm:$0xff]
  %v119 = vld [vmem:[%s3 + $0x290] sm:$0xff]
  %v120 = vld [vmem:[%s3 + $0x298] sm:$0xff]
  %v121 = vld [vmem:[%s3 + $0x2a0] sm:$0xff]
  %v122 = vld [vmem:[%s3 + $0x2a8] sm:$0xff]
  %v123 = vld [vmem:[%s3 + $0x2b0] sm:$0xff]
  %v124 = vld [vmem:[%s3 + $0x2b8] sm:$0xff]
  %v125 = vld [vmem:[%s3 + $0x2c0] sm:$0xff]
  %v126 = vld [vmem:[%s3 + $0x2c8] sm:$0xff]
  %v127 = vld [vmem:[%s3 + $0x2d0] sm:$0xff]
  %v128 = vld [vmem:[%s3 + $0x2d8] sm:$0xff]
  %v129 = vld [vmem:[%s3 + $0x2e0] sm:$0xff]
  %v130 = vld [vmem:[%s3 + $0x2e8] sm:$0xff]
  %v131 = vld [vmem:[%s3 + $0x2f0] sm:$0xff]
  %v132 = vld [vmem:[%s3 + $0x2f8] sm:$0xff]
  %v133 = vld [vmem:[%s3 + $0x300] sm:$0xff]
  %v134 = vld [vmem:[%s3 + $0x308] sm:$0xff]
  %v135 = vld [vmem:[%s3 + $0x310] sm:$0xff]
  %v136 = vld [vmem:[%s3 + $0x318] sm:$0xff]
  %v137 = vld [vmem:[%s3 + $0x320] sm:$0xff]
  %v138 = vld [vmem:[%s3 + $0x328] sm:$0xff]
  %v139 = vld [vmem:[%s3 + $0x330] sm:$0xff]
  %v140 = vld [vmem:[%s3 + $0x338] sm:$0xff]
  %v141 = vld [vmem:[%s3 + $0x340] sm:$0xff]
  %v142 = vld [vmem:[%s3 + $0x348] sm:$0xff]
  %v143 = vld [vmem:[%s3 + $0x350] sm:$0xff]
  %v144 = vld [vmem:[%s3 + $0x358] sm:$0xff]
  %v145 = vld [vmem:[%s3 + $0x360] sm:$0xff]
  %v146 = vld [vmem:[%s3 + $0x368] sm:$0xff]
  %v147 = vld [vmem:[%s3 + $0x370] sm:$0xff]
  %v148 = vld [vmem:[%s3 + $0x378] sm:$0xff]
  %v149 = vld [vmem:[%s3 + $0x380] sm:$0xff]
  %v150 = vld [vmem:[%s3 + $0x388] sm:$0xff]
  %v151 = vld [vmem:[%s3 + $0x390] sm:$0xff]
  %v152 = vld [vmem:[%s3 + $0x398] sm:$0xff]
  %v153 = vld [vmem:[%s3 + $0x3a0] sm:$0xff]
  %v154 = vld [vmem:[%s3 + $0x3a8] sm:$0xff]
  %v155 = vld [vmem:[%s3 + $0x3b0] sm:$0xff]
  %v156 = vld [vmem:[%s3 + $0x3b8] sm:$0xff]
  %v157 = vld [vmem:[%s3 + $0x3c0] sm:$0xff]
  %v158 = vld [vmem:[%s3 + $0x3c8] sm:$0xff]
  %v159 = vld [vmem:[%s3 + $0x3d0] sm:$0xff]
  %v160 = vld [vmem:[%s3 + $0x3d8] sm:$0xff]
  %v161 = vld [vmem:[%s3 + $0x3e0] sm:$0xff]
  %v162 = vld [vmem:[%s3 + $0x3e8] sm:$0xff]
  %v163 = vld [vmem:[%s3 + $0x3f0] sm:$0xff]
  %v164 = vld [vmem:[%s3 + $0x3f8] sm:$0xff]
  %v165 = vld [vmem:[%s3 + $0x400] sm:$0xff]
  %v166 = vld [vmem:[%s3 + $0x408] sm:$0xff]
  %v167 = vld [vmem:[%s3 + $0x410] sm:$0xff]
  %v168 = vld [vmem:[%s3 + $0x418] sm:$0xff]
  %v169 = vld [vmem:[%s3 + $0x420] sm:$0xff]
  %v170 = vld [vmem:[%s3 + $0x428] sm:$0xff]
  %v171 = vld [vmem:[%s3 + $0x430] sm:$0xff]
  %v172 = vld [vmem:[%s3 + $0x438] sm:$0xff]
  %v173 = vld [vmem:[%s3 + $0x440] sm:$0xff]
  %v174 = vld [vmem:[%s3 + $0x448] sm:$0xff]
  %v175 = vld [vmem:[%s3 + $0x450] sm:$0xff]
  %v176 = vld [vmem:[%s3 + $0x458] sm:$0xff]
  %v177 = vld [vmem:[%s3 + $0x460] sm:$0xff]
  %v178 = vld [vmem:[%s3 + $0x468] sm:$0xff]
  %v179 = vld [vmem:[%s3 + $0x470] sm:$0xff]
  %v180 = vld [vmem:[%s3 + $0x478] sm:$0xff]
  %v181 = vld [vmem:[%s3 + $0x480] sm:$0xff]
  %v182 = vld [vmem:[%s3 + $0x488] sm:$0xff]
  %v183 = vld [vmem:[%s3 + $0x490] sm:$0xff]
  %v184 = vld [vmem:[%s3 + $0x498] sm:$0xff]
  %v185 = vld [vmem:[%s3 + $0x4a0] sm:$0xff]
  %v186 = vld [vmem:[%s3 + $0x4a8] sm:$0xff]
  %v187 = vld [vmem:[%s3 + $0x4b0] sm:$0xff]
  %v188 = vld [vmem:[%s3 + $0x4b8] sm:$0xff]
  %v189 = vld [vmem:[%s3 + $0x4c0] sm:$0xff]
  %v190 = vld [vmem:[%s3 + $0x4c8] sm:$0xff]
  %v191 = vld [vmem:[%s3 + $0x4d0] sm:$0xff]
  %v192 = vld [vmem:[%s3 + $0x4d8] sm:$0xff]
  %v193 = vld [vmem:[%s3 + $0x4e0] sm:$0xff]
  %v194 = vld [vmem:[%s3 + $0x4e8] sm:$0xff]
  %v195 = vld [vmem:[%s3 + $0x4f0] sm:$0xff]
  %v196 = vld [vmem:[%s3 + $0x4f8] sm:$0xff]
  %v197 = vld [vmem:[%s3 + $0x500] sm:$0xff]
  %v198 = vld [vmem:[%s3 + $0x508] sm:$0xff]
  %v199 = vld [vmem:[%s3 + $0x510] sm:$0xff]
  %v200 = vld [vmem:[%s3 + $0x518] sm:$0xff]
  %v201 = vld [vmem:[%s3 + $0x520] sm:$0xff]
  %v202 = vld [vmem:[%s3 + $0x528] sm:$0xff]
  %v203 = vld [vmem:[%s3 + $0x530] sm:$0xff]
  %v204 = vld [vmem:[%s3 + $0x538] sm:$0xff]
  %v205 = vld [vmem:[%s3 + $0x540] sm:$0xff]
  %v206 = vld [vmem:[%s3 + $0x548] sm:$0xff]
  %v207 = vld [vmem:[%s3 + $0x550] sm:$0xff]
  %v208 = vld [vmem:[%s3 + $0x558] sm:$0xff]
  %v209 = vld [vmem:[%s3 + $0x560] sm:$0xff]
  %v210 = vld [vmem:[%s3 + $0x568] sm:$0xff]
  %v211 = vld [vmem:[%s3 + $0x570] sm:$0xff]
  %v212 = vld [vmem:[%s3 + $0x578] sm:$0xff]
  %v213 = vld [vmem:[%s3 + $0x580] sm:$0xff]
  %v214 = vld [vmem:[%s3 + $0x588] sm:$0xff]
  %v215 = vld [vmem:[%s3 + $0x590] sm:$0xff]
  %v216 = vld [vmem:[%s3 + $0x598] sm:$0xff]
  %v217 = vld [vmem:[%s3 + $0x5a0] sm:$0xff]
  %v218 = vld [vmem:[%s3 + $0x5a8] sm:$0xff]
  %v219 = vld [vmem:[%s3 + $0x5b0] sm:$0xff]
  %v220 = vld [vmem:[%s3 + $0x5b8] sm:$0xff]
  %v221 = vld [vmem:[%s3 + $0x5c0] sm:$0xff]
  %v222 = vld [vmem:[%s3 + $0x5c8] sm:$0xff]
  %v223 = vld [vmem:[%s3 + $0x5d0] sm:$0xff]
  %v224 = vld [vmem:[%s3 + $0x5d8] sm:$0xff]
  %v225 = vld [vmem:[%s3 + $0x5e0] sm:$0xff]
  %v226 = vld [vmem:[%s3 + $0x5e8] sm:$0xff]
  %v227 = vld [vmem:[%s3 + $0x5f0] sm:$0xff]
  %v228 = vld [vmem:[%s3 + $0x5f8] sm:$0xff]
  %v229 = vld [vmem:[%s3 + $0x600] sm:$0xff]
  %v230 = vld [vmem:[%s3 + $0x608] sm:$0xff]
  %v231 = vld [vmem:[%s3 + $0x610] sm:$0xff]
  %v232 = vld [vmem:[%s3 + $0x618] sm:$0xff]
  %v233 = vld [vmem:[%s3 + $0x620] sm:$0xff]
  %v234 = vld [vmem:[%s3 + $0x628] sm:$0xff]
  %v235 = vld [vmem:[%s3 + $0x630] sm:$0xff]
  %v236 = vld [vmem:[%s3 + $0x638] sm:$0xff]
  %v237 = vld [vmem:[%s3 + $0x640] sm:$0xff]
  %v238 = vld [vmem:[%s3 + $0x648] sm:$0xff]
  %v239 = vld [vmem:[%s3 + $0x650] sm:$0xff]
  %v240 = vld [vmem:[%s3 + $0x658] sm:$0xff]
  %v241 = vld [vmem:[%s3 + $0x660] sm:$0xff]
  %v242 = vld [vmem:[%s3 + $0x668] sm:$0xff]
  %v243 = vld [vmem:[%s3 + $0x670] sm:$0xff]
  %v244 = vld [vmem:[%s3 + $0x678] sm:$0xff]
  %v245 = vld [vmem:[%s3 + $0x680] sm:$0xff]
  %v246 = vld [vmem:[%s3 + $0x688] sm:$0xff]
  %v247 = vld [vmem:[%s3 + $0x690] sm:$0xff]
  %v248 = vld [vmem:[%s3 + $0x698] sm:$0xff]
  %v249 = vld [vmem:[%s3 + $0x6a0] sm:$0xff]
  %v250 = vld [vmem:[%s3 + $0x6a8] sm:$0xff]
  %v251 = vld [vmem:[%s3 + $0x6b0] sm:$0xff]
  %v252 = vld [vmem:[%s3 + $0x6b8] sm:$0xff]
  %v253 = vld [vmem:[%s3 + $0x6c0] sm:$0xff]
  %v254 = vld [vmem:[%s3 + $0x6c8] sm:$0xff]
  %v255 = vld [vmem:[%s3 + $0x6d0] sm:$0xff]
  %v256 = vld [vmem:[%s3 + $0x6d8] sm:$0xff]
  %v257 = vld [vmem:[%s3 + $0x6e0] sm:$0xff]
  %v258 = vld [vmem:[%s3 + $0x6e8] sm:$0xff]
  %v259 = vld [vmem:[%s3 + $0x6f0] sm:$0xff]
  %v260 = vld [vmem:[%s3 + $0x6f8] sm:$0xff]
  %v261 = vld [vmem:[%s3 + $0x700] sm:$0xff]
  %v262 = vld [vmem:[%s3 + $0x708] sm:$0xff]
  %v263 = vld [vmem:[%s3 + $0x710] sm:$0xff]
  %v264 = vld [vmem:[%s3 + $0x718] sm:$0xff]
  %v265 = vld [vmem:[%s3 + $0x720] sm:$0xff]
  %v266 = vld [vmem:[%s3 + $0x728] sm:$0xff]
  %v267 = vld [vmem:[%s3 + $0x730] sm:$0xff]
  %v268 = vld [vmem:[%s3 + $0x738] sm:$0xff]
  %v269 = vld [vmem:[%s3 + $0x740] sm:$0xff]
  %v270 = vld [vmem:[%s3 + $0x748] sm:$0xff]
  %v271 = vld [vmem:[%s3 + $0x750] sm:$0xff]
  %v272 = vld [vmem:[%s3 + $0x758] sm:$0xff]
  %v273 = vld [vmem:[%s3 + $0x760] sm:$0xff]
  %v274 = vld [vmem:[%s3 + $0x768] sm:$0xff]
  %v275 = vld [vmem:[%s3 + $0x770] sm:$0xff]
  %v276 = vld [vmem:[%s3 + $0x778] sm:$0xff]
  %v277 = vld [vmem:[%s3 + $0x780] sm:$0xff]
  %v278 = vld [vmem:[%s3 + $0x788] sm:$0xff]
  %v279 = vld [vmem:[%s3 + $0x790] sm:$0xff]
  %v280 = vld [vmem:[%s3 + $0x798] sm:$0xff]
  %v281 = vld [vmem:[%s3 + $0x7a0] sm:$0xff]
  %v282 = vld [vmem:[%s3 + $0x7a8] sm:$0xff]
  %v283 = vld [vmem:[%s3 + $0x7b0] sm:$0xff]
  %v284 = vld [vmem:[%s3 + $0x7b8] sm:$0xff]
  %v285 = vld [vmem:[%s3 + $0x7c0] sm:$0xff]
  %v286 = vld [vmem:[%s3 + $0x7c8] sm:$0xff]
  %v287 = vld [vmem:[%s3 + $0x7d0] sm:$0xff]
  %v288 = vld [vmem:[%s3 + $0x7d8] sm:$0xff]
  %v289 = vld [vmem:[%s3 + $0x7e0] sm:$0xff]
  %v290 = vld [vmem:[%s3 + $0x7e8] sm:$0xff]
  %v291 = vld [vmem:[%s3 + $0x7f0] sm:$0xff]
  %v292 = vld [vmem:[%s3 + $0x7f8] sm:$0xff]
  %v293 = vld [vmem:[%s3 + $0x800] sm:$0xff]
  %v294 = vld [vmem:[%s3 + $0x808] sm:$0xff]
  %v295 = vld [vmem:[%s3 + $0x810] sm:$0xff]
  %v296 = vld [vmem:[%s3 + $0x818] sm:$0xff]
  %v297 = vld [vmem:[%s3 + $0x820] sm:$0xff]
  %v298 = vld [vmem:[%s3 + $0x828] sm:$0xff]
  %v299 = vld [vmem:[%s3 + $0x830] sm:$0xff]
  %v300 = vld [vmem:[%s3 + $0x838] sm:$0xff]
  %v301 = vld [vmem:[%s3 + $0x840] sm:$0xff]
  %v302 = vld [vmem:[%s3 + $0x848] sm:$0xff]
  %v303 = vld [vmem:[%s3 + $0x850] sm:$0xff]
  %v304 = vld [vmem:[%s3 + $0x858] sm:$0xff]
  %v305 = vld [vmem:[%s3 + $0x860] sm:$0xff]
  %v306 = vld [vmem:[%s3 + $0x868] sm:$0xff]
  %v307 = vld [vmem:[%s3 + $0x870] sm:$0xff]
  %v308 = vld [vmem:[%s3 + $0x878] sm:$0xff]
  %v309 = vld [vmem:[%s3 + $0x880] sm:$0xff]
  %v310 = vld [vmem:[%s3 + $0x888] sm:$0xff]
  %v311 = vld [vmem:[%s3 + $0x890] sm:$0xff]
  %v312 = vld [vmem:[%s3 + $0x898] sm:$0xff]
  %v313 = vld [vmem:[%s3 + $0x8a0] sm:$0xff]
  %v314 = vld [vmem:[%s3 + $0x8a8] sm:$0xff]
  %v315 = vld [vmem:[%s3 + $0x8b0] sm:$0xff]
  %v316 = vld [vmem:[%s3 + $0x8b8] sm:$0xff]
  %v317 = vld [vmem:[%s3 + $0x8c0] sm:$0xff]
  %v318 = vld [vmem:[%s3 + $0x8c8] sm:$0xff]
  %v319 = vld [vmem:[%s3 + $0x8d0] sm:$0xff]
  %v320 = vld [vmem:[%s3 + $0x8d8] sm:$0xff]
  %v321 = vld [vmem:[%s3 + $0x8e0] sm:$0xff]
  %v322 = vld [vmem:[%s3 + $0x8e8] sm:$0xff]
  %v323 = vld [vmem:[%s3 + $0x8f0] sm:$0xff]
  %v324 = vld [vmem:[%s3 + $0x8f8] sm:$0xff]
  %v325 = vld [vmem:[%s3 + $0x900] sm:$0xff]
  %v326 = vld [vmem:[%s3 + $0x908] sm:$0xff]
  %v327 = vld [vmem:[%s3 + $0x910] sm:$0xff]
  %v328 = vld [vmem:[%s3 + $0x918] sm:$0xff]
  %v329 = vld [vmem:[%s3 + $0x920] sm:$0xff]
  %v330 = vld [vmem:[%s3 + $0x928] sm:$0xff]
  %v331 = vld [vmem:[%s3 + $0x930] sm:$0xff]
  %v332 = vld [vmem:[%s3 + $0x938] sm:$0xff]
  %v333 = vld [vmem:[%s3 + $0x940] sm:$0xff]
  %v334 = vld [vmem:[%s3 + $0x948] sm:$0xff]
  %v335 = vld [vmem:[%s3 + $0x950] sm:$0xff]
  %v336 = vld [vmem:[%s3 + $0x958] sm:$0xff]
  %v337 = vld [vmem:[%s3 + $0x960] sm:$0xff]
  %v338 = vld [vmem:[%s3 + $0x968] sm:$0xff]
  %v339 = vld [vmem:[%s3 + $0x970] sm:$0xff]
  %v340 = vld [vmem:[%s3 + $0x978] sm:$0xff]
  %v341 = vld [vmem:[%s3 + $0x980] sm:$0xff]
  %v342 = vld [vmem:[%s3 + $0x988] sm:$0xff]
  %v343 = vld [vmem:[%s3 + $0x990] sm:$0xff]
  %v344 = vld [vmem:[%s3 + $0x998] sm:$0xff]
  %v345 = vld [vmem:[%s3 + $0x9a0] sm:$0xff]
  %v346 = vld [vmem:[%s3 + $0x9a8] sm:$0xff]
  %v347 = vld [vmem:[%s3 + $0x9b0] sm:$0xff]
  %v348 = vld [vmem:[%s3 + $0x9b8] sm:$0xff]
  %v349 = vld [vmem:[%s3 + $0x9c0] sm:$0xff]
  %v350 = vld [vmem:[%s3 + $0x9c8] sm:$0xff]
  %v351 = vld [vmem:[%s3 + $0x9d0] sm:$0xff]
  %v352 = vld [vmem:[%s3 + $0x9d8] sm:$0xff]
  %v353 = vld [vmem:[%s3 + $0x9e0] sm:$0xff]
  %v354 = vld [vmem:[%s3 + $0x9e8] sm:$0xff]
  %v355 = vld [vmem:[%s3 + $0x9f0] sm:$0xff]
  %v356 = vld [vmem:[%s3 + $0x9f8] sm:$0xff]
  %v357 = vld [vmem:[%s3 + $0xa00] sm:$0xff]
  %v358 = vld [vmem:[%s3 + $0xa08] sm:$0xff]
  %v359 = vld [vmem:[%s3 + $0xa10] sm:$0xff]
  %v360 = vld [vmem:[%s3 + $0xa18] sm:$0xff]
  %v361 = vld [vmem:[%s3 + $0xa20] sm:$0xff]
  %v362 = vld [vmem:[%s3 + $0xa28] sm:$0xff]
  %v363 = vld [vmem:[%s3 + $0xa30] sm:$0xff]
  %v364 = vld [vmem:[%s3 + $0xa38] sm:$0xff]
  %v365 = vld [vmem:[%s3 + $0xa40] sm:$0xff]
  %v366 = vld [vmem:[%s3 + $0xa48] sm:$0xff]
  %v367 = vld [vmem:[%s3 + $0xa50] sm:$0xff]
  %v368 = vld [vmem:[%s3 + $0xa58] sm:$0xff]
  %v369 = vld [vmem:[%s3 + $0xa60] sm:$0xff]
  %v370 = vld [vmem:[%s3 + $0xa68] sm:$0xff]
  %v371 = vld [vmem:[%s3 + $0xa70] sm:$0xff]
  %v372 = vld [vmem:[%s3 + $0xa78] sm:$0xff]
  %v373 = vld [vmem:[%s3 + $0xa80] sm:$0xff]
  %v374 = vld [vmem:[%s3 + $0xa88] sm:$0xff]
  %v375 = vld [vmem:[%s3 + $0xa90] sm:$0xff]
  %v376 = vld [vmem:[%s3 + $0xa98] sm:$0xff]
  %v377 = vld [vmem:[%s3 + $0xaa0] sm:$0xff]
  %v378 = vld [vmem:[%s3 + $0xaa8] sm:$0xff]
  %v379 = vld [vmem:[%s3 + $0xab0] sm:$0xff]
  %v380 = vld [vmem:[%s3 + $0xab8] sm:$0xff]
  %v381 = vld [vmem:[%s3 + $0xac0] sm:$0xff]
  %v382 = vld [vmem:[%s3 + $0xac8] sm:$0xff]
  %v383 = vld [vmem:[%s3 + $0xad0] sm:$0xff]
  %v384 = vld [vmem:[%s3 + $0xad8] sm:$0xff]
  %v385 = vld [vmem:[%s3 + $0xae0] sm:$0xff]
  %v386 = vld [vmem:[%s3 + $0xae8] sm:$0xff]
  %v387 = vld [vmem:[%s3 + $0xaf0] sm:$0xff]
  %v388 = vld [vmem:[%s3 + $0xaf8] sm:$0xff]
  %v389 = vld [vmem:[%s3 + $0xb00] sm:$0xff]
  %v390 = vld [vmem:[%s3 + $0xb08] sm:$0xff]
  %v391 = vld [vmem:[%s3 + $0xb10] sm:$0xff]
  %v392 = vld [vmem:[%s3 + $0xb18] sm:$0xff]
  %v393 = vld [vmem:[%s3 + $0xb20] sm:$0xff]
  %v394 = vld [vmem:[%s3 + $0xb28] sm:$0xff]
  %v395 = vld [vmem:[%s3 + $0xb30] sm:$0xff]
  %v396 = vld [vmem:[%s3 + $0xb38] sm:$0xff]
  %v397 = vld [vmem:[%s3 + $0xb40] sm:$0xff]
  %v398 = vld [vmem:[%s3 + $0xb48] sm:$0xff]
  %v399 = vld [vmem:[%s3 + $0xb50] sm:$0xff]
  %v400 = vld [vmem:[%s3 + $0xb58] sm:$0xff]
  %v401 = vld [vmem:[%s3 + $0xb60] sm:$0xff]
  %v402 = vld [vmem:[%s3 + $0xb68] sm:$0xff]
  %v403 = vld [vmem:[%s3 + $0xb70] sm:$0xff]
  %v404 = vld [vmem:[%s3 + $0xb78] sm:$0xff]
  %v405 = vld [vmem:[%s3 + $0xb80] sm:$0xff]
  %v406 = vld [vmem:[%s3 + $0xb88] sm:$0xff]
  %v407 = vld [vmem:[%s3 + $0xb90] sm:$0xff]
  %v408 = vld [vmem:[%s3 + $0xb98] sm:$0xff]
  %v409 = vld [vmem:[%s3 + $0xba0] sm:$0xff]
  %v410 = vld [vmem:[%s3 + $0xba8] sm:$0xff]
  %v411 = vld [vmem:[%s3 + $0xbb0] sm:$0xff]
  %v412 = vld [vmem:[%s3 + $0xbb8] sm:$0xff]
  %v413 = vld [vmem:[%s3 + $0xbc0] sm:$0xff]
  %v414 = vld [vmem:[%s3 + $0xbc8] sm:$0xff]
  %v415 = vld [vmem:[%s3 + $0xbd0] sm:$0xff]
  %v416 = vld [vmem:[%s3 + $0xbd8] sm:$0xff]
  %v417 = vld [vmem:[%s3 + $0xbe0] sm:$0xff]
  %v418 = vld [vmem:[%s3 + $0xbe8] sm:$0xff]
  %v419 = vld [vmem:[%s3 + $0xbf0] sm:$0xff]
  %v420 = vld [vmem:[%s3 + $0xbf8] sm:$0xff]
  %v421 = vld [vmem:[%s4] sm:$0xff]
  %v422 = vld [vmem:[%s4 + $0x8] sm:$0xff]
  %v423 = vld [vmem:[%s4 + $0x10] sm:$0xff]
  %v424 = vld [vmem:[%s4 + $0x18] sm:$0xff]
  %v425 = vld [vmem:[%s4 + $0x20] sm:$0xff]
  %v426 = vld [vmem:[%s4 + $0x28] sm:$0xff]
  %v427 = vld [vmem:[%s4 + $0x30] sm:$0xff]
  %v428 = vld [vmem:[%s4 + $0x38] sm:$0xff]
  %v429 = vld [vmem:[%s4 + $0x40] sm:$0xff]
  %v430 = vld [vmem:[%s4 + $0x48] sm:$0xff]
  %v431 = vld [vmem:[%s4 + $0x50] sm:$0xff]
  %v432 = vld [vmem:[%s4 + $0x58] sm:$0xff]
  %v433 = vld [vmem:[%s4 + $0x60] sm:$0xff]
  %v434 = vld [vmem:[%s4 + $0x68] sm:$0xff]
  %v435 = vld [vmem:[%s4 + $0x70] sm:$0xff]
  %v436 = vld [vmem:[%s4 + $0x78] sm:$0xff]
  %v437 = vld [vmem:[%s4 + $0x80] sm:$0xff]
  %v438 = vld [vmem:[%s4 + $0x88] sm:$0xff]
  %v439 = vld [vmem:[%s4 + $0x90] sm:$0xff]
  %v440 = vld [vmem:[%s4 + $0x98] sm:$0xff]
  %v441 = vld [vmem:[%s4 + $0xa0] sm:$0xff]
  %v442 = vld [vmem:[%s4 + $0xa8] sm:$0xff]
  %v443 = vld [vmem:[%s4 + $0xb0] sm:$0xff]
  %v444 = vld [vmem:[%s4 + $0xb8] sm:$0xff]
  %v445 = vld [vmem:[%s4 + $0xc0] sm:$0xff]
  %v446 = vld [vmem:[%s4 + $0xc8] sm:$0xff]
  %v447 = vld [vmem:[%s4 + $0xd0] sm:$0xff]
  %v448 = vld [vmem:[%s4 + $0xd8] sm:$0xff]
  %v449 = vld [vmem:[%s4 + $0xe0] sm:$0xff]
  %v450 = vld [vmem:[%s4 + $0xe8] sm:$0xff]
  %v451 = vld [vmem:[%s4 + $0xf0] sm:$0xff]
  %v452 = vld [vmem:[%s4 + $0xf8] sm:$0xff]
  %v453 = vld [vmem:[%s4 + $0x100] sm:$0xff]
  %v454 = vld [vmem:[%s4 + $0x108] sm:$0xff]
  %v455 = vld [vmem:[%s4 + $0x110] sm:$0xff]
  %v456 = vld [vmem:[%s4 + $0x118] sm:$0xff]
  %v457 = vld [vmem:[%s4 + $0x120] sm:$0xff]
  %v458 = vld [vmem:[%s4 + $0x128] sm:$0xff]
  %v459 = vld [vmem:[%s4 + $0x130] sm:$0xff]
  %v460 = vld [vmem:[%s4 + $0x138] sm:$0xff]
  %v461 = vld [vmem:[%s4 + $0x140] sm:$0xff]
  %v462 = vld [vmem:[%s4 + $0x148] sm:$0xff]
  %v463 = vld [vmem:[%s4 + $0x150] sm:$0xff]
  %v464 = vld [vmem:[%s4 + $0x158] sm:$0xff]
  %v465 = vld [vmem:[%s4 + $0x160] sm:$0xff]
  %v466 = vld [vmem:[%s4 + $0x168] sm:$0xff]
  %v467 = vld [vmem:[%s4 + $0x170] sm:$0xff]
  %v468 = vld [vmem:[%s4 + $0x178] sm:$0xff]
  %v469 = vld [vmem:[%s4 + $0x180] sm:$0xff]
  %v470 = vld [vmem:[%s4 + $0x188] sm:$0xff]
  %v471 = vld [vmem:[%s4 + $0x190] sm:$0xff]
  %v472 = vld [vmem:[%s4 + $0x198] sm:$0xff]
  %v473 = vld [vmem:[%s4 + $0x1a0] sm:$0xff]
  %v474 = vld [vmem:[%s4 + $0x1a8] sm:$0xff]
  %v475 = vld [vmem:[%s4 + $0x1b0] sm:$0xff]
  %v476 = vld [vmem:[%s4 + $0x1b8] sm:$0xff]
  %v477 = vld [vmem:[%s4 + $0x1c0] sm:$0xff]
  %v478 = vld [vmem:[%s4 + $0x1c8] sm:$0xff]
  %v479 = vld [vmem:[%s4 + $0x1d0] sm:$0xff]
  %v480 = vld [vmem:[%s4 + $0x1d8] sm:$0xff]
  %v481 = vld [vmem:[%s4 + $0x1e0] sm:$0xff]
  %v482 = vld [vmem:[%s4 + $0x1e8] sm:$0xff]
  %v483 = vld [vmem:[%s4 + $0x1f0] sm:$0xff]
  %v484 = vld [vmem:[%s4 + $0x1f8] sm:$0xff]
  %v485 = vld [vmem:[%s4 + $0x200] sm:$0xff]
  %v486 = vld [vmem:[%s4 + $0x208] sm:$0xff]
  %v487 = vld [vmem:[%s4 + $0x210] sm:$0xff]
  %v488 = vld [vmem:[%s4 + $0x218] sm:$0xff]
  %v489 = vld [vmem:[%s4 + $0x220] sm:$0xff]
  %v490 = vld [vmem:[%s4 + $0x228] sm:$0xff]
  %v491 = vld [vmem:[%s4 + $0x230] sm:$0xff]
  %v492 = vld [vmem:[%s4 + $0x238] sm:$0xff]
  %v493 = vld [vmem:[%s4 + $0x240] sm:$0xff]
  %v494 = vld [vmem:[%s4 + $0x248] sm:$0xff]
  %v495 = vld [vmem:[%s4 + $0x250] sm:$0xff]
  %v496 = vld [vmem:[%s4 + $0x258] sm:$0xff]
  %v497 = vld [vmem:[%s4 + $0x260] sm:$0xff]
  %v498 = vld [vmem:[%s4 + $0x268] sm:$0xff]
  %v499 = vld [vmem:[%s4 + $0x270] sm:$0xff]
  %v500 = vld [vmem:[%s4 + $0x278] sm:$0xff]
  %v501 = vld [vmem:[%s4 + $0x280] sm:$0xff]
  %v502 = vld [vmem:[%s4 + $0x288] sm:$0xff]
  %v503 = vld [vmem:[%s4 + $0x290] sm:$0xff]
  %v504 = vld [vmem:[%s4 + $0x298] sm:$0xff]
  %v505 = vld [vmem:[%s4 + $0x2a0] sm:$0xff]
  %v506 = vld [vmem:[%s4 + $0x2a8] sm:$0xff]
  %v507 = vld [vmem:[%s4 + $0x2b0] sm:$0xff]
  %v508 = vld [vmem:[%s4 + $0x2b8] sm:$0xff]
  %v509 = vld [vmem:[%s4 + $0x2c0] sm:$0xff]
  %v510 = vld [vmem:[%s4 + $0x2c8] sm:$0xff]
  %v511 = vld [vmem:[%s4 + $0x2d0] sm:$0xff]
  %v512 = vld [vmem:[%s4 + $0x2d8] sm:$0xff]
  %v513 = vld [vmem:[%s4 + $0x2e0] sm:$0xff]
  %v514 = vld [vmem:[%s4 + $0x2e8] sm:$0xff]
  %v515 = vld [vmem:[%s4 + $0x2f0] sm:$0xff]
  %v516 = vld [vmem:[%s4 + $0x2f8] sm:$0xff]
  %v517 = vld [vmem:[%s4 + $0x300] sm:$0xff]
  %v518 = vld [vmem:[%s4 + $0x308] sm:$0xff]
  %v519 = vld [vmem:[%s4 + $0x310] sm:$0xff]
  %v520 = vld [vmem:[%s4 + $0x318] sm:$0xff]
  %v521 = vld [vmem:[%s4 + $0x320] sm:$0xff]
  %v522 = vld [vmem:[%s4 + $0x328] sm:$0xff]
  %v523 = vld [vmem:[%s4 + $0x330] sm:$0xff]
  %v524 = vld [vmem:[%s4 + $0x338] sm:$0xff]
  %v525 = vld [vmem:[%s4 + $0x340] sm:$0xff]
  %v526 = vld [vmem:[%s4 + $0x348] sm:$0xff]
  %v527 = vld [vmem:[%s4 + $0x350] sm:$0xff]
  %v528 = vld [vmem:[%s4 + $0x358] sm:$0xff]
  %v529 = vld [vmem:[%s4 + $0x360] sm:$0xff]
  %v530 = vld [vmem:[%s4 + $0x368] sm:$0xff]
  %v531 = vld [vmem:[%s4 + $0x370] sm:$0xff]
  %v532 = vld [vmem:[%s4 + $0x378] sm:$0xff]
  %v533 = vld [vmem:[%s4 + $0x380] sm:$0xff]
  %v534 = vld [vmem:[%s4 + $0x388] sm:$0xff]
  %v535 = vld [vmem:[%s4 + $0x390] sm:$0xff]
  %v536 = vld [vmem:[%s4 + $0x398] sm:$0xff]
  %v537 = vld [vmem:[%s4 + $0x3a0] sm:$0xff]
  %v538 = vld [vmem:[%s4 + $0x3a8] sm:$0xff]
  %v539 = vld [vmem:[%s4 + $0x3b0] sm:$0xff]
  %v540 = vld [vmem:[%s4 + $0x3b8] sm:$0xff]
  %v541 = vld [vmem:[%s4 + $0x3c0] sm:$0xff]
  %v542 = vld [vmem:[%s4 + $0x3c8] sm:$0xff]
  %v543 = vld [vmem:[%s4 + $0x3d0] sm:$0xff]
  %v544 = vld [vmem:[%s4 + $0x3d8] sm:$0xff]
  %v545 = vld [vmem:[%s4 + $0x3e0] sm:$0xff]
  %v546 = vld [vmem:[%s4 + $0x3e8] sm:$0xff]
  %v547 = vld [vmem:[%s4 + $0x3f0] sm:$0xff]
  %v548 = vld [vmem:[%s4 + $0x3f8] sm:$0xff]
  %v549 = vld [vmem:[%s4 + $0x400] sm:$0xff]
  %v550 = vld [vmem:[%s4 + $0x408] sm:$0xff]
  %v551 = vld [vmem:[%s4 + $0x410] sm:$0xff]
  %v552 = vld [vmem:[%s4 + $0x418] sm:$0xff]
  %v553 = vld [vmem:[%s4 + $0x420] sm:$0xff]
  %v554 = vld [vmem:[%s4 + $0x428] sm:$0xff]
  %v555 = vld [vmem:[%s4 + $0x430] sm:$0xff]
  %v556 = vld [vmem:[%s4 + $0x438] sm:$0xff]
  %v557 = vld [vmem:[%s4 + $0x440] sm:$0xff]
  %v558 = vld [vmem:[%s4 + $0x448] sm:$0xff]
  %v559 = vld [vmem:[%s4 + $0x450] sm:$0xff]
  %v560 = vld [vmem:[%s4 + $0x458] sm:$0xff]
  %v561 = vld [vmem:[%s4 + $0x460] sm:$0xff]
  %v562 = vld [vmem:[%s4 + $0x468] sm:$0xff]
  %v563 = vld [vmem:[%s4 + $0x470] sm:$0xff]
  %v564 = vld [vmem:[%s4 + $0x478] sm:$0xff]
  %v565 = vld [vmem:[%s4 + $0x480] sm:$0xff]
  %v566 = vld [vmem:[%s4 + $0x488] sm:$0xff]
  %v567 = vld [vmem:[%s4 + $0x490] sm:$0xff]
  %v568 = vld [vmem:[%s4 + $0x498] sm:$0xff]
  %v569 = vld [vmem:[%s4 + $0x4a0] sm:$0xff]
  %v570 = vld [vmem:[%s4 + $0x4a8] sm:$0xff]
  %v571 = vld [vmem:[%s4 + $0x4b0] sm:$0xff]
  %v572 = vld [vmem:[%s4 + $0x4b8] sm:$0xff]
  %v573 = vld [vmem:[%s4 + $0x4c0] sm:$0xff]
  %v574 = vld [vmem:[%s4 + $0x4c8] sm:$0xff]
  %v575 = vld [vmem:[%s4 + $0x4d0] sm:$0xff]
  %v576 = vld [vmem:[%s4 + $0x4d8] sm:$0xff]
  %v577 = vld [vmem:[%s4 + $0x4e0] sm:$0xff]
  %v578 = vld [vmem:[%s4 + $0x4e8] sm:$0xff]
  %v579 = vld [vmem:[%s4 + $0x4f0] sm:$0xff]
  %v580 = vld [vmem:[%s4 + $0x4f8] sm:$0xff]
  %v581 = vld [vmem:[%s4 + $0x500] sm:$0xff]
  %v582 = vld [vmem:[%s4 + $0x508] sm:$0xff]
  %v583 = vld [vmem:[%s4 + $0x510] sm:$0xff]
  %v584 = vld [vmem:[%s4 + $0x518] sm:$0xff]
  %v585 = vld [vmem:[%s4 + $0x520] sm:$0xff]
  %v586 = vld [vmem:[%s4 + $0x528] sm:$0xff]
  %v587 = vld [vmem:[%s4 + $0x530] sm:$0xff]
  %v588 = vld [vmem:[%s4 + $0x538] sm:$0xff]
  %v589 = vld [vmem:[%s4 + $0x540] sm:$0xff]
  %v590 = vld [vmem:[%s4 + $0x548] sm:$0xff]
  %v591 = vld [vmem:[%s4 + $0x550] sm:$0xff]
  %v592 = vld [vmem:[%s4 + $0x558] sm:$0xff]
  %v593 = vld [vmem:[%s4 + $0x560] sm:$0xff]
  %v594 = vld [vmem:[%s4 + $0x568] sm:$0xff]
  %v595 = vld [vmem:[%s4 + $0x570] sm:$0xff]
  %v596 = vld [vmem:[%s4 + $0x578] sm:$0xff]
  %v597 = vld [vmem:[%s4 + $0x580] sm:$0xff]
  %v598 = vld [vmem:[%s4 + $0x588] sm:$0xff]
  %v599 = vld [vmem:[%s4 + $0x590] sm:$0xff]
  %v600 = vld [vmem:[%s4 + $0x598] sm:$0xff]
  %v601 = vld [vmem:[%s4 + $0x5a0] sm:$0xff]
  %v602 = vld [vmem:[%s4 + $0x5a8] sm:$0xff]
  %v603 = vld [vmem:[%s4 + $0x5b0] sm:$0xff]
  %v604 = vld [vmem:[%s4 + $0x5b8] sm:$0xff]
  %v605 = vld [vmem:[%s4 + $0x5c0] sm:$0xff]
  %v606 = vld [vmem:[%s4 + $0x5c8] sm:$0xff]
  %v607 = vld [vmem:[%s4 + $0x5d0] sm:$0xff]
  %v608 = vld [vmem:[%s4 + $0x5d8] sm:$0xff]
  %v609 = vld [vmem:[%s4 + $0x5e0] sm:$0xff]
  %v610 = vld [vmem:[%s4 + $0x5e8] sm:$0xff]
  %v611 = vld [vmem:[%s4 + $0x5f0] sm:$0xff]
  %v612 = vld [vmem:[%s4 + $0x5f8] sm:$0xff]
  %v613 = vld [vmem:[%s4 + $0x600] sm:$0xff]
  %v614 = vld [vmem:[%s4 + $0x608] sm:$0xff]
  %v615 = vld [vmem:[%s4 + $0x610] sm:$0xff]
  %v616 = vld [vmem:[%s4 + $0x618] sm:$0xff]
  %v617 = vld [vmem:[%s4 + $0x620] sm:$0xff]
  %v618 = vld [vmem:[%s4 + $0x628] sm:$0xff]
  %v619 = vld [vmem:[%s4 + $0x630] sm:$0xff]
  %v620 = vld [vmem:[%s4 + $0x638] sm:$0xff]
  %v621 = vld [vmem:[%s4 + $0x640] sm:$0xff]
  %v622 = vld [vmem:[%s4 + $0x648] sm:$0xff]
  %v623 = vld [vmem:[%s4 + $0x650] sm:$0xff]
  %v624 = vld [vmem:[%s4 + $0x658] sm:$0xff]
  %v625 = vld [vmem:[%s4 + $0x660] sm:$0xff]
  %v626 = vld [vmem:[%s4 + $0x668] sm:$0xff]
  %v627 = vld [vmem:[%s4 + $0x670] sm:$0xff]
  %v628 = vld [vmem:[%s4 + $0x678] sm:$0xff]
  %v629 = vld [vmem:[%s4 + $0x680] sm:$0xff]
  %v630 = vld [vmem:[%s4 + $0x688] sm:$0xff]
  %v631 = vld [vmem:[%s4 + $0x690] sm:$0xff]
  %v632 = vld [vmem:[%s4 + $0x698] sm:$0xff]
  %v633 = vld [vmem:[%s4 + $0x6a0] sm:$0xff]
  %v634 = vld [vmem:[%s4 + $0x6a8] sm:$0xff]
  %v635 = vld [vmem:[%s4 + $0x6b0] sm:$0xff]
  %v636 = vld [vmem:[%s4 + $0x6b8] sm:$0xff]
  %v637 = vld [vmem:[%s4 + $0x6c0] sm:$0xff]
  %v638 = vld [vmem:[%s4 + $0x6c8] sm:$0xff]
  %v639 = vld [vmem:[%s4 + $0x6d0] sm:$0xff]
  %v640 = vld [vmem:[%s4 + $0x6d8] sm:$0xff]
  %v641 = vld [vmem:[%s4 + $0x6e0] sm:$0xff]
  %v642 = vld [vmem:[%s4 + $0x6e8] sm:$0xff]
  %v643 = vld [vmem:[%s4 + $0x6f0] sm:$0xff]
  %v644 = vld [vmem:[%s4 + $0x6f8] sm:$0xff]
  %v645 = vld [vmem:[%s4 + $0x700] sm:$0xff]
  %v646 = vld [vmem:[%s4 + $0x708] sm:$0xff]
  %v647 = vld [vmem:[%s4 + $0x710] sm:$0xff]
  %v648 = vld [vmem:[%s4 + $0x718] sm:$0xff]
  %v649 = vld [vmem:[%s4 + $0x720] sm:$0xff]
  %v650 = vld [vmem:[%s4 + $0x728] sm:$0xff]
  %v651 = vld [vmem:[%s4 + $0x730] sm:$0xff]
  %v652 = vld [vmem:[%s4 + $0x738] sm:$0xff]
  %v653 = vld [vmem:[%s4 + $0x740] sm:$0xff]
  %v654 = vld [vmem:[%s4 + $0x748] sm:$0xff]
  %v655 = vld [vmem:[%s4 + $0x750] sm:$0xff]
  %v656 = vld [vmem:[%s4 + $0x758] sm:$0xff]
  %v657 = vld [vmem:[%s4 + $0x760] sm:$0xff]
  %v658 = vld [vmem:[%s4 + $0x768] sm:$0xff]
  %v659 = vld [vmem:[%s4 + $0x770] sm:$0xff]
  %v660 = vld [vmem:[%s4 + $0x778] sm:$0xff]
  %v661 = vld [vmem:[%s4 + $0x780] sm:$0xff]
  %v662 = vld [vmem:[%s4 + $0x788] sm:$0xff]
  %v663 = vld [vmem:[%s4 + $0x790] sm:$0xff]
  %v664 = vld [vmem:[%s4 + $0x798] sm:$0xff]
  %v665 = vld [vmem:[%s4 + $0x7a0] sm:$0xff]
  %v666 = vld [vmem:[%s4 + $0x7a8] sm:$0xff]
  %v667 = vld [vmem:[%s4 + $0x7b0] sm:$0xff]
  %v668 = vld [vmem:[%s4 + $0x7b8] sm:$0xff]
  %v669 = vld [vmem:[%s4 + $0x7c0] sm:$0xff]
  %v670 = vld [vmem:[%s4 + $0x7c8] sm:$0xff]
  %v671 = vld [vmem:[%s4 + $0x7d0] sm:$0xff]
  %v672 = vld [vmem:[%s4 + $0x7d8] sm:$0xff]
  %v673 = vld [vmem:[%s4 + $0x7e0] sm:$0xff]
  %v674 = vld [vmem:[%s4 + $0x7e8] sm:$0xff]
  %v675 = vld [vmem:[%s4 + $0x7f0] sm:$0xff]
  %v676 = vld [vmem:[%s4 + $0x7f8] sm:$0xff]
  %v677 = vld [vmem:[%s4 + $0x800] sm:$0xff]
  %v678 = vld [vmem:[%s4 + $0x808] sm:$0xff]
  %v679 = vld [vmem:[%s4 + $0x810] sm:$0xff]
  %v680 = vld [vmem:[%s4 + $0x818] sm:$0xff]
  %v681 = vld [vmem:[%s4 + $0x820] sm:$0xff]
  %v682 = vld [vmem:[%s4 + $0x828] sm:$0xff]
  %v683 = vld [vmem:[%s4 + $0x830] sm:$0xff]
  %v684 = vld [vmem:[%s4 + $0x838] sm:$0xff]
  %v685 = vld [vmem:[%s4 + $0x840] sm:$0xff]
  %v686 = vld [vmem:[%s4 + $0x848] sm:$0xff]
  %v687 = vld [vmem:[%s4 + $0x850] sm:$0xff]
  %v688 = vld [vmem:[%s4 + $0x858] sm:$0xff]
  %v689 = vld [vmem:[%s4 + $0x860] sm:$0xff]
  %v690 = vld [vmem:[%s4 + $0x868] sm:$0xff]
  %v691 = vld [vmem:[%s4 + $0x870] sm:$0xff]
  %v692 = vld [vmem:[%s4 + $0x878] sm:$0xff]
  %v693 = vld [vmem:[%s4 + $0x880] sm:$0xff]
  %v694 = vld [vmem:[%s4 + $0x888] sm:$0xff]
  %v695 = vld [vmem:[%s4 + $0x890] sm:$0xff]
  %v696 = vld [vmem:[%s4 + $0x898] sm:$0xff]
  %v697 = vld [vmem:[%s4 + $0x8a0] sm:$0xff]
  %v698 = vld [vmem:[%s4 + $0x8a8] sm:$0xff]
  %v699 = vld [vmem:[%s4 + $0x8b0] sm:$0xff]
  %v700 = vld [vmem:[%s4 + $0x8b8] sm:$0xff]
  %v701 = vld [vmem:[%s4 + $0x8c0] sm:$0xff]
  %v702 = vld [vmem:[%s4 + $0x8c8] sm:$0xff]
  %v703 = vld [vmem:[%s4 + $0x8d0] sm:$0xff]
  %v704 = vld [vmem:[%s4 + $0x8d8] sm:$0xff]
  %v705 = vld [vmem:[%s4 + $0x8e0] sm:$0xff]
  %v706 = vld [vmem:[%s4 + $0x8e8] sm:$0xff]
  %v707 = vld [vmem:[%s4 + $0x8f0] sm:$0xff]
  %v708 = vld [vmem:[%s4 + $0x8f8] sm:$0xff]
  %v709 = vld [vmem:[%s4 + $0x900] sm:$0xff]
  %v710 = vld [vmem:[%s4 + $0x908] sm:$0xff]
  %v711 = vld [vmem:[%s4 + $0x910] sm:$0xff]
  %v712 = vld [vmem:[%s4 + $0x918] sm:$0xff]
  %v713 = vld [vmem:[%s4 + $0x920] sm:$0xff]
  %v714 = vld [vmem:[%s4 + $0x928] sm:$0xff]
  %v715 = vld [vmem:[%s4 + $0x930] sm:$0xff]
  %v716 = vld [vmem:[%s4 + $0x938] sm:$0xff]
  %v717 = vld [vmem:[%s4 + $0x940] sm:$0xff]
  %v718 = vld [vmem:[%s4 + $0x948] sm:$0xff]
  %v719 = vld [vmem:[%s4 + $0x950] sm:$0xff]
  %v720 = vld [vmem:[%s4 + $0x958] sm:$0xff]
  %v721 = vld [vmem:[%s4 + $0x960] sm:$0xff]
  %v722 = vld [vmem:[%s4 + $0x968] sm:$0xff]
  %v723 = vld [vmem:[%s4 + $0x970] sm:$0xff]
  %v724 = vld [vmem:[%s4 + $0x978] sm:$0xff]
  %v725 = vld [vmem:[%s4 + $0x980] sm:$0xff]
  %v726 = vld [vmem:[%s4 + $0x988] sm:$0xff]
  %v727 = vld [vmem:[%s4 + $0x990] sm:$0xff]
  %v728 = vld [vmem:[%s4 + $0x998] sm:$0xff]
  %v729 = vld [vmem:[%s4 + $0x9a0] sm:$0xff]
  %v730 = vld [vmem:[%s4 + $0x9a8] sm:$0xff]
  %v731 = vld [vmem:[%s4 + $0x9b0] sm:$0xff]
  %v732 = vld [vmem:[%s4 + $0x9b8] sm:$0xff]
  %v733 = vld [vmem:[%s4 + $0x9c0] sm:$0xff]
  %v734 = vld [vmem:[%s4 + $0x9c8] sm:$0xff]
  %v735 = vld [vmem:[%s4 + $0x9d0] sm:$0xff]
  %v736 = vld [vmem:[%s4 + $0x9d8] sm:$0xff]
  %v737 = vld [vmem:[%s4 + $0x9e0] sm:$0xff]
  %v738 = vld [vmem:[%s4 + $0x9e8] sm:$0xff]
  %v739 = vld [vmem:[%s4 + $0x9f0] sm:$0xff]
  %v740 = vld [vmem:[%s4 + $0x9f8] sm:$0xff]
  %v741 = vld [vmem:[%s4 + $0xa00] sm:$0xff]
  %v742 = vld [vmem:[%s4 + $0xa08] sm:$0xff]
  %v743 = vld [vmem:[%s4 + $0xa10] sm:$0xff]
  %v744 = vld [vmem:[%s4 + $0xa18] sm:$0xff]
  %v745 = vld [vmem:[%s4 + $0xa20] sm:$0xff]
  %v746 = vld [vmem:[%s4 + $0xa28] sm:$0xff]
  %v747 = vld [vmem:[%s4 + $0xa30] sm:$0xff]
  %v748 = vld [vmem:[%s4 + $0xa38] sm:$0xff]
  %v749 = vld [vmem:[%s4 + $0xa40] sm:$0xff]
  %v750 = vld [vmem:[%s4 + $0xa48] sm:$0xff]
  %v751 = vld [vmem:[%s4 + $0xa50] sm:$0xff]
  %v752 = vld [vmem:[%s4 + $0xa58] sm:$0xff]
  %v753 = vld [vmem:[%s4 + $0xa60] sm:$0xff]
  %v754 = vld [vmem:[%s4 + $0xa68] sm:$0xff]
  %v755 = vld [vmem:[%s4 + $0xa70] sm:$0xff]
  %v756 = vld [vmem:[%s4 + $0xa78] sm:$0xff]
  %v757 = vld [vmem:[%s4 + $0xa80] sm:$0xff]
  %v758 = vld [vmem:[%s4 + $0xa88] sm:$0xff]
  %v759 = vld [vmem:[%s4 + $0xa90] sm:$0xff]
  %v760 = vld [vmem:[%s4 + $0xa98] sm:$0xff]
  %v761 = vld [vmem:[%s4 + $0xaa0] sm:$0xff]
  %v762 = vld [vmem:[%s4 + $0xaa8] sm:$0xff]
  %v763 = vld [vmem:[%s4 + $0xab0] sm:$0xff]
  %v764 = vld [vmem:[%s4 + $0xab8] sm:$0xff]
  %v765 = vld [vmem:[%s4 + $0xac0] sm:$0xff]
  %v766 = vld [vmem:[%s4 + $0xac8] sm:$0xff]
  %v767 = vld [vmem:[%s4 + $0xad0] sm:$0xff]
  %v768 = vld [vmem:[%s4 + $0xad8] sm:$0xff]
  %v769 = vld [vmem:[%s4 + $0xae0] sm:$0xff]
  %v770 = vld [vmem:[%s4 + $0xae8] sm:$0xff]
  %v771 = vld [vmem:[%s4 + $0xaf0] sm:$0xff]
  %v772 = vld [vmem:[%s4 + $0xaf8] sm:$0xff]
  %v773 = vld [vmem:[%s4 + $0xb00] sm:$0xff]
  %v774 = vld [vmem:[%s4 + $0xb08] sm:$0xff]
  %v775 = vld [vmem:[%s4 + $0xb10] sm:$0xff]
  %v776 = vld [vmem:[%s4 + $0xb18] sm:$0xff]
  %v777 = vld [vmem:[%s4 + $0xb20] sm:$0xff]
  %v778 = vld [vmem:[%s4 + $0xb28] sm:$0xff]
  %v779 = vld [vmem:[%s4 + $0xb30] sm:$0xff]
  %v780 = vld [vmem:[%s4 + $0xb38] sm:$0xff]
  %v781 = vld [vmem:[%s4 + $0xb40] sm:$0xff]
  %v782 = vld [vmem:[%s4 + $0xb48] sm:$0xff]
  %v783 = vld [vmem:[%s4 + $0xb50] sm:$0xff]
  %v784 = vld [vmem:[%s4 + $0xb58] sm:$0xff]
  %v785 = vld [vmem:[%s4 + $0xb60] sm:$0xff]
  %v786 = vld [vmem:[%s4 + $0xb68] sm:$0xff]
  %v787 = vld [vmem:[%s4 + $0xb70] sm:$0xff]
  %v788 = vld [vmem:[%s4 + $0xb78] sm:$0xff]
  %v789 = vld [vmem:[%s4 + $0xb80] sm:$0xff]
  %v790 = vld [vmem:[%s4 + $0xb88] sm:$0xff]
  %v791 = vld [vmem:[%s4 + $0xb90] sm:$0xff]
  %v792 = vld [vmem:[%s4 + $0xb98] sm:$0xff]
  %v793 = vld [vmem:[%s4 + $0xba0] sm:$0xff]
  %v794 = vld [vmem:[%s4 + $0xba8] sm:$0xff]
  %v795 = vld [vmem:[%s4 + $0xbb0] sm:$0xff]
  %v796 = vld [vmem:[%s4 + $0xbb8] sm:$0xff]
  %v797 = vld [vmem:[%s4 + $0xbc0] sm:$0xff]
  %v798 = vld [vmem:[%s4 + $0xbc8] sm:$0xff]
  %v799 = vld [vmem:[%s4 + $0xbd0] sm:$0xff]
  %v800 = vld [vmem:[%s4 + $0xbd8] sm:$0xff]
  %v801 = vld [vmem:[%s4 + $0xbe0] sm:$0xff]
  %v802 = vld [vmem:[%s4 + $0xbe8] sm:$0xff]
  %v803 = vld [vmem:[%s4 + $0xbf0] sm:$0xff]
  %v804 = vld [vmem:[%s4 + $0xbf8] sm:$0xff]
  %v805 = vld [vmem:[%s5] sm:$0xff]
  %v807 = vlaneseq
  %v808 = vshrl.u32 %v807, 7
  %v809 = vsub.s32 0, %v808
  %v810 = vrot.slane %v805, %v809
  %v811 = vlaneseq
  %v812 = vshrl.u32 %v811, 7
  %v813 = vsub.s32 1, %v812
  %v814 = vrot.slane %v805, %v813
  %v815 = vlaneseq
  %v816 = vshrl.u32 %v815, 7
  %v817 = vsub.s32 2, %v816
  %v818 = vrot.slane %v805, %v817
  %v819 = vlaneseq
  %v820 = vshrl.u32 %v819, 7
  %v821 = vsub.s32 3, %v820
  %v822 = vrot.slane %v805, %v821
  %v823 = vlaneseq
  %v824 = vshrl.u32 %v823, 7
  %v825 = vsub.s32 4, %v824
  %v826 = vrot.slane %v805, %v825
  %v827 = vlaneseq
  %v828 = vshrl.u32 %v827, 7
  %v829 = vsub.s32 5, %v828
  %v830 = vrot.slane %v805, %v829
  %v831 = vlaneseq
  %v832 = vshrl.u32 %v831, 7
  %v833 = vsub.s32 6, %v832
  %v834 = vrot.slane %v805, %v833
  %v835 = vlaneseq
  %v836 = vshrl.u32 %v835, 7
  %v837 = vsub.s32 7, %v836
  %v838 = vrot.slane %v805, %v837
  %v850 = vunpack.c.l.b16 %v32
  %v851 = vunpack.c.h.b16 %v32
  %v852 = vunpack.c.l.b16 %v33
  %v853 = vunpack.c.h.b16 %v33
  %v854 = vunpack.c.l.b16 %v34
  %v855 = vunpack.c.h.b16 %v34
  %v856 = vpack.c.b16 %v850, %v850
  %v857 = vpack.c.b16 %v851, %v851
  %v858 = vpack.c.b16 %v852, %v852
  %v859 = vpack.c.b16 %v853, %v853
  %v860 = vpack.c.b16 %v854, %v854
  %v861 = vpack.c.b16 %v855, %v855
  %v1252 = vunpack.c.l.b16 %v37
  %v1253 = vunpack.c.h.b16 %v37
  %v1254 = vunpack.c.l.b16 %v38
  %v1255 = vunpack.c.h.b16 %v38
  %v1256 = vunpack.c.l.b16 %v39
  %v1257 = vunpack.c.h.b16 %v39
  %v1258 = vunpack.c.l.b16 %v40
  %v1259 = vunpack.c.h.b16 %v40
  %v1260 = vunpack.c.l.b16 %v41
  %v1261 = vunpack.c.h.b16 %v41
  %v1262 = vunpack.c.l.b16 %v42
  %v1263 = vunpack.c.h.b16 %v42
  %v1264 = vunpack.c.l.b16 %v43
  %v1265 = vunpack.c.h.b16 %v43
  %v1266 = vunpack.c.l.b16 %v44
  %v1267 = vunpack.c.h.b16 %v44
  %v1268 = vunpack.c.l.b16 %v45
  %v1269 = vunpack.c.h.b16 %v45
  %v1270 = vunpack.c.l.b16 %v46
  %v1271 = vunpack.c.h.b16 %v46
  %v1272 = vunpack.c.l.b16 %v47
  %v1273 = vunpack.c.h.b16 %v47
  %v1274 = vunpack.c.l.b16 %v48
  %v1275 = vunpack.c.h.b16 %v48
  %v1276 = vunpack.c.l.b16 %v49
  %v1277 = vunpack.c.h.b16 %v49
  %v1278 = vunpack.c.l.b16 %v50
  %v1279 = vunpack.c.h.b16 %v50
  %v1280 = vunpack.c.l.b16 %v51
  %v1281 = vunpack.c.h.b16 %v51
  %v1282 = vunpack.c.l.b16 %v52
  %v1283 = vunpack.c.h.b16 %v52
  %v1284 = vunpack.c.l.b16 %v53
  %v1285 = vunpack.c.h.b16 %v53
  %v1286 = vunpack.c.l.b16 %v54
  %v1287 = vunpack.c.h.b16 %v54
  %v1288 = vunpack.c.l.b16 %v55
  %v1289 = vunpack.c.h.b16 %v55
  %v1290 = vunpack.c.l.b16 %v56
  %v1291 = vunpack.c.h.b16 %v56
  %v1292 = vunpack.c.l.b16 %v57
  %v1293 = vunpack.c.h.b16 %v57
  %v1294 = vunpack.c.l.b16 %v58
  %v1295 = vunpack.c.h.b16 %v58
  %v1296 = vunpack.c.l.b16 %v59
  %v1297 = vunpack.c.h.b16 %v59
  %v1298 = vunpack.c.l.b16 %v60
  %v1299 = vunpack.c.h.b16 %v60
  %v1300 = vunpack.c.l.b16 %v61
  %v1301 = vunpack.c.h.b16 %v61
  %v1302 = vunpack.c.l.b16 %v62
  %v1303 = vunpack.c.h.b16 %v62
  %v1304 = vunpack.c.l.b16 %v63
  %v1305 = vunpack.c.h.b16 %v63
  %v1306 = vunpack.c.l.b16 %v64
  %v1307 = vunpack.c.h.b16 %v64
  %v1308 = vunpack.c.l.b16 %v65
  %v1309 = vunpack.c.h.b16 %v65
  %v1310 = vunpack.c.l.b16 %v66
  %v1311 = vunpack.c.h.b16 %v66
  %v1312 = vunpack.c.l.b16 %v67
  %v1313 = vunpack.c.h.b16 %v67
  %v1314 = vunpack.c.l.b16 %v68
  %v1315 = vunpack.c.h.b16 %v68
  %v1316 = vunpack.c.l.b16 %v69
  %v1317 = vunpack.c.h.b16 %v69
  %v1318 = vunpack.c.l.b16 %v70
  %v1319 = vunpack.c.h.b16 %v70
  %v1320 = vunpack.c.l.b16 %v71
  %v1321 = vunpack.c.h.b16 %v71
  %v1322 = vunpack.c.l.b16 %v72
  %v1323 = vunpack.c.h.b16 %v72
  %v1324 = vunpack.c.l.b16 %v73
  %v1325 = vunpack.c.h.b16 %v73
  %v1326 = vunpack.c.l.b16 %v74
  %v1327 = vunpack.c.h.b16 %v74
  %v1328 = vunpack.c.l.b16 %v75
  %v1329 = vunpack.c.h.b16 %v75
  %v1330 = vunpack.c.l.b16 %v76
  %v1331 = vunpack.c.h.b16 %v76
  %v1332 = vunpack.c.l.b16 %v77
  %v1333 = vunpack.c.h.b16 %v77
  %v1334 = vunpack.c.l.b16 %v78
  %v1335 = vunpack.c.h.b16 %v78
  %v1336 = vunpack.c.l.b16 %v79
  %v1337 = vunpack.c.h.b16 %v79
  %v1338 = vunpack.c.l.b16 %v80
  %v1339 = vunpack.c.h.b16 %v80
  %v1340 = vunpack.c.l.b16 %v81
  %v1341 = vunpack.c.h.b16 %v81
  %v1342 = vunpack.c.l.b16 %v82
  %v1343 = vunpack.c.h.b16 %v82
  %v1344 = vunpack.c.l.b16 %v83
  %v1345 = vunpack.c.h.b16 %v83
  %v1346 = vunpack.c.l.b16 %v84
  %v1347 = vunpack.c.h.b16 %v84
  %v1348 = vunpack.c.l.b16 %v85
  %v1349 = vunpack.c.h.b16 %v85
  %v1350 = vunpack.c.l.b16 %v86
  %v1351 = vunpack.c.h.b16 %v86
  %v1352 = vunpack.c.l.b16 %v87
  %v1353 = vunpack.c.h.b16 %v87
  %v1354 = vunpack.c.l.b16 %v88
  %v1355 = vunpack.c.h.b16 %v88
  %v1356 = vunpack.c.l.b16 %v89
  %v1357 = vunpack.c.h.b16 %v89
  %v1358 = vunpack.c.l.b16 %v90
  %v1359 = vunpack.c.h.b16 %v90
  %v1360 = vunpack.c.l.b16 %v91
  %v1361 = vunpack.c.h.b16 %v91
  %v1362 = vunpack.c.l.b16 %v92
  %v1363 = vunpack.c.h.b16 %v92
  %v1364 = vunpack.c.l.b16 %v93
  %v1365 = vunpack.c.h.b16 %v93
  %v1366 = vunpack.c.l.b16 %v94
  %v1367 = vunpack.c.h.b16 %v94
  %v1368 = vunpack.c.l.b16 %v95
  %v1369 = vunpack.c.h.b16 %v95
  %v1370 = vunpack.c.l.b16 %v96
  %v1371 = vunpack.c.h.b16 %v96
  %v1372 = vunpack.c.l.b16 %v97
  %v1373 = vunpack.c.h.b16 %v97
  %v1374 = vunpack.c.l.b16 %v98
  %v1375 = vunpack.c.h.b16 %v98
  %v1376 = vunpack.c.l.b16 %v99
  %v1377 = vunpack.c.h.b16 %v99
  %v1378 = vunpack.c.l.b16 %v100
  %v1379 = vunpack.c.h.b16 %v100
  %v1380 = vunpack.c.l.b16 %v101
  %v1381 = vunpack.c.h.b16 %v101
  %v1382 = vunpack.c.l.b16 %v102
  %v1383 = vunpack.c.h.b16 %v102
  %v1384 = vunpack.c.l.b16 %v103
  %v1385 = vunpack.c.h.b16 %v103
  %v1386 = vunpack.c.l.b16 %v104
  %v1387 = vunpack.c.h.b16 %v104
  %v1388 = vunpack.c.l.b16 %v105
  %v1389 = vunpack.c.h.b16 %v105
  %v1390 = vunpack.c.l.b16 %v106
  %v1391 = vunpack.c.h.b16 %v106
  %v1392 = vunpack.c.l.b16 %v107
  %v1393 = vunpack.c.h.b16 %v107
  %v1394 = vunpack.c.l.b16 %v108
  %v1395 = vunpack.c.h.b16 %v108
  %v1396 = vunpack.c.l.b16 %v109
  %v1397 = vunpack.c.h.b16 %v109
  %v1398 = vunpack.c.l.b16 %v110
  %v1399 = vunpack.c.h.b16 %v110
  %v1400 = vunpack.c.l.b16 %v111
  %v1401 = vunpack.c.h.b16 %v111
  %v1402 = vunpack.c.l.b16 %v112
  %v1403 = vunpack.c.h.b16 %v112
  %v1404 = vunpack.c.l.b16 %v113
  %v1405 = vunpack.c.h.b16 %v113
  %v1406 = vunpack.c.l.b16 %v114
  %v1407 = vunpack.c.h.b16 %v114
  %v1408 = vunpack.c.l.b16 %v115
  %v1409 = vunpack.c.h.b16 %v115
  %v1410 = vunpack.c.l.b16 %v116
  %v1411 = vunpack.c.h.b16 %v116
  %v1412 = vunpack.c.l.b16 %v117
  %v1413 = vunpack.c.h.b16 %v117
  %v1414 = vunpack.c.l.b16 %v118
  %v1415 = vunpack.c.h.b16 %v118
  %v1416 = vunpack.c.l.b16 %v119
  %v1417 = vunpack.c.h.b16 %v119
  %v1418 = vunpack.c.l.b16 %v120
  %v1419 = vunpack.c.h.b16 %v120
  %v1420 = vunpack.c.l.b16 %v121
  %v1421 = vunpack.c.h.b16 %v121
  %v1422 = vunpack.c.l.b16 %v122
  %v1423 = vunpack.c.h.b16 %v122
  %v1424 = vunpack.c.l.b16 %v123
  %v1425 = vunpack.c.h.b16 %v123
  %v1426 = vunpack.c.l.b16 %v124
  %v1427 = vunpack.c.h.b16 %v124
  %v1428 = vunpack.c.l.b16 %v125
  %v1429 = vunpack.c.h.b16 %v125
  %v1430 = vunpack.c.l.b16 %v126
  %v1431 = vunpack.c.h.b16 %v126
  %v1432 = vunpack.c.l.b16 %v127
  %v1433 = vunpack.c.h.b16 %v127
  %v1434 = vunpack.c.l.b16 %v128
  %v1435 = vunpack.c.h.b16 %v128
  %v1436 = vunpack.c.l.b16 %v129
  %v1437 = vunpack.c.h.b16 %v129
  %v1438 = vunpack.c.l.b16 %v130
  %v1439 = vunpack.c.h.b16 %v130
  %v1440 = vunpack.c.l.b16 %v131
  %v1441 = vunpack.c.h.b16 %v131
  %v1442 = vunpack.c.l.b16 %v132
  %v1443 = vunpack.c.h.b16 %v132
  %v1444 = vunpack.c.l.b16 %v133
  %v1445 = vunpack.c.h.b16 %v133
  %v1446 = vunpack.c.l.b16 %v134
  %v1447 = vunpack.c.h.b16 %v134
  %v1448 = vunpack.c.l.b16 %v135
  %v1449 = vunpack.c.h.b16 %v135
  %v1450 = vunpack.c.l.b16 %v136
  %v1451 = vunpack.c.h.b16 %v136
  %v1452 = vunpack.c.l.b16 %v137
  %v1453 = vunpack.c.h.b16 %v137
  %v1454 = vunpack.c.l.b16 %v138
  %v1455 = vunpack.c.h.b16 %v138
  %v1456 = vunpack.c.l.b16 %v139
  %v1457 = vunpack.c.h.b16 %v139
  %v1458 = vunpack.c.l.b16 %v140
  %v1459 = vunpack.c.h.b16 %v140
  %v1460 = vunpack.c.l.b16 %v141
  %v1461 = vunpack.c.h.b16 %v141
  %v1462 = vunpack.c.l.b16 %v142
  %v1463 = vunpack.c.h.b16 %v142
  %v1464 = vunpack.c.l.b16 %v143
  %v1465 = vunpack.c.h.b16 %v143
  %v1466 = vunpack.c.l.b16 %v144
  %v1467 = vunpack.c.h.b16 %v144
  %v1468 = vunpack.c.l.b16 %v145
  %v1469 = vunpack.c.h.b16 %v145
  %v1470 = vunpack.c.l.b16 %v146
  %v1471 = vunpack.c.h.b16 %v146
  %v1472 = vunpack.c.l.b16 %v147
  %v1473 = vunpack.c.h.b16 %v147
  %v1474 = vunpack.c.l.b16 %v148
  %v1475 = vunpack.c.h.b16 %v148
  %v1476 = vunpack.c.l.b16 %v149
  %v1477 = vunpack.c.h.b16 %v149
  %v1478 = vunpack.c.l.b16 %v150
  %v1479 = vunpack.c.h.b16 %v150
  %v1480 = vunpack.c.l.b16 %v151
  %v1481 = vunpack.c.h.b16 %v151
  %v1482 = vunpack.c.l.b16 %v152
  %v1483 = vunpack.c.h.b16 %v152
  %v1484 = vunpack.c.l.b16 %v153
  %v1485 = vunpack.c.h.b16 %v153
  %v1486 = vunpack.c.l.b16 %v154
  %v1487 = vunpack.c.h.b16 %v154
  %v1488 = vunpack.c.l.b16 %v155
  %v1489 = vunpack.c.h.b16 %v155
  %v1490 = vunpack.c.l.b16 %v156
  %v1491 = vunpack.c.h.b16 %v156
  %v1492 = vunpack.c.l.b16 %v157
  %v1493 = vunpack.c.h.b16 %v157
  %v1494 = vunpack.c.l.b16 %v158
  %v1495 = vunpack.c.h.b16 %v158
  %v1496 = vunpack.c.l.b16 %v159
  %v1497 = vunpack.c.h.b16 %v159
  %v1498 = vunpack.c.l.b16 %v160
  %v1499 = vunpack.c.h.b16 %v160
  %v1500 = vunpack.c.l.b16 %v161
  %v1501 = vunpack.c.h.b16 %v161
  %v1502 = vunpack.c.l.b16 %v162
  %v1503 = vunpack.c.h.b16 %v162
  %v1504 = vunpack.c.l.b16 %v163
  %v1505 = vunpack.c.h.b16 %v163
  %v1506 = vunpack.c.l.b16 %v164
  %v1507 = vunpack.c.h.b16 %v164
  %v1508 = vunpack.c.l.b16 %v165
  %v1509 = vunpack.c.h.b16 %v165
  %v1510 = vunpack.c.l.b16 %v166
  %v1511 = vunpack.c.h.b16 %v166
  %v1512 = vunpack.c.l.b16 %v167
  %v1513 = vunpack.c.h.b16 %v167
  %v1514 = vunpack.c.l.b16 %v168
  %v1515 = vunpack.c.h.b16 %v168
  %v1516 = vunpack.c.l.b16 %v169
  %v1517 = vunpack.c.h.b16 %v169
  %v1518 = vunpack.c.l.b16 %v170
  %v1519 = vunpack.c.h.b16 %v170
  %v1520 = vunpack.c.l.b16 %v171
  %v1521 = vunpack.c.h.b16 %v171
  %v1522 = vunpack.c.l.b16 %v172
  %v1523 = vunpack.c.h.b16 %v172
  %v1524 = vunpack.c.l.b16 %v173
  %v1525 = vunpack.c.h.b16 %v173
  %v1526 = vunpack.c.l.b16 %v174
  %v1527 = vunpack.c.h.b16 %v174
  %v1528 = vunpack.c.l.b16 %v175
  %v1529 = vunpack.c.h.b16 %v175
  %v1530 = vunpack.c.l.b16 %v176
  %v1531 = vunpack.c.h.b16 %v176
  %v1532 = vunpack.c.l.b16 %v177
  %v1533 = vunpack.c.h.b16 %v177
  %v1534 = vunpack.c.l.b16 %v178
  %v1535 = vunpack.c.h.b16 %v178
  %v1536 = vunpack.c.l.b16 %v179
  %v1537 = vunpack.c.h.b16 %v179
  %v1538 = vunpack.c.l.b16 %v180
  %v1539 = vunpack.c.h.b16 %v180
  %v1540 = vunpack.c.l.b16 %v181
  %v1541 = vunpack.c.h.b16 %v181
  %v1542 = vunpack.c.l.b16 %v182
  %v1543 = vunpack.c.h.b16 %v182
  %v1544 = vunpack.c.l.b16 %v183
  %v1545 = vunpack.c.h.b16 %v183
  %v1546 = vunpack.c.l.b16 %v184
  %v1547 = vunpack.c.h.b16 %v184
  %v1548 = vunpack.c.l.b16 %v185
  %v1549 = vunpack.c.h.b16 %v185
  %v1550 = vunpack.c.l.b16 %v186
  %v1551 = vunpack.c.h.b16 %v186
  %v1552 = vunpack.c.l.b16 %v187
  %v1553 = vunpack.c.h.b16 %v187
  %v1554 = vunpack.c.l.b16 %v188
  %v1555 = vunpack.c.h.b16 %v188
  %v1556 = vunpack.c.l.b16 %v189
  %v1557 = vunpack.c.h.b16 %v189
  %v1558 = vunpack.c.l.b16 %v190
  %v1559 = vunpack.c.h.b16 %v190
  %v1560 = vunpack.c.l.b16 %v191
  %v1561 = vunpack.c.h.b16 %v191
  %v1562 = vunpack.c.l.b16 %v192
  %v1563 = vunpack.c.h.b16 %v192
  %v1564 = vunpack.c.l.b16 %v193
  %v1565 = vunpack.c.h.b16 %v193
  %v1566 = vunpack.c.l.b16 %v194
  %v1567 = vunpack.c.h.b16 %v194
  %v1568 = vunpack.c.l.b16 %v195
  %v1569 = vunpack.c.h.b16 %v195
  %v1570 = vunpack.c.l.b16 %v196
  %v1571 = vunpack.c.h.b16 %v196
  %v1572 = vunpack.c.l.b16 %v197
  %v1573 = vunpack.c.h.b16 %v197
  %v1574 = vunpack.c.l.b16 %v198
  %v1575 = vunpack.c.h.b16 %v198
  %v1576 = vunpack.c.l.b16 %v199
  %v1577 = vunpack.c.h.b16 %v199
  %v1578 = vunpack.c.l.b16 %v200
  %v1579 = vunpack.c.h.b16 %v200
  %v1580 = vunpack.c.l.b16 %v201
  %v1581 = vunpack.c.h.b16 %v201
  %v1582 = vunpack.c.l.b16 %v202
  %v1583 = vunpack.c.h.b16 %v202
  %v1584 = vunpack.c.l.b16 %v203
  %v1585 = vunpack.c.h.b16 %v203
  %v1586 = vunpack.c.l.b16 %v204
  %v1587 = vunpack.c.h.b16 %v204
  %v1588 = vunpack.c.l.b16 %v205
  %v1589 = vunpack.c.h.b16 %v205
  %v1590 = vunpack.c.l.b16 %v206
  %v1591 = vunpack.c.h.b16 %v206
  %v1592 = vunpack.c.l.b16 %v207
  %v1593 = vunpack.c.h.b16 %v207
  %v1594 = vunpack.c.l.b16 %v208
  %v1595 = vunpack.c.h.b16 %v208
  %v1596 = vunpack.c.l.b16 %v209
  %v1597 = vunpack.c.h.b16 %v209
  %v1598 = vunpack.c.l.b16 %v210
  %v1599 = vunpack.c.h.b16 %v210
  %v1600 = vunpack.c.l.b16 %v211
  %v1601 = vunpack.c.h.b16 %v211
  %v1602 = vunpack.c.l.b16 %v212
  %v1603 = vunpack.c.h.b16 %v212
  %v1604 = vunpack.c.l.b16 %v213
  %v1605 = vunpack.c.h.b16 %v213
  %v1606 = vunpack.c.l.b16 %v214
  %v1607 = vunpack.c.h.b16 %v214
  %v1608 = vunpack.c.l.b16 %v215
  %v1609 = vunpack.c.h.b16 %v215
  %v1610 = vunpack.c.l.b16 %v216
  %v1611 = vunpack.c.h.b16 %v216
  %v1612 = vunpack.c.l.b16 %v217
  %v1613 = vunpack.c.h.b16 %v217
  %v1614 = vunpack.c.l.b16 %v218
  %v1615 = vunpack.c.h.b16 %v218
  %v1616 = vunpack.c.l.b16 %v219
  %v1617 = vunpack.c.h.b16 %v219
  %v1618 = vunpack.c.l.b16 %v220
  %v1619 = vunpack.c.h.b16 %v220
  %v1620 = vunpack.c.l.b16 %v221
  %v1621 = vunpack.c.h.b16 %v221
  %v1622 = vunpack.c.l.b16 %v222
  %v1623 = vunpack.c.h.b16 %v222
  %v1624 = vunpack.c.l.b16 %v223
  %v1625 = vunpack.c.h.b16 %v223
  %v1626 = vunpack.c.l.b16 %v224
  %v1627 = vunpack.c.h.b16 %v224
  %v1628 = vunpack.c.l.b16 %v225
  %v1629 = vunpack.c.h.b16 %v225
  %v1630 = vunpack.c.l.b16 %v226
  %v1631 = vunpack.c.h.b16 %v226
  %v1632 = vunpack.c.l.b16 %v227
  %v1633 = vunpack.c.h.b16 %v227
  %v1634 = vunpack.c.l.b16 %v228
  %v1635 = vunpack.c.h.b16 %v228
  %v1636 = vunpack.c.l.b16 %v229
  %v1637 = vunpack.c.h.b16 %v229
  %v1638 = vunpack.c.l.b16 %v230
  %v1639 = vunpack.c.h.b16 %v230
  %v1640 = vunpack.c.l.b16 %v231
  %v1641 = vunpack.c.h.b16 %v231
  %v1642 = vunpack.c.l.b16 %v232
  %v1643 = vunpack.c.h.b16 %v232
  %v1644 = vunpack.c.l.b16 %v233
  %v1645 = vunpack.c.h.b16 %v233
  %v1646 = vunpack.c.l.b16 %v234
  %v1647 = vunpack.c.h.b16 %v234
  %v1648 = vunpack.c.l.b16 %v235
  %v1649 = vunpack.c.h.b16 %v235
  %v1650 = vunpack.c.l.b16 %v236
  %v1651 = vunpack.c.h.b16 %v236
  %v1652 = vunpack.c.l.b16 %v237
  %v1653 = vunpack.c.h.b16 %v237
  %v1654 = vunpack.c.l.b16 %v238
  %v1655 = vunpack.c.h.b16 %v238
  %v1656 = vunpack.c.l.b16 %v239
  %v1657 = vunpack.c.h.b16 %v239
  %v1658 = vunpack.c.l.b16 %v240
  %v1659 = vunpack.c.h.b16 %v240
  %v1660 = vunpack.c.l.b16 %v241
  %v1661 = vunpack.c.h.b16 %v241
  %v1662 = vunpack.c.l.b16 %v242
  %v1663 = vunpack.c.h.b16 %v242
  %v1664 = vunpack.c.l.b16 %v243
  %v1665 = vunpack.c.h.b16 %v243
  %v1666 = vunpack.c.l.b16 %v244
  %v1667 = vunpack.c.h.b16 %v244
  %v1668 = vunpack.c.l.b16 %v245
  %v1669 = vunpack.c.h.b16 %v245
  %v1670 = vunpack.c.l.b16 %v246
  %v1671 = vunpack.c.h.b16 %v246
  %v1672 = vunpack.c.l.b16 %v247
  %v1673 = vunpack.c.h.b16 %v247
  %v1674 = vunpack.c.l.b16 %v248
  %v1675 = vunpack.c.h.b16 %v248
  %v1676 = vunpack.c.l.b16 %v249
  %v1677 = vunpack.c.h.b16 %v249
  %v1678 = vunpack.c.l.b16 %v250
  %v1679 = vunpack.c.h.b16 %v250
  %v1680 = vunpack.c.l.b16 %v251
  %v1681 = vunpack.c.h.b16 %v251
  %v1682 = vunpack.c.l.b16 %v252
  %v1683 = vunpack.c.h.b16 %v252
  %v1684 = vunpack.c.l.b16 %v253
  %v1685 = vunpack.c.h.b16 %v253
  %v1686 = vunpack.c.l.b16 %v254
  %v1687 = vunpack.c.h.b16 %v254
  %v1688 = vunpack.c.l.b16 %v255
  %v1689 = vunpack.c.h.b16 %v255
  %v1690 = vunpack.c.l.b16 %v256
  %v1691 = vunpack.c.h.b16 %v256
  %v1692 = vunpack.c.l.b16 %v257
  %v1693 = vunpack.c.h.b16 %v257
  %v1694 = vunpack.c.l.b16 %v258
  %v1695 = vunpack.c.h.b16 %v258
  %v1696 = vunpack.c.l.b16 %v259
  %v1697 = vunpack.c.h.b16 %v259
  %v1698 = vunpack.c.l.b16 %v260
  %v1699 = vunpack.c.h.b16 %v260
  %v1700 = vunpack.c.l.b16 %v261
  %v1701 = vunpack.c.h.b16 %v261
  %v1702 = vunpack.c.l.b16 %v262
  %v1703 = vunpack.c.h.b16 %v262
  %v1704 = vunpack.c.l.b16 %v263
  %v1705 = vunpack.c.h.b16 %v263
  %v1706 = vunpack.c.l.b16 %v264
  %v1707 = vunpack.c.h.b16 %v264
  %v1708 = vunpack.c.l.b16 %v265
  %v1709 = vunpack.c.h.b16 %v265
  %v1710 = vunpack.c.l.b16 %v266
  %v1711 = vunpack.c.h.b16 %v266
  %v1712 = vunpack.c.l.b16 %v267
  %v1713 = vunpack.c.h.b16 %v267
  %v1714 = vunpack.c.l.b16 %v268
  %v1715 = vunpack.c.h.b16 %v268
  %v1716 = vunpack.c.l.b16 %v269
  %v1717 = vunpack.c.h.b16 %v269
  %v1718 = vunpack.c.l.b16 %v270
  %v1719 = vunpack.c.h.b16 %v270
  %v1720 = vunpack.c.l.b16 %v271
  %v1721 = vunpack.c.h.b16 %v271
  %v1722 = vunpack.c.l.b16 %v272
  %v1723 = vunpack.c.h.b16 %v272
  %v1724 = vunpack.c.l.b16 %v273
  %v1725 = vunpack.c.h.b16 %v273
  %v1726 = vunpack.c.l.b16 %v274
  %v1727 = vunpack.c.h.b16 %v274
  %v1728 = vunpack.c.l.b16 %v275
  %v1729 = vunpack.c.h.b16 %v275
  %v1730 = vunpack.c.l.b16 %v276
  %v1731 = vunpack.c.h.b16 %v276
  %v1732 = vunpack.c.l.b16 %v277
  %v1733 = vunpack.c.h.b16 %v277
  %v1734 = vunpack.c.l.b16 %v278
  %v1735 = vunpack.c.h.b16 %v278
  %v1736 = vunpack.c.l.b16 %v279
  %v1737 = vunpack.c.h.b16 %v279
  %v1738 = vunpack.c.l.b16 %v280
  %v1739 = vunpack.c.h.b16 %v280
  %v1740 = vunpack.c.l.b16 %v281
  %v1741 = vunpack.c.h.b16 %v281
  %v1742 = vunpack.c.l.b16 %v282
  %v1743 = vunpack.c.h.b16 %v282
  %v1744 = vunpack.c.l.b16 %v283
  %v1745 = vunpack.c.h.b16 %v283
  %v1746 = vunpack.c.l.b16 %v284
  %v1747 = vunpack.c.h.b16 %v284
  %v1748 = vunpack.c.l.b16 %v285
  %v1749 = vunpack.c.h.b16 %v285
  %v1750 = vunpack.c.l.b16 %v286
  %v1751 = vunpack.c.h.b16 %v286
  %v1752 = vunpack.c.l.b16 %v287
  %v1753 = vunpack.c.h.b16 %v287
  %v1754 = vunpack.c.l.b16 %v288
  %v1755 = vunpack.c.h.b16 %v288
  %v1756 = vunpack.c.l.b16 %v289
  %v1757 = vunpack.c.h.b16 %v289
  %v1758 = vunpack.c.l.b16 %v290
  %v1759 = vunpack.c.h.b16 %v290
  %v1760 = vunpack.c.l.b16 %v291
  %v1761 = vunpack.c.h.b16 %v291
  %v1762 = vunpack.c.l.b16 %v292
  %v1763 = vunpack.c.h.b16 %v292
  %v1764 = vunpack.c.l.b16 %v293
  %v1765 = vunpack.c.h.b16 %v293
  %v1766 = vunpack.c.l.b16 %v294
  %v1767 = vunpack.c.h.b16 %v294
  %v1768 = vunpack.c.l.b16 %v295
  %v1769 = vunpack.c.h.b16 %v295
  %v1770 = vunpack.c.l.b16 %v296
  %v1771 = vunpack.c.h.b16 %v296
  %v1772 = vunpack.c.l.b16 %v297
  %v1773 = vunpack.c.h.b16 %v297
  %v1774 = vunpack.c.l.b16 %v298
  %v1775 = vunpack.c.h.b16 %v298
  %v1776 = vunpack.c.l.b16 %v299
  %v1777 = vunpack.c.h.b16 %v299
  %v1778 = vunpack.c.l.b16 %v300
  %v1779 = vunpack.c.h.b16 %v300
  %v1780 = vunpack.c.l.b16 %v301
  %v1781 = vunpack.c.h.b16 %v301
  %v1782 = vunpack.c.l.b16 %v302
  %v1783 = vunpack.c.h.b16 %v302
  %v1784 = vunpack.c.l.b16 %v303
  %v1785 = vunpack.c.h.b16 %v303
  %v1786 = vunpack.c.l.b16 %v304
  %v1787 = vunpack.c.h.b16 %v304
  %v1788 = vunpack.c.l.b16 %v305
  %v1789 = vunpack.c.h.b16 %v305
  %v1790 = vunpack.c.l.b16 %v306
  %v1791 = vunpack.c.h.b16 %v306
  %v1792 = vunpack.c.l.b16 %v307
  %v1793 = vunpack.c.h.b16 %v307
  %v1794 = vunpack.c.l.b16 %v308
  %v1795 = vunpack.c.h.b16 %v308
  %v1796 = vunpack.c.l.b16 %v309
  %v1797 = vunpack.c.h.b16 %v309
  %v1798 = vunpack.c.l.b16 %v310
  %v1799 = vunpack.c.h.b16 %v310
  %v1800 = vunpack.c.l.b16 %v311
  %v1801 = vunpack.c.h.b16 %v311
  %v1802 = vunpack.c.l.b16 %v312
  %v1803 = vunpack.c.h.b16 %v312
  %v1804 = vunpack.c.l.b16 %v313
  %v1805 = vunpack.c.h.b16 %v313
  %v1806 = vunpack.c.l.b16 %v314
  %v1807 = vunpack.c.h.b16 %v314
  %v1808 = vunpack.c.l.b16 %v315
  %v1809 = vunpack.c.h.b16 %v315
  %v1810 = vunpack.c.l.b16 %v316
  %v1811 = vunpack.c.h.b16 %v316
  %v1812 = vunpack.c.l.b16 %v317
  %v1813 = vunpack.c.h.b16 %v317
  %v1814 = vunpack.c.l.b16 %v318
  %v1815 = vunpack.c.h.b16 %v318
  %v1816 = vunpack.c.l.b16 %v319
  %v1817 = vunpack.c.h.b16 %v319
  %v1818 = vunpack.c.l.b16 %v320
  %v1819 = vunpack.c.h.b16 %v320
  %v1820 = vunpack.c.l.b16 %v321
  %v1821 = vunpack.c.h.b16 %v321
  %v1822 = vunpack.c.l.b16 %v322
  %v1823 = vunpack.c.h.b16 %v322
  %v1824 = vunpack.c.l.b16 %v323
  %v1825 = vunpack.c.h.b16 %v323
  %v1826 = vunpack.c.l.b16 %v324
  %v1827 = vunpack.c.h.b16 %v324
  %v1828 = vunpack.c.l.b16 %v325
  %v1829 = vunpack.c.h.b16 %v325
  %v1830 = vunpack.c.l.b16 %v326
  %v1831 = vunpack.c.h.b16 %v326
  %v1832 = vunpack.c.l.b16 %v327
  %v1833 = vunpack.c.h.b16 %v327
  %v1834 = vunpack.c.l.b16 %v328
  %v1835 = vunpack.c.h.b16 %v328
  %v1836 = vunpack.c.l.b16 %v329
  %v1837 = vunpack.c.h.b16 %v329
  %v1838 = vunpack.c.l.b16 %v330
  %v1839 = vunpack.c.h.b16 %v330
  %v1840 = vunpack.c.l.b16 %v331
  %v1841 = vunpack.c.h.b16 %v331
  %v1842 = vunpack.c.l.b16 %v332
  %v1843 = vunpack.c.h.b16 %v332
  %v1844 = vunpack.c.l.b16 %v333
  %v1845 = vunpack.c.h.b16 %v333
  %v1846 = vunpack.c.l.b16 %v334
  %v1847 = vunpack.c.h.b16 %v334
  %v1848 = vunpack.c.l.b16 %v335
  %v1849 = vunpack.c.h.b16 %v335
  %v1850 = vunpack.c.l.b16 %v336
  %v1851 = vunpack.c.h.b16 %v336
  %v1852 = vunpack.c.l.b16 %v337
  %v1853 = vunpack.c.h.b16 %v337
  %v1854 = vunpack.c.l.b16 %v338
  %v1855 = vunpack.c.h.b16 %v338
  %v1856 = vunpack.c.l.b16 %v339
  %v1857 = vunpack.c.h.b16 %v339
  %v1858 = vunpack.c.l.b16 %v340
  %v1859 = vunpack.c.h.b16 %v340
  %v1860 = vunpack.c.l.b16 %v341
  %v1861 = vunpack.c.h.b16 %v341
  %v1862 = vunpack.c.l.b16 %v342
  %v1863 = vunpack.c.h.b16 %v342
  %v1864 = vunpack.c.l.b16 %v343
  %v1865 = vunpack.c.h.b16 %v343
  %v1866 = vunpack.c.l.b16 %v344
  %v1867 = vunpack.c.h.b16 %v344
  %v1868 = vunpack.c.l.b16 %v345
  %v1869 = vunpack.c.h.b16 %v345
  %v1870 = vunpack.c.l.b16 %v346
  %v1871 = vunpack.c.h.b16 %v346
  %v1872 = vunpack.c.l.b16 %v347
  %v1873 = vunpack.c.h.b16 %v347
  %v1874 = vunpack.c.l.b16 %v348
  %v1875 = vunpack.c.h.b16 %v348
  %v1876 = vunpack.c.l.b16 %v349
  %v1877 = vunpack.c.h.b16 %v349
  %v1878 = vunpack.c.l.b16 %v350
  %v1879 = vunpack.c.h.b16 %v350
  %v1880 = vunpack.c.l.b16 %v351
  %v1881 = vunpack.c.h.b16 %v351
  %v1882 = vunpack.c.l.b16 %v352
  %v1883 = vunpack.c.h.b16 %v352
  %v1884 = vunpack.c.l.b16 %v353
  %v1885 = vunpack.c.h.b16 %v353
  %v1886 = vunpack.c.l.b16 %v354
  %v1887 = vunpack.c.h.b16 %v354
  %v1888 = vunpack.c.l.b16 %v355
  %v1889 = vunpack.c.h.b16 %v355
  %v1890 = vunpack.c.l.b16 %v356
  %v1891 = vunpack.c.h.b16 %v356
  %v1892 = vunpack.c.l.b16 %v357
  %v1893 = vunpack.c.h.b16 %v357
  %v1894 = vunpack.c.l.b16 %v358
  %v1895 = vunpack.c.h.b16 %v358
  %v1896 = vunpack.c.l.b16 %v359
  %v1897 = vunpack.c.h.b16 %v359
  %v1898 = vunpack.c.l.b16 %v360
  %v1899 = vunpack.c.h.b16 %v360
  %v1900 = vunpack.c.l.b16 %v361
  %v1901 = vunpack.c.h.b16 %v361
  %v1902 = vunpack.c.l.b16 %v362
  %v1903 = vunpack.c.h.b16 %v362
  %v1904 = vunpack.c.l.b16 %v363
  %v1905 = vunpack.c.h.b16 %v363
  %v1906 = vunpack.c.l.b16 %v364
  %v1907 = vunpack.c.h.b16 %v364
  %v1908 = vunpack.c.l.b16 %v365
  %v1909 = vunpack.c.h.b16 %v365
  %v1910 = vunpack.c.l.b16 %v366
  %v1911 = vunpack.c.h.b16 %v366
  %v1912 = vunpack.c.l.b16 %v367
  %v1913 = vunpack.c.h.b16 %v367
  %v1914 = vunpack.c.l.b16 %v368
  %v1915 = vunpack.c.h.b16 %v368
  %v1916 = vunpack.c.l.b16 %v369
  %v1917 = vunpack.c.h.b16 %v369
  %v1918 = vunpack.c.l.b16 %v370
  %v1919 = vunpack.c.h.b16 %v370
  %v1920 = vunpack.c.l.b16 %v371
  %v1921 = vunpack.c.h.b16 %v371
  %v1922 = vunpack.c.l.b16 %v372
  %v1923 = vunpack.c.h.b16 %v372
  %v1924 = vunpack.c.l.b16 %v373
  %v1925 = vunpack.c.h.b16 %v373
  %v1926 = vunpack.c.l.b16 %v374
  %v1927 = vunpack.c.h.b16 %v374
  %v1928 = vunpack.c.l.b16 %v375
  %v1929 = vunpack.c.h.b16 %v375
  %v1930 = vunpack.c.l.b16 %v376
  %v1931 = vunpack.c.h.b16 %v376
  %v1932 = vunpack.c.l.b16 %v377
  %v1933 = vunpack.c.h.b16 %v377
  %v1934 = vunpack.c.l.b16 %v378
  %v1935 = vunpack.c.h.b16 %v378
  %v1936 = vunpack.c.l.b16 %v379
  %v1937 = vunpack.c.h.b16 %v379
  %v1938 = vunpack.c.l.b16 %v380
  %v1939 = vunpack.c.h.b16 %v380
  %v1940 = vunpack.c.l.b16 %v381
  %v1941 = vunpack.c.h.b16 %v381
  %v1942 = vunpack.c.l.b16 %v382
  %v1943 = vunpack.c.h.b16 %v382
  %v1944 = vunpack.c.l.b16 %v383
  %v1945 = vunpack.c.h.b16 %v383
  %v1946 = vunpack.c.l.b16 %v384
  %v1947 = vunpack.c.h.b16 %v384
  %v1948 = vunpack.c.l.b16 %v385
  %v1949 = vunpack.c.h.b16 %v385
  %v1950 = vunpack.c.l.b16 %v386
  %v1951 = vunpack.c.h.b16 %v386
  %v1952 = vunpack.c.l.b16 %v387
  %v1953 = vunpack.c.h.b16 %v387
  %v1954 = vunpack.c.l.b16 %v388
  %v1955 = vunpack.c.h.b16 %v388
  %v1956 = vunpack.c.l.b16 %v389
  %v1957 = vunpack.c.h.b16 %v389
  %v1958 = vunpack.c.l.b16 %v390
  %v1959 = vunpack.c.h.b16 %v390
  %v1960 = vunpack.c.l.b16 %v391
  %v1961 = vunpack.c.h.b16 %v391
  %v1962 = vunpack.c.l.b16 %v392
  %v1963 = vunpack.c.h.b16 %v392
  %v1964 = vunpack.c.l.b16 %v393
  %v1965 = vunpack.c.h.b16 %v393
  %v1966 = vunpack.c.l.b16 %v394
  %v1967 = vunpack.c.h.b16 %v394
  %v1968 = vunpack.c.l.b16 %v395
  %v1969 = vunpack.c.h.b16 %v395
  %v1970 = vunpack.c.l.b16 %v396
  %v1971 = vunpack.c.h.b16 %v396
  %v1972 = vunpack.c.l.b16 %v397
  %v1973 = vunpack.c.h.b16 %v397
  %v1974 = vunpack.c.l.b16 %v398
  %v1975 = vunpack.c.h.b16 %v398
  %v1976 = vunpack.c.l.b16 %v399
  %v1977 = vunpack.c.h.b16 %v399
  %v1978 = vunpack.c.l.b16 %v400
  %v1979 = vunpack.c.h.b16 %v400
  %v1980 = vunpack.c.l.b16 %v401
  %v1981 = vunpack.c.h.b16 %v401
  %v1982 = vunpack.c.l.b16 %v402
  %v1983 = vunpack.c.h.b16 %v402
  %v1984 = vunpack.c.l.b16 %v403
  %v1985 = vunpack.c.h.b16 %v403
  %v1986 = vunpack.c.l.b16 %v404
  %v1987 = vunpack.c.h.b16 %v404
  %v1988 = vunpack.c.l.b16 %v405
  %v1989 = vunpack.c.h.b16 %v405
  %v1990 = vunpack.c.l.b16 %v406
  %v1991 = vunpack.c.h.b16 %v406
  %v1992 = vunpack.c.l.b16 %v407
  %v1993 = vunpack.c.h.b16 %v407
  %v1994 = vunpack.c.l.b16 %v408
  %v1995 = vunpack.c.h.b16 %v408
  %v1996 = vunpack.c.l.b16 %v409
  %v1997 = vunpack.c.h.b16 %v409
  %v1998 = vunpack.c.l.b16 %v410
  %v1999 = vunpack.c.h.b16 %v410
  %v2000 = vunpack.c.l.b16 %v411
  %v2001 = vunpack.c.h.b16 %v411
  %v2002 = vunpack.c.l.b16 %v412
  %v2003 = vunpack.c.h.b16 %v412
  %v2004 = vunpack.c.l.b16 %v413
  %v2005 = vunpack.c.h.b16 %v413
  %v2006 = vunpack.c.l.b16 %v414
  %v2007 = vunpack.c.h.b16 %v414
  %v2008 = vunpack.c.l.b16 %v415
  %v2009 = vunpack.c.h.b16 %v415
  %v2010 = vunpack.c.l.b16 %v416
  %v2011 = vunpack.c.h.b16 %v416
  %v2012 = vunpack.c.l.b16 %v417
  %v2013 = vunpack.c.h.b16 %v417
  %v2014 = vunpack.c.l.b16 %v418
  %v2015 = vunpack.c.h.b16 %v418
  %v2016 = vunpack.c.l.b16 %v419
  %v2017 = vunpack.c.h.b16 %v419
  %v2018 = vunpack.c.l.b16 %v420
  %v2019 = vunpack.c.h.b16 %v420
  %v2020 = vpack.c.b16 %v1260, %v1252
  %v2021 = vpack.c.b16 %v1261, %v1253
  %v2022 = vpack.c.b16 %v1262, %v1254
  %v2023 = vpack.c.b16 %v1263, %v1255
  %v2024 = vpack.c.b16 %v1264, %v1256
  %v2025 = vpack.c.b16 %v1265, %v1257
  %v2026 = vpack.c.b16 %v1266, %v1258
  %v2027 = vpack.c.b16 %v1267, %v1259
  %v2028 = vpack.c.b16 %v1276, %v1268
  %v2029 = vpack.c.b16 %v1277, %v1269
  %v2030 = vpack.c.b16 %v1278, %v1270
  %v2031 = vpack.c.b16 %v1279, %v1271
  %v2032 = vpack.c.b16 %v1280, %v1272
  %v2033 = vpack.c.b16 %v1281, %v1273
  %v2034 = vpack.c.b16 %v1282, %v1274
  %v2035 = vpack.c.b16 %v1283, %v1275
  %v2036 = vpack.c.b16 %v1292, %v1284
  %v2037 = vpack.c.b16 %v1293, %v1285
  %v2038 = vpack.c.b16 %v1294, %v1286
  %v2039 = vpack.c.b16 %v1295, %v1287
  %v2040 = vpack.c.b16 %v1296, %v1288
  %v2041 = vpack.c.b16 %v1297, %v1289
  %v2042 = vpack.c.b16 %v1298, %v1290
  %v2043 = vpack.c.b16 %v1299, %v1291
  %v2044 = vpack.c.b16 %v1308, %v1300
  %v2045 = vpack.c.b16 %v1309, %v1301
  %v2046 = vpack.c.b16 %v1310, %v1302
  %v2047 = vpack.c.b16 %v1311, %v1303
  %v2048 = vpack.c.b16 %v1312, %v1304
  %v2049 = vpack.c.b16 %v1313, %v1305
  %v2050 = vpack.c.b16 %v1314, %v1306
  %v2051 = vpack.c.b16 %v1315, %v1307
  %v2052 = vpack.c.b16 %v1324, %v1316
  %v2053 = vpack.c.b16 %v1325, %v1317
  %v2054 = vpack.c.b16 %v1326, %v1318
  %v2055 = vpack.c.b16 %v1327, %v1319
  %v2056 = vpack.c.b16 %v1328, %v1320
  %v2057 = vpack.c.b16 %v1329, %v1321
  %v2058 = vpack.c.b16 %v1330, %v1322
  %v2059 = vpack.c.b16 %v1331, %v1323
  %v2060 = vpack.c.b16 %v1340, %v1332
  %v2061 = vpack.c.b16 %v1341, %v1333
  %v2062 = vpack.c.b16 %v1342, %v1334
  %v2063 = vpack.c.b16 %v1343, %v1335
  %v2064 = vpack.c.b16 %v1344, %v1336
  %v2065 = vpack.c.b16 %v1345, %v1337
  %v2066 = vpack.c.b16 %v1346, %v1338
  %v2067 = vpack.c.b16 %v1347, %v1339
  %v2068 = vpack.c.b16 %v1356, %v1348
  %v2069 = vpack.c.b16 %v1357, %v1349
  %v2070 = vpack.c.b16 %v1358, %v1350
  %v2071 = vpack.c.b16 %v1359, %v1351
  %v2072 = vpack.c.b16 %v1360, %v1352
  %v2073 = vpack.c.b16 %v1361, %v1353
  %v2074 = vpack.c.b16 %v1362, %v1354
  %v2075 = vpack.c.b16 %v1363, %v1355
  %v2076 = vpack.c.b16 %v1372, %v1364
  %v2077 = vpack.c.b16 %v1373, %v1365
  %v2078 = vpack.c.b16 %v1374, %v1366
  %v2079 = vpack.c.b16 %v1375, %v1367
  %v2080 = vpack.c.b16 %v1376, %v1368
  %v2081 = vpack.c.b16 %v1377, %v1369
  %v2082 = vpack.c.b16 %v1378, %v1370
  %v2083 = vpack.c.b16 %v1379, %v1371
  %v2084 = vpack.c.b16 %v1388, %v1380
  %v2085 = vpack.c.b16 %v1389, %v1381
  %v2086 = vpack.c.b16 %v1390, %v1382
  %v2087 = vpack.c.b16 %v1391, %v1383
  %v2088 = vpack.c.b16 %v1392, %v1384
  %v2089 = vpack.c.b16 %v1393, %v1385
  %v2090 = vpack.c.b16 %v1394, %v1386
  %v2091 = vpack.c.b16 %v1395, %v1387
  %v2092 = vpack.c.b16 %v1404, %v1396
  %v2093 = vpack.c.b16 %v1405, %v1397
  %v2094 = vpack.c.b16 %v1406, %v1398
  %v2095 = vpack.c.b16 %v1407, %v1399
  %v2096 = vpack.c.b16 %v1408, %v1400
  %v2097 = vpack.c.b16 %v1409, %v1401
  %v2098 = vpack.c.b16 %v1410, %v1402
  %v2099 = vpack.c.b16 %v1411, %v1403
  %v2100 = vpack.c.b16 %v1420, %v1412
  %v2101 = vpack.c.b16 %v1421, %v1413
  %v2102 = vpack.c.b16 %v1422, %v1414
  %v2103 = vpack.c.b16 %v1423, %v1415
  %v2104 = vpack.c.b16 %v1424, %v1416
  %v2105 = vpack.c.b16 %v1425, %v1417
  %v2106 = vpack.c.b16 %v1426, %v1418
  %v2107 = vpack.c.b16 %v1427, %v1419
  %v2108 = vpack.c.b16 %v1436, %v1428
  %v2109 = vpack.c.b16 %v1437, %v1429
  %v2110 = vpack.c.b16 %v1438, %v1430
  %v2111 = vpack.c.b16 %v1439, %v1431
  %v2112 = vpack.c.b16 %v1440, %v1432
  %v2113 = vpack.c.b16 %v1441, %v1433
  %v2114 = vpack.c.b16 %v1442, %v1434
  %v2115 = vpack.c.b16 %v1443, %v1435
  %v2116 = vpack.c.b16 %v1452, %v1444
  %v2117 = vpack.c.b16 %v1453, %v1445
  %v2118 = vpack.c.b16 %v1454, %v1446
  %v2119 = vpack.c.b16 %v1455, %v1447
  %v2120 = vpack.c.b16 %v1456, %v1448
  %v2121 = vpack.c.b16 %v1457, %v1449
  %v2122 = vpack.c.b16 %v1458, %v1450
  %v2123 = vpack.c.b16 %v1459, %v1451
  %v2124 = vpack.c.b16 %v1468, %v1460
  %v2125 = vpack.c.b16 %v1469, %v1461
  %v2126 = vpack.c.b16 %v1470, %v1462
  %v2127 = vpack.c.b16 %v1471, %v1463
  %v2128 = vpack.c.b16 %v1472, %v1464
  %v2129 = vpack.c.b16 %v1473, %v1465
  %v2130 = vpack.c.b16 %v1474, %v1466
  %v2131 = vpack.c.b16 %v1475, %v1467
  %v2132 = vpack.c.b16 %v1484, %v1476
  %v2133 = vpack.c.b16 %v1485, %v1477
  %v2134 = vpack.c.b16 %v1486, %v1478
  %v2135 = vpack.c.b16 %v1487, %v1479
  %v2136 = vpack.c.b16 %v1488, %v1480
  %v2137 = vpack.c.b16 %v1489, %v1481
  %v2138 = vpack.c.b16 %v1490, %v1482
  %v2139 = vpack.c.b16 %v1491, %v1483
  %v2140 = vpack.c.b16 %v1500, %v1492
  %v2141 = vpack.c.b16 %v1501, %v1493
  %v2142 = vpack.c.b16 %v1502, %v1494
  %v2143 = vpack.c.b16 %v1503, %v1495
  %v2144 = vpack.c.b16 %v1504, %v1496
  %v2145 = vpack.c.b16 %v1505, %v1497
  %v2146 = vpack.c.b16 %v1506, %v1498
  %v2147 = vpack.c.b16 %v1507, %v1499
  %v2148 = vpack.c.b16 %v1516, %v1508
  %v2149 = vpack.c.b16 %v1517, %v1509
  %v2150 = vpack.c.b16 %v1518, %v1510
  %v2151 = vpack.c.b16 %v1519, %v1511
  %v2152 = vpack.c.b16 %v1520, %v1512
  %v2153 = vpack.c.b16 %v1521, %v1513
  %v2154 = vpack.c.b16 %v1522, %v1514
  %v2155 = vpack.c.b16 %v1523, %v1515
  %v2156 = vpack.c.b16 %v1532, %v1524
  %v2157 = vpack.c.b16 %v1533, %v1525
  %v2158 = vpack.c.b16 %v1534, %v1526
  %v2159 = vpack.c.b16 %v1535, %v1527
  %v2160 = vpack.c.b16 %v1536, %v1528
  %v2161 = vpack.c.b16 %v1537, %v1529
  %v2162 = vpack.c.b16 %v1538, %v1530
  %v2163 = vpack.c.b16 %v1539, %v1531
  %v2164 = vpack.c.b16 %v1548, %v1540
  %v2165 = vpack.c.b16 %v1549, %v1541
  %v2166 = vpack.c.b16 %v1550, %v1542
  %v2167 = vpack.c.b16 %v1551, %v1543
  %v2168 = vpack.c.b16 %v1552, %v1544
  %v2169 = vpack.c.b16 %v1553, %v1545
  %v2170 = vpack.c.b16 %v1554, %v1546
  %v2171 = vpack.c.b16 %v1555, %v1547
  %v2172 = vpack.c.b16 %v1564, %v1556
  %v2173 = vpack.c.b16 %v1565, %v1557
  %v2174 = vpack.c.b16 %v1566, %v1558
  %v2175 = vpack.c.b16 %v1567, %v1559
  %v2176 = vpack.c.b16 %v1568, %v1560
  %v2177 = vpack.c.b16 %v1569, %v1561
  %v2178 = vpack.c.b16 %v1570, %v1562
  %v2179 = vpack.c.b16 %v1571, %v1563
  %v2180 = vpack.c.b16 %v1580, %v1572
  %v2181 = vpack.c.b16 %v1581, %v1573
  %v2182 = vpack.c.b16 %v1582, %v1574
  %v2183 = vpack.c.b16 %v1583, %v1575
  %v2184 = vpack.c.b16 %v1584, %v1576
  %v2185 = vpack.c.b16 %v1585, %v1577
  %v2186 = vpack.c.b16 %v1586, %v1578
  %v2187 = vpack.c.b16 %v1587, %v1579
  %v2188 = vpack.c.b16 %v1596, %v1588
  %v2189 = vpack.c.b16 %v1597, %v1589
  %v2190 = vpack.c.b16 %v1598, %v1590
  %v2191 = vpack.c.b16 %v1599, %v1591
  %v2192 = vpack.c.b16 %v1600, %v1592
  %v2193 = vpack.c.b16 %v1601, %v1593
  %v2194 = vpack.c.b16 %v1602, %v1594
  %v2195 = vpack.c.b16 %v1603, %v1595
  %v2196 = vpack.c.b16 %v1612, %v1604
  %v2197 = vpack.c.b16 %v1613, %v1605
  %v2198 = vpack.c.b16 %v1614, %v1606
  %v2199 = vpack.c.b16 %v1615, %v1607
  %v2200 = vpack.c.b16 %v1616, %v1608
  %v2201 = vpack.c.b16 %v1617, %v1609
  %v2202 = vpack.c.b16 %v1618, %v1610
  %v2203 = vpack.c.b16 %v1619, %v1611
  %v2204 = vpack.c.b16 %v1628, %v1620
  %v2205 = vpack.c.b16 %v1629, %v1621
  %v2206 = vpack.c.b16 %v1630, %v1622
  %v2207 = vpack.c.b16 %v1631, %v1623
  %v2208 = vpack.c.b16 %v1632, %v1624
  %v2209 = vpack.c.b16 %v1633, %v1625
  %v2210 = vpack.c.b16 %v1634, %v1626
  %v2211 = vpack.c.b16 %v1635, %v1627
  %v2212 = vpack.c.b16 %v1644, %v1636
  %v2213 = vpack.c.b16 %v1645, %v1637
  %v2214 = vpack.c.b16 %v1646, %v1638
  %v2215 = vpack.c.b16 %v1647, %v1639
  %v2216 = vpack.c.b16 %v1648, %v1640
  %v2217 = vpack.c.b16 %v1649, %v1641
  %v2218 = vpack.c.b16 %v1650, %v1642
  %v2219 = vpack.c.b16 %v1651, %v1643
  %v2220 = vpack.c.b16 %v1660, %v1652
  %v2221 = vpack.c.b16 %v1661, %v1653
  %v2222 = vpack.c.b16 %v1662, %v1654
  %v2223 = vpack.c.b16 %v1663, %v1655
  %v2224 = vpack.c.b16 %v1664, %v1656
  %v2225 = vpack.c.b16 %v1665, %v1657
  %v2226 = vpack.c.b16 %v1666, %v1658
  %v2227 = vpack.c.b16 %v1667, %v1659
  %v2228 = vpack.c.b16 %v1676, %v1668
  %v2229 = vpack.c.b16 %v1677, %v1669
  %v2230 = vpack.c.b16 %v1678, %v1670
  %v2231 = vpack.c.b16 %v1679, %v1671
  %v2232 = vpack.c.b16 %v1680, %v1672
  %v2233 = vpack.c.b16 %v1681, %v1673
  %v2234 = vpack.c.b16 %v1682, %v1674
  %v2235 = vpack.c.b16 %v1683, %v1675
  %v2236 = vpack.c.b16 %v1692, %v1684
  %v2237 = vpack.c.b16 %v1693, %v1685
  %v2238 = vpack.c.b16 %v1694, %v1686
  %v2239 = vpack.c.b16 %v1695, %v1687
  %v2240 = vpack.c.b16 %v1696, %v1688
  %v2241 = vpack.c.b16 %v1697, %v1689
  %v2242 = vpack.c.b16 %v1698, %v1690
  %v2243 = vpack.c.b16 %v1699, %v1691
  %v2244 = vpack.c.b16 %v1708, %v1700
  %v2245 = vpack.c.b16 %v1709, %v1701
  %v2246 = vpack.c.b16 %v1710, %v1702
  %v2247 = vpack.c.b16 %v1711, %v1703
  %v2248 = vpack.c.b16 %v1712, %v1704
  %v2249 = vpack.c.b16 %v1713, %v1705
  %v2250 = vpack.c.b16 %v1714, %v1706
  %v2251 = vpack.c.b16 %v1715, %v1707
  %v2252 = vpack.c.b16 %v1724, %v1716
  %v2253 = vpack.c.b16 %v1725, %v1717
  %v2254 = vpack.c.b16 %v1726, %v1718
  %v2255 = vpack.c.b16 %v1727, %v1719
  %v2256 = vpack.c.b16 %v1728, %v1720
  %v2257 = vpack.c.b16 %v1729, %v1721
  %v2258 = vpack.c.b16 %v1730, %v1722
  %v2259 = vpack.c.b16 %v1731, %v1723
  %v2260 = vpack.c.b16 %v1740, %v1732
  %v2261 = vpack.c.b16 %v1741, %v1733
  %v2262 = vpack.c.b16 %v1742, %v1734
  %v2263 = vpack.c.b16 %v1743, %v1735
  %v2264 = vpack.c.b16 %v1744, %v1736
  %v2265 = vpack.c.b16 %v1745, %v1737
  %v2266 = vpack.c.b16 %v1746, %v1738
  %v2267 = vpack.c.b16 %v1747, %v1739
  %v2268 = vpack.c.b16 %v1756, %v1748
  %v2269 = vpack.c.b16 %v1757, %v1749
  %v2270 = vpack.c.b16 %v1758, %v1750
  %v2271 = vpack.c.b16 %v1759, %v1751
  %v2272 = vpack.c.b16 %v1760, %v1752
  %v2273 = vpack.c.b16 %v1761, %v1753
  %v2274 = vpack.c.b16 %v1762, %v1754
  %v2275 = vpack.c.b16 %v1763, %v1755
  %v2276 = vpack.c.b16 %v1772, %v1764
  %v2277 = vpack.c.b16 %v1773, %v1765
  %v2278 = vpack.c.b16 %v1774, %v1766
  %v2279 = vpack.c.b16 %v1775, %v1767
  %v2280 = vpack.c.b16 %v1776, %v1768
  %v2281 = vpack.c.b16 %v1777, %v1769
  %v2282 = vpack.c.b16 %v1778, %v1770
  %v2283 = vpack.c.b16 %v1779, %v1771
  %v2284 = vpack.c.b16 %v1788, %v1780
  %v2285 = vpack.c.b16 %v1789, %v1781
  %v2286 = vpack.c.b16 %v1790, %v1782
  %v2287 = vpack.c.b16 %v1791, %v1783
  %v2288 = vpack.c.b16 %v1792, %v1784
  %v2289 = vpack.c.b16 %v1793, %v1785
  %v2290 = vpack.c.b16 %v1794, %v1786
  %v2291 = vpack.c.b16 %v1795, %v1787
  %v2292 = vpack.c.b16 %v1804, %v1796
  %v2293 = vpack.c.b16 %v1805, %v1797
  %v2294 = vpack.c.b16 %v1806, %v1798
  %v2295 = vpack.c.b16 %v1807, %v1799
  %v2296 = vpack.c.b16 %v1808, %v1800
  %v2297 = vpack.c.b16 %v1809, %v1801
  %v2298 = vpack.c.b16 %v1810, %v1802
  %v2299 = vpack.c.b16 %v1811, %v1803
  %v2300 = vpack.c.b16 %v1820, %v1812
  %v2301 = vpack.c.b16 %v1821, %v1813
  %v2302 = vpack.c.b16 %v1822, %v1814
  %v2303 = vpack.c.b16 %v1823, %v1815
  %v2304 = vpack.c.b16 %v1824, %v1816
  %v2305 = vpack.c.b16 %v1825, %v1817
  %v2306 = vpack.c.b16 %v1826, %v1818
  %v2307 = vpack.c.b16 %v1827, %v1819
  %v2308 = vpack.c.b16 %v1836, %v1828
  %v2309 = vpack.c.b16 %v1837, %v1829
  %v2310 = vpack.c.b16 %v1838, %v1830
  %v2311 = vpack.c.b16 %v1839, %v1831
  %v2312 = vpack.c.b16 %v1840, %v1832
  %v2313 = vpack.c.b16 %v1841, %v1833
  %v2314 = vpack.c.b16 %v1842, %v1834
  %v2315 = vpack.c.b16 %v1843, %v1835
  %v2316 = vpack.c.b16 %v1852, %v1844
  %v2317 = vpack.c.b16 %v1853, %v1845
  %v2318 = vpack.c.b16 %v1854, %v1846
  %v2319 = vpack.c.b16 %v1855, %v1847
  %v2320 = vpack.c.b16 %v1856, %v1848
  %v2321 = vpack.c.b16 %v1857, %v1849
  %v2322 = vpack.c.b16 %v1858, %v1850
  %v2323 = vpack.c.b16 %v1859, %v1851
  %v2324 = vpack.c.b16 %v1868, %v1860
  %v2325 = vpack.c.b16 %v1869, %v1861
  %v2326 = vpack.c.b16 %v1870, %v1862
  %v2327 = vpack.c.b16 %v1871, %v1863
  %v2328 = vpack.c.b16 %v1872, %v1864
  %v2329 = vpack.c.b16 %v1873, %v1865
  %v2330 = vpack.c.b16 %v1874, %v1866
  %v2331 = vpack.c.b16 %v1875, %v1867
  %v2332 = vpack.c.b16 %v1884, %v1876
  %v2333 = vpack.c.b16 %v1885, %v1877
  %v2334 = vpack.c.b16 %v1886, %v1878
  %v2335 = vpack.c.b16 %v1887, %v1879
  %v2336 = vpack.c.b16 %v1888, %v1880
  %v2337 = vpack.c.b16 %v1889, %v1881
  %v2338 = vpack.c.b16 %v1890, %v1882
  %v2339 = vpack.c.b16 %v1891, %v1883
  %v2340 = vpack.c.b16 %v1900, %v1892
  %v2341 = vpack.c.b16 %v1901, %v1893
  %v2342 = vpack.c.b16 %v1902, %v1894
  %v2343 = vpack.c.b16 %v1903, %v1895
  %v2344 = vpack.c.b16 %v1904, %v1896
  %v2345 = vpack.c.b16 %v1905, %v1897
  %v2346 = vpack.c.b16 %v1906, %v1898
  %v2347 = vpack.c.b16 %v1907, %v1899
  %v2348 = vpack.c.b16 %v1916, %v1908
  %v2349 = vpack.c.b16 %v1917, %v1909
  %v2350 = vpack.c.b16 %v1918, %v1910
  %v2351 = vpack.c.b16 %v1919, %v1911
  %v2352 = vpack.c.b16 %v1920, %v1912
  %v2353 = vpack.c.b16 %v1921, %v1913
  %v2354 = vpack.c.b16 %v1922, %v1914
  %v2355 = vpack.c.b16 %v1923, %v1915
  %v2356 = vpack.c.b16 %v1932, %v1924
  %v2357 = vpack.c.b16 %v1933, %v1925
  %v2358 = vpack.c.b16 %v1934, %v1926
  %v2359 = vpack.c.b16 %v1935, %v1927
  %v2360 = vpack.c.b16 %v1936, %v1928
  %v2361 = vpack.c.b16 %v1937, %v1929
  %v2362 = vpack.c.b16 %v1938, %v1930
  %v2363 = vpack.c.b16 %v1939, %v1931
  %v2364 = vpack.c.b16 %v1948, %v1940
  %v2365 = vpack.c.b16 %v1949, %v1941
  %v2366 = vpack.c.b16 %v1950, %v1942
  %v2367 = vpack.c.b16 %v1951, %v1943
  %v2368 = vpack.c.b16 %v1952, %v1944
  %v2369 = vpack.c.b16 %v1953, %v1945
  %v2370 = vpack.c.b16 %v1954, %v1946
  %v2371 = vpack.c.b16 %v1955, %v1947
  %v2372 = vpack.c.b16 %v1964, %v1956
  %v2373 = vpack.c.b16 %v1965, %v1957
  %v2374 = vpack.c.b16 %v1966, %v1958
  %v2375 = vpack.c.b16 %v1967, %v1959
  %v2376 = vpack.c.b16 %v1968, %v1960
  %v2377 = vpack.c.b16 %v1969, %v1961
  %v2378 = vpack.c.b16 %v1970, %v1962
  %v2379 = vpack.c.b16 %v1971, %v1963
  %v2380 = vpack.c.b16 %v1980, %v1972
  %v2381 = vpack.c.b16 %v1981, %v1973
  %v2382 = vpack.c.b16 %v1982, %v1974
  %v2383 = vpack.c.b16 %v1983, %v1975
  %v2384 = vpack.c.b16 %v1984, %v1976
  %v2385 = vpack.c.b16 %v1985, %v1977
  %v2386 = vpack.c.b16 %v1986, %v1978
  %v2387 = vpack.c.b16 %v1987, %v1979
  %v2388 = vpack.c.b16 %v1996, %v1988
  %v2389 = vpack.c.b16 %v1997, %v1989
  %v2390 = vpack.c.b16 %v1998, %v1990
  %v2391 = vpack.c.b16 %v1999, %v1991
  %v2392 = vpack.c.b16 %v2000, %v1992
  %v2393 = vpack.c.b16 %v2001, %v1993
  %v2394 = vpack.c.b16 %v2002, %v1994
  %v2395 = vpack.c.b16 %v2003, %v1995
  %v2396 = vpack.c.b16 %v2012, %v2004
  %v2397 = vpack.c.b16 %v2013, %v2005
  %v2398 = vpack.c.b16 %v2014, %v2006
  %v2399 = vpack.c.b16 %v2015, %v2007
  %v2400 = vpack.c.b16 %v2016, %v2008
  %v2401 = vpack.c.b16 %v2017, %v2009
  %v2402 = vpack.c.b16 %v2018, %v2010
  %v2403 = vpack.c.b16 %v2019, %v2011
  %2788 = vmatprep.subr.bf16.mxu0 %v2021
  %2789 = vmatpush1.bf16.msra.mxu0 %v2020
  %2790 = vmatprep.subr.bf16.mxu0 %v2029
  %2791 = vmatpush1.bf16.msra.mxu0 %v2028
  %2792 = vmatprep.subr.bf16.mxu0 %v2037
  %2793 = vmatpush1.bf16.msra.mxu0 %v2036
  %2794 = vmatprep.subr.bf16.mxu0 %v2045
  %2795 = vmatpush1.bf16.msra.mxu0 %v2044
  %2796 = vmatprep.subr.bf16.mxu0 %v2053
  %2797 = vmatpush1.bf16.msra.mxu0 %v2052
  %2798 = vmatprep.subr.bf16.mxu0 %v2061
  %2799 = vmatpush1.bf16.msra.mxu0 %v2060
  %2800 = vmatprep.subr.bf16.mxu0 %v2069
  %2801 = vmatpush1.bf16.msra.mxu0 %v2068
  %2802 = vmatprep.subr.bf16.mxu0 %v2077
  %2803 = vmatpush1.bf16.msra.mxu0 %v2076
  %2804 = vmatprep.subr.bf16.mxu0 %v2085
  %2805 = vmatpush1.bf16.msra.mxu0 %v2084
  %2806 = vmatprep.subr.bf16.mxu0 %v2093
  %2807 = vmatpush1.bf16.msra.mxu0 %v2092
  %2808 = vmatprep.subr.bf16.mxu0 %v2101
  %2809 = vmatpush1.bf16.msra.mxu0 %v2100
  %2810 = vmatprep.subr.bf16.mxu0 %v2109
  %2811 = vmatpush1.bf16.msra.mxu0 %v2108
  %2812 = vmatprep.subr.bf16.mxu0 %v2117
  %2813 = vmatpush1.bf16.msra.mxu0 %v2116
  %2814 = vmatprep.subr.bf16.mxu0 %v2125
  %2815 = vmatpush1.bf16.msra.mxu0 %v2124
  %2816 = vmatprep.subr.bf16.mxu0 %v2133
  %2817 = vmatpush1.bf16.msra.mxu0 %v2132
  %2818 = vmatprep.subr.bf16.mxu0 %v2141
  %2819 = vmatpush1.bf16.msra.mxu0 %v2140
  %2820 = vmatprep.mubr.bf16.mxu0 %v857
  %2821 = vmatmul.mubr.bf16.gmra.mrb[0].mxu0 %v856
  %v2822 = vpop.f32.mrb[0].mxu0
  %v2823 = vadd.f32 %v810, %v2822
  %v2824 = vpop.f32.mrb[0].mxu0
  %v2825 = vadd.f32 %v814, %v2824
  %v2826 = vpop.f32.mrb[0].mxu0
  %v2827 = vpop.f32.mrb[0].mxu0
  %2828 = vdwg.mxu0
  %2829 = vmatprep.subr.bf16.mxu0 %v2149
  %2830 = vmatpush1.bf16.msra.mxu0 %v2148
  %2831 = vmatprep.subr.bf16.mxu0 %v2157
  %2832 = vmatpush1.bf16.msra.mxu0 %v2156
  %2833 = vmatprep.subr.bf16.mxu0 %v2165
  %2834 = vmatpush1.bf16.msra.mxu0 %v2164
  %2835 = vmatprep.subr.bf16.mxu0 %v2173
  %2836 = vmatpush1.bf16.msra.mxu0 %v2172
  %2837 = vmatprep.subr.bf16.mxu0 %v2181
  %2838 = vmatpush1.bf16.msra.mxu0 %v2180
  %2839 = vmatprep.subr.bf16.mxu0 %v2189
  %2840 = vmatpush1.bf16.msra.mxu0 %v2188
  %2841 = vmatprep.subr.bf16.mxu0 %v2197
  %2842 = vmatpush1.bf16.msra.mxu0 %v2196
  %2843 = vmatprep.subr.bf16.mxu0 %v2205
  %2844 = vmatpush1.bf16.msra.mxu0 %v2204
  %2845 = vmatprep.subr.bf16.mxu0 %v2213
  %2846 = vmatpush1.bf16.msra.mxu0 %v2212
  %2847 = vmatprep.subr.bf16.mxu0 %v2221
  %2848 = vmatpush1.bf16.msra.mxu0 %v2220
  %2849 = vmatprep.subr.bf16.mxu0 %v2229
  %2850 = vmatpush1.bf16.msra.mxu0 %v2228
  %2851 = vmatprep.subr.bf16.mxu0 %v2237
  %2852 = vmatpush1.bf16.msra.mxu0 %v2236
  %2853 = vmatprep.subr.bf16.mxu0 %v2245
  %2854 = vmatpush1.bf16.msra.mxu0 %v2244
  %2855 = vmatprep.subr.bf16.mxu0 %v2253
  %2856 = vmatpush1.bf16.msra.mxu0 %v2252
  %2857 = vmatprep.subr.bf16.mxu0 %v2261
  %2858 = vmatpush1.bf16.msra.mxu0 %v2260
  %2859 = vmatprep.subr.bf16.mxu0 %v2269
  %2860 = vmatpush1.bf16.msra.mxu0 %v2268
  %2861 = vmatprep.mubr.bf16.mxu0 %v859
  %2862 = vmatmul.mubr.bf16.gmra.mrb[0].mxu0 %v858
  %v2863 = vpop.f32.mrb[0].mxu0
  %v2864 = vadd.f32 %v2823, %v2863
  %v2865 = vpop.f32.mrb[0].mxu0
  %v2866 = vadd.f32 %v2825, %v2865
  %v2867 = vpop.f32.mrb[0].mxu0
  %v2868 = vpop.f32.mrb[0].mxu0
  %2869 = vdwg.mxu0
  %2870 = vmatprep.subr.bf16.mxu0 %v2277
  %2871 = vmatpush1.bf16.msra.mxu0 %v2276
  %2872 = vmatprep.subr.bf16.mxu0 %v2285
  %2873 = vmatpush1.bf16.msra.mxu0 %v2284
  %2874 = vmatprep.subr.bf16.mxu0 %v2293
  %2875 = vmatpush1.bf16.msra.mxu0 %v2292
  %2876 = vmatprep.subr.bf16.mxu0 %v2301
  %2877 = vmatpush1.bf16.msra.mxu0 %v2300
  %2878 = vmatprep.subr.bf16.mxu0 %v2309
  %2879 = vmatpush1.bf16.msra.mxu0 %v2308
  %2880 = vmatprep.subr.bf16.mxu0 %v2317
  %2881 = vmatpush1.bf16.msra.mxu0 %v2316
  %2882 = vmatprep.subr.bf16.mxu0 %v2325
  %2883 = vmatpush1.bf16.msra.mxu0 %v2324
  %2884 = vmatprep.subr.bf16.mxu0 %v2333
  %2885 = vmatpush1.bf16.msra.mxu0 %v2332
  %2886 = vmatprep.subr.bf16.mxu0 %v2341
  %2887 = vmatpush1.bf16.msra.mxu0 %v2340
  %2888 = vmatprep.subr.bf16.mxu0 %v2349
  %2889 = vmatpush1.bf16.msra.mxu0 %v2348
  %2890 = vmatprep.subr.bf16.mxu0 %v2357
  %2891 = vmatpush1.bf16.msra.mxu0 %v2356
  %2892 = vmatprep.subr.bf16.mxu0 %v2365
  %2893 = vmatpush1.bf16.msra.mxu0 %v2364
  %2894 = vmatprep.subr.bf16.mxu0 %v2373
  %2895 = vmatpush1.bf16.msra.mxu0 %v2372
  %2896 = vmatprep.subr.bf16.mxu0 %v2381
  %2897 = vmatpush1.bf16.msra.mxu0 %v2380
  %2898 = vmatprep.subr.bf16.mxu0 %v2389
  %2899 = vmatpush1.bf16.msra.mxu0 %v2388
  %2900 = vmatprep.subr.bf16.mxu0 %v2397
  %2901 = vmatpush1.bf16.msra.mxu0 %v2396
  %2902 = vmatprep.mubr.bf16.mxu0 %v861
  %2903 = vmatmul.mubr.bf16.gmra.mrb[0].mxu0 %v860
  %v2904 = vpop.f32.mrb[0].mxu0
  %v2905 = vadd.f32 %v2864, %v2904
  %v2906 = vpop.f32.mrb[0].mxu0
  %v2907 = vadd.f32 %v2866, %v2906
  %v2908 = vpop.f32.mrb[0].mxu0
  %v2909 = vpop.f32.mrb[0].mxu0
  %2910 = vdwg.mxu0
  %2911 = vmatprep.subr.bf16.mxu0 %v2023
  %2912 = vmatpush1.bf16.msra.mxu0 %v2022
  %2913 = vmatprep.subr.bf16.mxu0 %v2031
  %2914 = vmatpush1.bf16.msra.mxu0 %v2030
  %2915 = vmatprep.subr.bf16.mxu0 %v2039
  %2916 = vmatpush1.bf16.msra.mxu0 %v2038
  %2917 = vmatprep.subr.bf16.mxu0 %v2047
  %2918 = vmatpush1.bf16.msra.mxu0 %v2046
  %2919 = vmatprep.subr.bf16.mxu0 %v2055
  %2920 = vmatpush1.bf16.msra.mxu0 %v2054
  %2921 = vmatprep.subr.bf16.mxu0 %v2063
  %2922 = vmatpush1.bf16.msra.mxu0 %v2062
  %2923 = vmatprep.subr.bf16.mxu0 %v2071
  %2924 = vmatpush1.bf16.msra.mxu0 %v2070
  %2925 = vmatprep.subr.bf16.mxu0 %v2079
  %2926 = vmatpush1.bf16.msra.mxu0 %v2078
  %2927 = vmatprep.subr.bf16.mxu0 %v2087
  %2928 = vmatpush1.bf16.msra.mxu0 %v2086
  %2929 = vmatprep.subr.bf16.mxu0 %v2095
  %2930 = vmatpush1.bf16.msra.mxu0 %v2094
  %2931 = vmatprep.subr.bf16.mxu0 %v2103
  %2932 = vmatpush1.bf16.msra.mxu0 %v2102
  %2933 = vmatprep.subr.bf16.mxu0 %v2111
  %2934 = vmatpush1.bf16.msra.mxu0 %v2110
  %2935 = vmatprep.subr.bf16.mxu0 %v2119
  %2936 = vmatpush1.bf16.msra.mxu0 %v2118
  %2937 = vmatprep.subr.bf16.mxu0 %v2127
  %2938 = vmatpush1.bf16.msra.mxu0 %v2126
  %2939 = vmatprep.subr.bf16.mxu0 %v2135
  %2940 = vmatpush1.bf16.msra.mxu0 %v2134
  %2941 = vmatprep.subr.bf16.mxu0 %v2143
  %2942 = vmatpush1.bf16.msra.mxu0 %v2142
  %2943 = vmatprep.mubr.bf16.mxu0 %v857
  %2944 = vmatmul.mubr.bf16.gmra.mrb[0].mxu0 %v856
  %v2945 = vpop.f32.mrb[0].mxu0
  %v2946 = vadd.f32 %v818, %v2945
  %v2947 = vpop.f32.mrb[0].mxu0
  %v2948 = vadd.f32 %v822, %v2947
  %v2949 = vpop.f32.mrb[0].mxu0
  %v2950 = vpop.f32.mrb[0].mxu0
  %2951 = vdwg.mxu0
  %2952 = vmatprep.subr.bf16.mxu0 %v2151
  %2953 = vmatpush1.bf16.msra.mxu0 %v2150
  %2954 = vmatprep.subr.bf16.mxu0 %v2159
  %2955 = vmatpush1.bf16.msra.mxu0 %v2158
  %2956 = vmatprep.subr.bf16.mxu0 %v2167
  %2957 = vmatpush1.bf16.msra.mxu0 %v2166
  %2958 = vmatprep.subr.bf16.mxu0 %v2175
  %2959 = vmatpush1.bf16.msra.mxu0 %v2174
  %2960 = vmatprep.subr.bf16.mxu0 %v2183
  %2961 = vmatpush1.bf16.msra.mxu0 %v2182
  %2962 = vmatprep.subr.bf16.mxu0 %v2191
  %2963 = vmatpush1.bf16.msra.mxu0 %v2190
  %2964 = vmatprep.subr.bf16.mxu0 %v2199
  %2965 = vmatpush1.bf16.msra.mxu0 %v2198
  %2966 = vmatprep.subr.bf16.mxu0 %v2207
  %2967 = vmatpush1.bf16.msra.mxu0 %v2206
  %2968 = vmatprep.subr.bf16.mxu0 %v2215
  %2969 = vmatpush1.bf16.msra.mxu0 %v2214
  %2970 = vmatprep.subr.bf16.mxu0 %v2223
  %2971 = vmatpush1.bf16.msra.mxu0 %v2222
  %2972 = vmatprep.subr.bf16.mxu0 %v2231
  %2973 = vmatpush1.bf16.msra.mxu0 %v2230
  %2974 = vmatprep.subr.bf16.mxu0 %v2239
  %2975 = vmatpush1.bf16.msra.mxu0 %v2238
  %2976 = vmatprep.subr.bf16.mxu0 %v2247
  %2977 = vmatpush1.bf16.msra.mxu0 %v2246
  %2978 = vmatprep.subr.bf16.mxu0 %v2255
  %2979 = vmatpush1.bf16.msra.mxu0 %v2254
  %2980 = vmatprep.subr.bf16.mxu0 %v2263
  %2981 = vmatpush1.bf16.msra.mxu0 %v2262
  %2982 = vmatprep.subr.bf16.mxu0 %v2271
  %2983 = vmatpush1.bf16.msra.mxu0 %v2270
  %2984 = vmatprep.mubr.bf16.mxu0 %v859
  %2985 = vmatmul.mubr.bf16.gmra.mrb[0].mxu0 %v858
  %v2986 = vpop.f32.mrb[0].mxu0
  %v2987 = vadd.f32 %v2946, %v2986
  %v2988 = vpop.f32.mrb[0].mxu0
  %v2989 = vadd.f32 %v2948, %v2988
  %v2990 = vpop.f32.mrb[0].mxu0
  %v2991 = vpop.f32.mrb[0].mxu0
  %2992 = vdwg.mxu0
  %2993 = vmatprep.subr.bf16.mxu0 %v2279
  %2994 = vmatpush1.bf16.msra.mxu0 %v2278
  %2995 = vmatprep.subr.bf16.mxu0 %v2287
  %2996 = vmatpush1.bf16.msra.mxu0 %v2286
  %2997 = vmatprep.subr.bf16.mxu0 %v2295
  %2998 = vmatpush1.bf16.msra.mxu0 %v2294
  %2999 = vmatprep.subr.bf16.mxu0 %v2303
  %3000 = vmatpush1.bf16.msra.mxu0 %v2302
  %3001 = vmatprep.subr.bf16.mxu0 %v2311
  %3002 = vmatpush1.bf16.msra.mxu0 %v2310
  %3003 = vmatprep.subr.bf16.mxu0 %v2319
  %3004 = vmatpush1.bf16.msra.mxu0 %v2318
  %3005 = vmatprep.subr.bf16.mxu0 %v2327
  %3006 = vmatpush1.bf16.msra.mxu0 %v2326
  %3007 = vmatprep.subr.bf16.mxu0 %v2335
  %3008 = vmatpush1.bf16.msra.mxu0 %v2334
  %3009 = vmatprep.subr.bf16.mxu0 %v2343
  %3010 = vmatpush1.bf16.msra.mxu0 %v2342
  %3011 = vmatprep.subr.bf16.mxu0 %v2351
  %3012 = vmatpush1.bf16.msra.mxu0 %v2350
  %3013 = vmatprep.subr.bf16.mxu0 %v2359
  %3014 = vmatpush1.bf16.msra.mxu0 %v2358
  %3015 = vmatprep.subr.bf16.mxu0 %v2367
  %3016 = vmatpush1.bf16.msra.mxu0 %v2366
  %3017 = vmatprep.subr.bf16.mxu0 %v2375
  %3018 = vmatpush1.bf16.msra.mxu0 %v2374
  %3019 = vmatprep.subr.bf16.mxu0 %v2383
  %3020 = vmatpush1.bf16.msra.mxu0 %v2382
  %3021 = vmatprep.subr.bf16.mxu0 %v2391
  %3022 = vmatpush1.bf16.msra.mxu0 %v2390
  %3023 = vmatprep.subr.bf16.mxu0 %v2399
  %3024 = vmatpush1.bf16.msra.mxu0 %v2398
  %3025 = vmatprep.mubr.bf16.mxu0 %v861
  %3026 = vmatmul.mubr.bf16.gmra.mrb[0].mxu0 %v860
  %v3027 = vpop.f32.mrb[0].mxu0
  %v3028 = vadd.f32 %v2987, %v3027
  %v3029 = vpop.f32.mrb[0].mxu0
  %v3030 = vadd.f32 %v2989, %v3029
  %v3031 = vpop.f32.mrb[0].mxu0
  %v3032 = vpop.f32.mrb[0].mxu0
  %3033 = vdwg.mxu0
  %3034 = vmatprep.subr.bf16.mxu0 %v2025
  %3035 = vmatpush1.bf16.msra.mxu0 %v2024
  %3036 = vmatprep.subr.bf16.mxu0 %v2033
  %3037 = vmatpush1.bf16.msra.mxu0 %v2032
  %3038 = vmatprep.subr.bf16.mxu0 %v2041
  %3039 = vmatpush1.bf16.msra.mxu0 %v2040
  %3040 = vmatprep.subr.bf16.mxu0 %v2049
  %3041 = vmatpush1.bf16.msra.mxu0 %v2048
  %3042 = vmatprep.subr.bf16.mxu0 %v2057
  %3043 = vmatpush1.bf16.msra.mxu0 %v2056
  %3044 = vmatprep.subr.bf16.mxu0 %v2065
  %3045 = vmatpush1.bf16.msra.mxu0 %v2064
  %3046 = vmatprep.subr.bf16.mxu0 %v2073
  %3047 = vmatpush1.bf16.msra.mxu0 %v2072
  %3048 = vmatprep.subr.bf16.mxu0 %v2081
  %3049 = vmatpush1.bf16.msra.mxu0 %v2080
  %3050 = vmatprep.subr.bf16.mxu0 %v2089
  %3051 = vmatpush1.bf16.msra.mxu0 %v2088
  %3052 = vmatprep.subr.bf16.mxu0 %v2097
  %3053 = vmatpush1.bf16.msra.mxu0 %v2096
  %3054 = vmatprep.subr.bf16.mxu0 %v2105
  %3055 = vmatpush1.bf16.msra.mxu0 %v2104
  %3056 = vmatprep.subr.bf16.mxu0 %v2113
  %3057 = vmatpush1.bf16.msra.mxu0 %v2112
  %3058 = vmatprep.subr.bf16.mxu0 %v2121
  %3059 = vmatpush1.bf16.msra.mxu0 %v2120
  %3060 = vmatprep.subr.bf16.mxu0 %v2129
  %3061 = vmatpush1.bf16.msra.mxu0 %v2128
  %3062 = vmatprep.subr.bf16.mxu0 %v2137
  %3063 = vmatpush1.bf16.msra.mxu0 %v2136
  %3064 = vmatprep.subr.bf16.mxu0 %v2145
  %3065 = vmatpush1.bf16.msra.mxu0 %v2144
  %3066 = vmatprep.mubr.bf16.mxu0 %v857
  %3067 = vmatmul.mubr.bf16.gmra.mrb[0].mxu0 %v856
  %v3068 = vpop.f32.mrb[0].mxu0
  %v3069 = vadd.f32 %v826, %v3068
  %v3070 = vpop.f32.mrb[0].mxu0
  %v3071 = vadd.f32 %v830, %v3070
  %v3072 = vpop.f32.mrb[0].mxu0
  %v3073 = vpop.f32.mrb[0].mxu0
  %3074 = vdwg.mxu0
  %3075 = vmatprep.subr.bf16.mxu0 %v2153
  %3076 = vmatpush1.bf16.msra.mxu0 %v2152
  %3077 = vmatprep.subr.bf16.mxu0 %v2161
  %3078 = vmatpush1.bf16.msra.mxu0 %v2160
  %3079 = vmatprep.subr.bf16.mxu0 %v2169
  %3080 = vmatpush1.bf16.msra.mxu0 %v2168
  %3081 = vmatprep.subr.bf16.mxu0 %v2177
  %3082 = vmatpush1.bf16.msra.mxu0 %v2176
  %3083 = vmatprep.subr.bf16.mxu0 %v2185
  %3084 = vmatpush1.bf16.msra.mxu0 %v2184
  %3085 = vmatprep.subr.bf16.mxu0 %v2193
  %3086 = vmatpush1.bf16.msra.mxu0 %v2192
  %3087 = vmatprep.subr.bf16.mxu0 %v2201
  %3088 = vmatpush1.bf16.msra.mxu0 %v2200
  %3089 = vmatprep.subr.bf16.mxu0 %v2209
  %3090 = vmatpush1.bf16.msra.mxu0 %v2208
  %3091 = vmatprep.subr.bf16.mxu0 %v2217
  %3092 = vmatpush1.bf16.msra.mxu0 %v2216
  %3093 = vmatprep.subr.bf16.mxu0 %v2225
  %3094 = vmatpush1.bf16.msra.mxu0 %v2224
  %3095 = vmatprep.subr.bf16.mxu0 %v2233
  %3096 = vmatpush1.bf16.msra.mxu0 %v2232
  %3097 = vmatprep.subr.bf16.mxu0 %v2241
  %3098 = vmatpush1.bf16.msra.mxu0 %v2240
  %3099 = vmatprep.subr.bf16.mxu0 %v2249
  %3100 = vmatpush1.bf16.msra.mxu0 %v2248
  %3101 = vmatprep.subr.bf16.mxu0 %v2257
  %3102 = vmatpush1.bf16.msra.mxu0 %v2256
  %3103 = vmatprep.subr.bf16.mxu0 %v2265
  %3104 = vmatpush1.bf16.msra.mxu0 %v2264
  %3105 = vmatprep.subr.bf16.mxu0 %v2273
  %3106 = vmatpush1.bf16.msra.mxu0 %v2272
  %3107 = vmatprep.mubr.bf16.mxu0 %v859
  %3108 = vmatmul.mubr.bf16.gmra.mrb[0].mxu0 %v858
  %v3109 = vpop.f32.mrb[0].mxu0
  %v3110 = vadd.f32 %v3069, %v3109
  %v3111 = vpop.f32.mrb[0].mxu0
  %v3112 = vadd.f32 %v3071, %v3111
  %v3113 = vpop.f32.mrb[0].mxu0
  %v3114 = vpop.f32.mrb[0].mxu0
  %3115 = vdwg.mxu0
  %3116 = vmatprep.subr.bf16.mxu0 %v2281
  %3117 = vmatpush1.bf16.msra.mxu0 %v2280
  %3118 = vmatprep.subr.bf16.mxu0 %v2289
  %3119 = vmatpush1.bf16.msra.mxu0 %v2288
  %3120 = vmatprep.subr.bf16.mxu0 %v2297
  %3121 = vmatpush1.bf16.msra.mxu0 %v2296
  %3122 = vmatprep.subr.bf16.mxu0 %v2305
  %3123 = vmatpush1.bf16.msra.mxu0 %v2304
  %3124 = vmatprep.subr.bf16.mxu0 %v2313
  %3125 = vmatpush1.bf16.msra.mxu0 %v2312
  %3126 = vmatprep.subr.bf16.mxu0 %v2321
  %3127 = vmatpush1.bf16.msra.mxu0 %v2320
  %3128 = vmatprep.subr.bf16.mxu0 %v2329
  %3129 = vmatpush1.bf16.msra.mxu0 %v2328
  %3130 = vmatprep.subr.bf16.mxu0 %v2337
  %3131 = vmatpush1.bf16.msra.mxu0 %v2336
  %3132 = vmatprep.subr.bf16.mxu0 %v2345
  %3133 = vmatpush1.bf16.msra.mxu0 %v2344
  %3134 = vmatprep.subr.bf16.mxu0 %v2353
  %3135 = vmatpush1.bf16.msra.mxu0 %v2352
  %3136 = vmatprep.subr.bf16.mxu0 %v2361
  %3137 = vmatpush1.bf16.msra.mxu0 %v2360
  %3138 = vmatprep.subr.bf16.mxu0 %v2369
  %3139 = vmatpush1.bf16.msra.mxu0 %v2368
  %3140 = vmatprep.subr.bf16.mxu0 %v2377
  %3141 = vmatpush1.bf16.msra.mxu0 %v2376
  %3142 = vmatprep.subr.bf16.mxu0 %v2385
  %3143 = vmatpush1.bf16.msra.mxu0 %v2384
  %3144 = vmatprep.subr.bf16.mxu0 %v2393
  %3145 = vmatpush1.bf16.msra.mxu0 %v2392
  %3146 = vmatprep.subr.bf16.mxu0 %v2401
  %3147 = vmatpush1.bf16.msra.mxu0 %v2400
  %3148 = vmatprep.mubr.bf16.mxu0 %v861
  %3149 = vmatmul.mubr.bf16.gmra.mrb[0].mxu0 %v860
  %v3150 = vpop.f32.mrb[0].mxu0
  %v3151 = vadd.f32 %v3110, %v3150
  %v3152 = vpop.f32.mrb[0].mxu0
  %v3153 = vadd.f32 %v3112, %v3152
  %v3154 = vpop.f32.mrb[0].mxu0
  %v3155 = vpop.f32.mrb[0].mxu0
  %3156 = vdwg.mxu0
  %3157 = vmatprep.subr.bf16.mxu0 %v2027
  %3158 = vmatpush1.bf16.msra.mxu0 %v2026
  %3159 = vmatprep.subr.bf16.mxu0 %v2035
  %3160 = vmatpush1.bf16.msra.mxu0 %v2034
  %3161 = vmatprep.subr.bf16.mxu0 %v2043
  %3162 = vmatpush1.bf16.msra.mxu0 %v2042
  %3163 = vmatprep.subr.bf16.mxu0 %v2051
  %3164 = vmatpush1.bf16.msra.mxu0 %v2050
  %3165 = vmatprep.subr.bf16.mxu0 %v2059
  %3166 = vmatpush1.bf16.msra.mxu0 %v2058
  %3167 = vmatprep.subr.bf16.mxu0 %v2067
  %3168 = vmatpush1.bf16.msra.mxu0 %v2066
  %3169 = vmatprep.subr.bf16.mxu0 %v2075
  %3170 = vmatpush1.bf16.msra.mxu0 %v2074
  %3171 = vmatprep.subr.bf16.mxu0 %v2083
  %3172 = vmatpush1.bf16.msra.mxu0 %v2082
  %3173 = vmatprep.subr.bf16.mxu0 %v2091
  %3174 = vmatpush1.bf16.msra.mxu0 %v2090
  %3175 = vmatprep.subr.bf16.mxu0 %v2099
  %3176 = vmatpush1.bf16.msra.mxu0 %v2098
  %3177 = vmatprep.subr.bf16.mxu0 %v2107
  %3178 = vmatpush1.bf16.msra.mxu0 %v2106
  %3179 = vmatprep.subr.bf16.mxu0 %v2115
  %3180 = vmatpush1.bf16.msra.mxu0 %v2114
  %3181 = vmatprep.subr.bf16.mxu0 %v2123
  %3182 = vmatpush1.bf16.msra.mxu0 %v2122
  %3183 = vmatprep.subr.bf16.mxu0 %v2131
  %3184 = vmatpush1.bf16.msra.mxu0 %v2130
  %3185 = vmatprep.subr.bf16.mxu0 %v2139
  %3186 = vmatpush1.bf16.msra.mxu0 %v2138
  %3187 = vmatprep.subr.bf16.mxu0 %v2147
  %3188 = vmatpush1.bf16.msra.mxu0 %v2146
  %3189 = vmatprep.mubr.bf16.mxu0 %v857
  %3190 = vmatmul.mubr.bf16.gmra.mrb[0].mxu0 %v856
  %v3191 = vpop.f32.mrb[0].mxu0
  %v3192 = vadd.f32 %v834, %v3191
  %v3193 = vpop.f32.mrb[0].mxu0
  %v3194 = vadd.f32 %v838, %v3193
  %v3195 = vpop.f32.mrb[0].mxu0
  %v3196 = vpop.f32.mrb[0].mxu0
  %3197 = vdwg.mxu0
  %3198 = vmatprep.subr.bf16.mxu0 %v2155
  %3199 = vmatpush1.bf16.msra.mxu0 %v2154
  %3200 = vmatprep.subr.bf16.mxu0 %v2163
  %3201 = vmatpush1.bf16.msra.mxu0 %v2162
  %3202 = vmatprep.subr.bf16.mxu0 %v2171
  %3203 = vmatpush1.bf16.msra.mxu0 %v2170
  %3204 = vmatprep.subr.bf16.mxu0 %v2179
  %3205 = vmatpush1.bf16.msra.mxu0 %v2178
  %3206 = vmatprep.subr.bf16.mxu0 %v2187
  %3207 = vmatpush1.bf16.msra.mxu0 %v2186
  %3208 = vmatprep.subr.bf16.mxu0 %v2195
  %3209 = vmatpush1.bf16.msra.mxu0 %v2194
  %3210 = vmatprep.subr.bf16.mxu0 %v2203
  %3211 = vmatpush1.bf16.msra.mxu0 %v2202
  %3212 = vmatprep.subr.bf16.mxu0 %v2211
  %3213 = vmatpush1.bf16.msra.mxu0 %v2210
  %3214 = vmatprep.subr.bf16.mxu0 %v2219
  %3215 = vmatpush1.bf16.msra.mxu0 %v2218
  %3216 = vmatprep.subr.bf16.mxu0 %v2227
  %3217 = vmatpush1.bf16.msra.mxu0 %v2226
  %3218 = vmatprep.subr.bf16.mxu0 %v2235
  %3219 = vmatpush1.bf16.msra.mxu0 %v2234
  %3220 = vmatprep.subr.bf16.mxu0 %v2243
  %3221 = vmatpush1.bf16.msra.mxu0 %v2242
  %3222 = vmatprep.subr.bf16.mxu0 %v2251
  %3223 = vmatpush1.bf16.msra.mxu0 %v2250
  %3224 = vmatprep.subr.bf16.mxu0 %v2259
  %3225 = vmatpush1.bf16.msra.mxu0 %v2258
  %3226 = vmatprep.subr.bf16.mxu0 %v2267
  %3227 = vmatpush1.bf16.msra.mxu0 %v2266
  %3228 = vmatprep.subr.bf16.mxu0 %v2275
  %3229 = vmatpush1.bf16.msra.mxu0 %v2274
  %3230 = vmatprep.mubr.bf16.mxu0 %v859
  %3231 = vmatmul.mubr.bf16.gmra.mrb[0].mxu0 %v858
  %v3232 = vpop.f32.mrb[0].mxu0
  %v3233 = vadd.f32 %v3192, %v3232
  %v3234 = vpop.f32.mrb[0].mxu0
  %v3235 = vadd.f32 %v3194, %v3234
  %v3236 = vpop.f32.mrb[0].mxu0
  %v3237 = vpop.f32.mrb[0].mxu0
  %3238 = vdwg.mxu0
  %3239 = vmatprep.subr.bf16.mxu0 %v2283
  %3240 = vmatpush1.bf16.msra.mxu0 %v2282
  %3241 = vmatprep.subr.bf16.mxu0 %v2291
  %3242 = vmatpush1.bf16.msra.mxu0 %v2290
  %3243 = vmatprep.subr.bf16.mxu0 %v2299
  %3244 = vmatpush1.bf16.msra.mxu0 %v2298
  %3245 = vmatprep.subr.bf16.mxu0 %v2307
  %3246 = vmatpush1.bf16.msra.mxu0 %v2306
  %3247 = vmatprep.subr.bf16.mxu0 %v2315
  %3248 = vmatpush1.bf16.msra.mxu0 %v2314
  %3249 = vmatprep.subr.bf16.mxu0 %v2323
  %3250 = vmatpush1.bf16.msra.mxu0 %v2322
  %3251 = vmatprep.subr.bf16.mxu0 %v2331
  %3252 = vmatpush1.bf16.msra.mxu0 %v2330
  %3253 = vmatprep.subr.bf16.mxu0 %v2339
  %3254 = vmatpush1.bf16.msra.mxu0 %v2338
  %3255 = vmatprep.subr.bf16.mxu0 %v2347
  %3256 = vmatpush1.bf16.msra.mxu0 %v2346
  %3257 = vmatprep.subr.bf16.mxu0 %v2355
  %3258 = vmatpush1.bf16.msra.mxu0 %v2354
  %3259 = vmatprep.subr.bf16.mxu0 %v2363
  %3260 = vmatpush1.bf16.msra.mxu0 %v2362
  %3261 = vmatprep.subr.bf16.mxu0 %v2371
  %3262 = vmatpush1.bf16.msra.mxu0 %v2370
  %3263 = vmatprep.subr.bf16.mxu0 %v2379
  %3264 = vmatpush1.bf16.msra.mxu0 %v2378
  %3265 = vmatprep.subr.bf16.mxu0 %v2387
  %3266 = vmatpush1.bf16.msra.mxu0 %v2386
  %3267 = vmatprep.subr.bf16.mxu0 %v2395
  %3268 = vmatpush1.bf16.msra.mxu0 %v2394
  %3269 = vmatprep.subr.bf16.mxu0 %v2403
  %3270 = vmatpush1.bf16.msra.mxu0 %v2402
  %3271 = vmatprep.mubr.bf16.mxu0 %v861
  %3272 = vmatmul.mubr.bf16.gmra.mrb[0].mxu0 %v860
  %v3273 = vpop.f32.mrb[0].mxu0
  %v3274 = vadd.f32 %v3233, %v3273
  %v3275 = vpop.f32.mrb[0].mxu0
  %v3276 = vadd.f32 %v3235, %v3275
  %v3277 = vpop.f32.mrb[0].mxu0
  %v3278 = vpop.f32.mrb[0].mxu0
  %3279 = vdwg.mxu0
  %v3664 = vunpack.c.l.b16 %v421
  %v3665 = vunpack.c.h.b16 %v421
  %v3666 = vunpack.c.l.b16 %v422
  %v3667 = vunpack.c.h.b16 %v422
  %v3668 = vunpack.c.l.b16 %v423
  %v3669 = vunpack.c.h.b16 %v423
  %v3670 = vunpack.c.l.b16 %v424
  %v3671 = vunpack.c.h.b16 %v424
  %v3672 = vunpack.c.l.b16 %v425
  %v3673 = vunpack.c.h.b16 %v425
  %v3674 = vunpack.c.l.b16 %v426
  %v3675 = vunpack.c.h.b16 %v426
  %v3676 = vunpack.c.l.b16 %v427
  %v3677 = vunpack.c.h.b16 %v427
  %v3678 = vunpack.c.l.b16 %v428
  %v3679 = vunpack.c.h.b16 %v428
  %v3680 = vunpack.c.l.b16 %v429
  %v3681 = vunpack.c.h.b16 %v429
  %v3682 = vunpack.c.l.b16 %v430
  %v3683 = vunpack.c.h.b16 %v430
  %v3684 = vunpack.c.l.b16 %v431
  %v3685 = vunpack.c.h.b16 %v431
  %v3686 = vunpack.c.l.b16 %v432
  %v3687 = vunpack.c.h.b16 %v432
  %v3688 = vunpack.c.l.b16 %v433
  %v3689 = vunpack.c.h.b16 %v433
  %v3690 = vunpack.c.l.b16 %v434
  %v3691 = vunpack.c.h.b16 %v434
  %v3692 = vunpack.c.l.b16 %v435
  %v3693 = vunpack.c.h.b16 %v435
  %v3694 = vunpack.c.l.b16 %v436
  %v3695 = vunpack.c.h.b16 %v436
  %v3696 = vunpack.c.l.b16 %v437
  %v3697 = vunpack.c.h.b16 %v437
  %v3698 = vunpack.c.l.b16 %v438
  %v3699 = vunpack.c.h.b16 %v438
  %v3700 = vunpack.c.l.b16 %v439
  %v3701 = vunpack.c.h.b16 %v439
  %v3702 = vunpack.c.l.b16 %v440
  %v3703 = vunpack.c.h.b16 %v440
  %v3704 = vunpack.c.l.b16 %v441
  %v3705 = vunpack.c.h.b16 %v441
  %v3706 = vunpack.c.l.b16 %v442
  %v3707 = vunpack.c.h.b16 %v442
  %v3708 = vunpack.c.l.b16 %v443
  %v3709 = vunpack.c.h.b16 %v443
  %v3710 = vunpack.c.l.b16 %v444
  %v3711 = vunpack.c.h.b16 %v444
  %v3712 = vunpack.c.l.b16 %v445
  %v3713 = vunpack.c.h.b16 %v445
  %v3714 = vunpack.c.l.b16 %v446
  %v3715 = vunpack.c.h.b16 %v446
  %v3716 = vunpack.c.l.b16 %v447
  %v3717 = vunpack.c.h.b16 %v447
  %v3718 = vunpack.c.l.b16 %v448
  %v3719 = vunpack.c.h.b16 %v448
  %v3720 = vunpack.c.l.b16 %v449
  %v3721 = vunpack.c.h.b16 %v449
  %v3722 = vunpack.c.l.b16 %v450
  %v3723 = vunpack.c.h.b16 %v450
  %v3724 = vunpack.c.l.b16 %v451
  %v3725 = vunpack.c.h.b16 %v451
  %v3726 = vunpack.c.l.b16 %v452
  %v3727 = vunpack.c.h.b16 %v452
  %v3728 = vunpack.c.l.b16 %v453
  %v3729 = vunpack.c.h.b16 %v453
  %v3730 = vunpack.c.l.b16 %v454
  %v3731 = vunpack.c.h.b16 %v454
  %v3732 = vunpack.c.l.b16 %v455
  %v3733 = vunpack.c.h.b16 %v455
  %v3734 = vunpack.c.l.b16 %v456
  %v3735 = vunpack.c.h.b16 %v456
  %v3736 = vunpack.c.l.b16 %v457
  %v3737 = vunpack.c.h.b16 %v457
  %v3738 = vunpack.c.l.b16 %v458
  %v3739 = vunpack.c.h.b16 %v458
  %v3740 = vunpack.c.l.b16 %v459
  %v3741 = vunpack.c.h.b16 %v459
  %v3742 = vunpack.c.l.b16 %v460
  %v3743 = vunpack.c.h.b16 %v460
  %v3744 = vunpack.c.l.b16 %v461
  %v3745 = vunpack.c.h.b16 %v461
  %v3746 = vunpack.c.l.b16 %v462
  %v3747 = vunpack.c.h.b16 %v462
  %v3748 = vunpack.c.l.b16 %v463
  %v3749 = vunpack.c.h.b16 %v463
  %v3750 = vunpack.c.l.b16 %v464
  %v3751 = vunpack.c.h.b16 %v464
  %v3752 = vunpack.c.l.b16 %v465
  %v3753 = vunpack.c.h.b16 %v465
  %v3754 = vunpack.c.l.b16 %v466
  %v3755 = vunpack.c.h.b16 %v466
  %v3756 = vunpack.c.l.b16 %v467
  %v3757 = vunpack.c.h.b16 %v467
  %v3758 = vunpack.c.l.b16 %v468
  %v3759 = vunpack.c.h.b16 %v468
  %v3760 = vunpack.c.l.b16 %v469
  %v3761 = vunpack.c.h.b16 %v469
  %v3762 = vunpack.c.l.b16 %v470
  %v3763 = vunpack.c.h.b16 %v470
  %v3764 = vunpack.c.l.b16 %v471
  %v3765 = vunpack.c.h.b16 %v471
  %v3766 = vunpack.c.l.b16 %v472
  %v3767 = vunpack.c.h.b16 %v472
  %v3768 = vunpack.c.l.b16 %v473
  %v3769 = vunpack.c.h.b16 %v473
  %v3770 = vunpack.c.l.b16 %v474
  %v3771 = vunpack.c.h.b16 %v474
  %v3772 = vunpack.c.l.b16 %v475
  %v3773 = vunpack.c.h.b16 %v475
  %v3774 = vunpack.c.l.b16 %v476
  %v3775 = vunpack.c.h.b16 %v476
  %v3776 = vunpack.c.l.b16 %v477
  %v3777 = vunpack.c.h.b16 %v477
  %v3778 = vunpack.c.l.b16 %v478
  %v3779 = vunpack.c.h.b16 %v478
  %v3780 = vunpack.c.l.b16 %v479
  %v3781 = vunpack.c.h.b16 %v479
  %v3782 = vunpack.c.l.b16 %v480
  %v3783 = vunpack.c.h.b16 %v480
  %v3784 = vunpack.c.l.b16 %v481
  %v3785 = vunpack.c.h.b16 %v481
  %v3786 = vunpack.c.l.b16 %v482
  %v3787 = vunpack.c.h.b16 %v482
  %v3788 = vunpack.c.l.b16 %v483
  %v3789 = vunpack.c.h.b16 %v483
  %v3790 = vunpack.c.l.b16 %v484
  %v3791 = vunpack.c.h.b16 %v484
  %v3792 = vunpack.c.l.b16 %v485
  %v3793 = vunpack.c.h.b16 %v485
  %v3794 = vunpack.c.l.b16 %v486
  %v3795 = vunpack.c.h.b16 %v486
  %v3796 = vunpack.c.l.b16 %v487
  %v3797 = vunpack.c.h.b16 %v487
  %v3798 = vunpack.c.l.b16 %v488
  %v3799 = vunpack.c.h.b16 %v488
  %v3800 = vunpack.c.l.b16 %v489
  %v3801 = vunpack.c.h.b16 %v489
  %v3802 = vunpack.c.l.b16 %v490
  %v3803 = vunpack.c.h.b16 %v490
  %v3804 = vunpack.c.l.b16 %v491
  %v3805 = vunpack.c.h.b16 %v491
  %v3806 = vunpack.c.l.b16 %v492
  %v3807 = vunpack.c.h.b16 %v492
  %v3808 = vunpack.c.l.b16 %v493
  %v3809 = vunpack.c.h.b16 %v493
  %v3810 = vunpack.c.l.b16 %v494
  %v3811 = vunpack.c.h.b16 %v494
  %v3812 = vunpack.c.l.b16 %v495
  %v3813 = vunpack.c.h.b16 %v495
  %v3814 = vunpack.c.l.b16 %v496
  %v3815 = vunpack.c.h.b16 %v496
  %v3816 = vunpack.c.l.b16 %v497
  %v3817 = vunpack.c.h.b16 %v497
  %v3818 = vunpack.c.l.b16 %v498
  %v3819 = vunpack.c.h.b16 %v498
  %v3820 = vunpack.c.l.b16 %v499
  %v3821 = vunpack.c.h.b16 %v499
  %v3822 = vunpack.c.l.b16 %v500
  %v3823 = vunpack.c.h.b16 %v500
  %v3824 = vunpack.c.l.b16 %v501
  %v3825 = vunpack.c.h.b16 %v501
  %v3826 = vunpack.c.l.b16 %v502
  %v3827 = vunpack.c.h.b16 %v502
  %v3828 = vunpack.c.l.b16 %v503
  %v3829 = vunpack.c.h.b16 %v503
  %v3830 = vunpack.c.l.b16 %v504
  %v3831 = vunpack.c.h.b16 %v504
  %v3832 = vunpack.c.l.b16 %v505
  %v3833 = vunpack.c.h.b16 %v505
  %v3834 = vunpack.c.l.b16 %v506
  %v3835 = vunpack.c.h.b16 %v506
  %v3836 = vunpack.c.l.b16 %v507
  %v3837 = vunpack.c.h.b16 %v507
  %v3838 = vunpack.c.l.b16 %v508
  %v3839 = vunpack.c.h.b16 %v508
  %v3840 = vunpack.c.l.b16 %v509
  %v3841 = vunpack.c.h.b16 %v509
  %v3842 = vunpack.c.l.b16 %v510
  %v3843 = vunpack.c.h.b16 %v510
  %v3844 = vunpack.c.l.b16 %v511
  %v3845 = vunpack.c.h.b16 %v511
  %v3846 = vunpack.c.l.b16 %v512
  %v3847 = vunpack.c.h.b16 %v512
  %v3848 = vunpack.c.l.b16 %v513
  %v3849 = vunpack.c.h.b16 %v513
  %v3850 = vunpack.c.l.b16 %v514
  %v3851 = vunpack.c.h.b16 %v514
  %v3852 = vunpack.c.l.b16 %v515
  %v3853 = vunpack.c.h.b16 %v515
  %v3854 = vunpack.c.l.b16 %v516
  %v3855 = vunpack.c.h.b16 %v516
  %v3856 = vunpack.c.l.b16 %v517
  %v3857 = vunpack.c.h.b16 %v517
  %v3858 = vunpack.c.l.b16 %v518
  %v3859 = vunpack.c.h.b16 %v518
  %v3860 = vunpack.c.l.b16 %v519
  %v3861 = vunpack.c.h.b16 %v519
  %v3862 = vunpack.c.l.b16 %v520
  %v3863 = vunpack.c.h.b16 %v520
  %v3864 = vunpack.c.l.b16 %v521
  %v3865 = vunpack.c.h.b16 %v521
  %v3866 = vunpack.c.l.b16 %v522
  %v3867 = vunpack.c.h.b16 %v522
  %v3868 = vunpack.c.l.b16 %v523
  %v3869 = vunpack.c.h.b16 %v523
  %v3870 = vunpack.c.l.b16 %v524
  %v3871 = vunpack.c.h.b16 %v524
  %v3872 = vunpack.c.l.b16 %v525
  %v3873 = vunpack.c.h.b16 %v525
  %v3874 = vunpack.c.l.b16 %v526
  %v3875 = vunpack.c.h.b16 %v526
  %v3876 = vunpack.c.l.b16 %v527
  %v3877 = vunpack.c.h.b16 %v527
  %v3878 = vunpack.c.l.b16 %v528
  %v3879 = vunpack.c.h.b16 %v528
  %v3880 = vunpack.c.l.b16 %v529
  %v3881 = vunpack.c.h.b16 %v529
  %v3882 = vunpack.c.l.b16 %v530
  %v3883 = vunpack.c.h.b16 %v530
  %v3884 = vunpack.c.l.b16 %v531
  %v3885 = vunpack.c.h.b16 %v531
  %v3886 = vunpack.c.l.b16 %v532
  %v3887 = vunpack.c.h.b16 %v532
  %v3888 = vunpack.c.l.b16 %v533
  %v3889 = vunpack.c.h.b16 %v533
  %v3890 = vunpack.c.l.b16 %v534
  %v3891 = vunpack.c.h.b16 %v534
  %v3892 = vunpack.c.l.b16 %v535
  %v3893 = vunpack.c.h.b16 %v535
  %v3894 = vunpack.c.l.b16 %v536
  %v3895 = vunpack.c.h.b16 %v536
  %v3896 = vunpack.c.l.b16 %v537
  %v3897 = vunpack.c.h.b16 %v537
  %v3898 = vunpack.c.l.b16 %v538
  %v3899 = vunpack.c.h.b16 %v538
  %v3900 = vunpack.c.l.b16 %v539
  %v3901 = vunpack.c.h.b16 %v539
  %v3902 = vunpack.c.l.b16 %v540
  %v3903 = vunpack.c.h.b16 %v540
  %v3904 = vunpack.c.l.b16 %v541
  %v3905 = vunpack.c.h.b16 %v541
  %v3906 = vunpack.c.l.b16 %v542
  %v3907 = vunpack.c.h.b16 %v542
  %v3908 = vunpack.c.l.b16 %v543
  %v3909 = vunpack.c.h.b16 %v543
  %v3910 = vunpack.c.l.b16 %v544
  %v3911 = vunpack.c.h.b16 %v544
  %v3912 = vunpack.c.l.b16 %v545
  %v3913 = vunpack.c.h.b16 %v545
  %v3914 = vunpack.c.l.b16 %v546
  %v3915 = vunpack.c.h.b16 %v546
  %v3916 = vunpack.c.l.b16 %v547
  %v3917 = vunpack.c.h.b16 %v547
  %v3918 = vunpack.c.l.b16 %v548
  %v3919 = vunpack.c.h.b16 %v548
  %v3920 = vunpack.c.l.b16 %v549
  %v3921 = vunpack.c.h.b16 %v549
  %v3922 = vunpack.c.l.b16 %v550
  %v3923 = vunpack.c.h.b16 %v550
  %v3924 = vunpack.c.l.b16 %v551
  %v3925 = vunpack.c.h.b16 %v551
  %v3926 = vunpack.c.l.b16 %v552
  %v3927 = vunpack.c.h.b16 %v552
  %v3928 = vunpack.c.l.b16 %v553
  %v3929 = vunpack.c.h.b16 %v553
  %v3930 = vunpack.c.l.b16 %v554
  %v3931 = vunpack.c.h.b16 %v554
  %v3932 = vunpack.c.l.b16 %v555
  %v3933 = vunpack.c.h.b16 %v555
  %v3934 = vunpack.c.l.b16 %v556
  %v3935 = vunpack.c.h.b16 %v556
  %v3936 = vunpack.c.l.b16 %v557
  %v3937 = vunpack.c.h.b16 %v557
  %v3938 = vunpack.c.l.b16 %v558
  %v3939 = vunpack.c.h.b16 %v558
  %v3940 = vunpack.c.l.b16 %v559
  %v3941 = vunpack.c.h.b16 %v559
  %v3942 = vunpack.c.l.b16 %v560
  %v3943 = vunpack.c.h.b16 %v560
  %v3944 = vunpack.c.l.b16 %v561
  %v3945 = vunpack.c.h.b16 %v561
  %v3946 = vunpack.c.l.b16 %v562
  %v3947 = vunpack.c.h.b16 %v562
  %v3948 = vunpack.c.l.b16 %v563
  %v3949 = vunpack.c.h.b16 %v563
  %v3950 = vunpack.c.l.b16 %v564
  %v3951 = vunpack.c.h.b16 %v564
  %v3952 = vunpack.c.l.b16 %v565
  %v3953 = vunpack.c.h.b16 %v565
  %v3954 = vunpack.c.l.b16 %v566
  %v3955 = vunpack.c.h.b16 %v566
  %v3956 = vunpack.c.l.b16 %v567
  %v3957 = vunpack.c.h.b16 %v567
  %v3958 = vunpack.c.l.b16 %v568
  %v3959 = vunpack.c.h.b16 %v568
  %v3960 = vunpack.c.l.b16 %v569
  %v3961 = vunpack.c.h.b16 %v569
  %v3962 = vunpack.c.l.b16 %v570
  %v3963 = vunpack.c.h.b16 %v570
  %v3964 = vunpack.c.l.b16 %v571
  %v3965 = vunpack.c.h.b16 %v571
  %v3966 = vunpack.c.l.b16 %v572
  %v3967 = vunpack.c.h.b16 %v572
  %v3968 = vunpack.c.l.b16 %v573
  %v3969 = vunpack.c.h.b16 %v573
  %v3970 = vunpack.c.l.b16 %v574
  %v3971 = vunpack.c.h.b16 %v574
  %v3972 = vunpack.c.l.b16 %v575
  %v3973 = vunpack.c.h.b16 %v575
  %v3974 = vunpack.c.l.b16 %v576
  %v3975 = vunpack.c.h.b16 %v576
  %v3976 = vunpack.c.l.b16 %v577
  %v3977 = vunpack.c.h.b16 %v577
  %v3978 = vunpack.c.l.b16 %v578
  %v3979 = vunpack.c.h.b16 %v578
  %v3980 = vunpack.c.l.b16 %v579
  %v3981 = vunpack.c.h.b16 %v579
  %v3982 = vunpack.c.l.b16 %v580
  %v3983 = vunpack.c.h.b16 %v580
  %v3984 = vunpack.c.l.b16 %v581
  %v3985 = vunpack.c.h.b16 %v581
  %v3986 = vunpack.c.l.b16 %v582
  %v3987 = vunpack.c.h.b16 %v582
  %v3988 = vunpack.c.l.b16 %v583
  %v3989 = vunpack.c.h.b16 %v583
  %v3990 = vunpack.c.l.b16 %v584
  %v3991 = vunpack.c.h.b16 %v584
  %v3992 = vunpack.c.l.b16 %v585
  %v3993 = vunpack.c.h.b16 %v585
  %v3994 = vunpack.c.l.b16 %v586
  %v3995 = vunpack.c.h.b16 %v586
  %v3996 = vunpack.c.l.b16 %v587
  %v3997 = vunpack.c.h.b16 %v587
  %v3998 = vunpack.c.l.b16 %v588
  %v3999 = vunpack.c.h.b16 %v588
  %v4000 = vunpack.c.l.b16 %v589
  %v4001 = vunpack.c.h.b16 %v589
  %v4002 = vunpack.c.l.b16 %v590
  %v4003 = vunpack.c.h.b16 %v590
  %v4004 = vunpack.c.l.b16 %v591
  %v4005 = vunpack.c.h.b16 %v591
  %v4006 = vunpack.c.l.b16 %v592
  %v4007 = vunpack.c.h.b16 %v592
  %v4008 = vunpack.c.l.b16 %v593
  %v4009 = vunpack.c.h.b16 %v593
  %v4010 = vunpack.c.l.b16 %v594
  %v4011 = vunpack.c.h.b16 %v594
  %v4012 = vunpack.c.l.b16 %v595
  %v4013 = vunpack.c.h.b16 %v595
  %v4014 = vunpack.c.l.b16 %v596
  %v4015 = vunpack.c.h.b16 %v596
  %v4016 = vunpack.c.l.b16 %v597
  %v4017 = vunpack.c.h.b16 %v597
  %v4018 = vunpack.c.l.b16 %v598
  %v4019 = vunpack.c.h.b16 %v598
  %v4020 = vunpack.c.l.b16 %v599
  %v4021 = vunpack.c.h.b16 %v599
  %v4022 = vunpack.c.l.b16 %v600
  %v4023 = vunpack.c.h.b16 %v600
  %v4024 = vunpack.c.l.b16 %v601
  %v4025 = vunpack.c.h.b16 %v601
  %v4026 = vunpack.c.l.b16 %v602
  %v4027 = vunpack.c.h.b16 %v602
  %v4028 = vunpack.c.l.b16 %v603
  %v4029 = vunpack.c.h.b16 %v603
  %v4030 = vunpack.c.l.b16 %v604
  %v4031 = vunpack.c.h.b16 %v604
  %v4032 = vunpack.c.l.b16 %v605
  %v4033 = vunpack.c.h.b16 %v605
  %v4034 = vunpack.c.l.b16 %v606
  %v4035 = vunpack.c.h.b16 %v606
  %v4036 = vunpack.c.l.b16 %v607
  %v4037 = vunpack.c.h.b16 %v607
  %v4038 = vunpack.c.l.b16 %v608
  %v4039 = vunpack.c.h.b16 %v608
  %v4040 = vunpack.c.l.b16 %v609
  %v4041 = vunpack.c.h.b16 %v609
  %v4042 = vunpack.c.l.b16 %v610
  %v4043 = vunpack.c.h.b16 %v610
  %v4044 = vunpack.c.l.b16 %v611
  %v4045 = vunpack.c.h.b16 %v611
  %v4046 = vunpack.c.l.b16 %v612
  %v4047 = vunpack.c.h.b16 %v612
  %v4048 = vunpack.c.l.b16 %v613
  %v4049 = vunpack.c.h.b16 %v613
  %v4050 = vunpack.c.l.b16 %v614
  %v4051 = vunpack.c.h.b16 %v614
  %v4052 = vunpack.c.l.b16 %v615
  %v4053 = vunpack.c.h.b16 %v615
  %v4054 = vunpack.c.l.b16 %v616
  %v4055 = vunpack.c.h.b16 %v616
  %v4056 = vunpack.c.l.b16 %v617
  %v4057 = vunpack.c.h.b16 %v617
  %v4058 = vunpack.c.l.b16 %v618
  %v4059 = vunpack.c.h.b16 %v618
  %v4060 = vunpack.c.l.b16 %v619
  %v4061 = vunpack.c.h.b16 %v619
  %v4062 = vunpack.c.l.b16 %v620
  %v4063 = vunpack.c.h.b16 %v620
  %v4064 = vunpack.c.l.b16 %v621
  %v4065 = vunpack.c.h.b16 %v621
  %v4066 = vunpack.c.l.b16 %v622
  %v4067 = vunpack.c.h.b16 %v622
  %v4068 = vunpack.c.l.b16 %v623
  %v4069 = vunpack.c.h.b16 %v623
  %v4070 = vunpack.c.l.b16 %v624
  %v4071 = vunpack.c.h.b16 %v624
  %v4072 = vunpack.c.l.b16 %v625
  %v4073 = vunpack.c.h.b16 %v625
  %v4074 = vunpack.c.l.b16 %v626
  %v4075 = vunpack.c.h.b16 %v626
  %v4076 = vunpack.c.l.b16 %v627
  %v4077 = vunpack.c.h.b16 %v627
  %v4078 = vunpack.c.l.b16 %v628
  %v4079 = vunpack.c.h.b16 %v628
  %v4080 = vunpack.c.l.b16 %v629
  %v4081 = vunpack.c.h.b16 %v629
  %v4082 = vunpack.c.l.b16 %v630
  %v4083 = vunpack.c.h.b16 %v630
  %v4084 = vunpack.c.l.b16 %v631
  %v4085 = vunpack.c.h.b16 %v631
  %v4086 = vunpack.c.l.b16 %v632
  %v4087 = vunpack.c.h.b16 %v632
  %v4088 = vunpack.c.l.b16 %v633
  %v4089 = vunpack.c.h.b16 %v633
  %v4090 = vunpack.c.l.b16 %v634
  %v4091 = vunpack.c.h.b16 %v634
  %v4092 = vunpack.c.l.b16 %v635
  %v4093 = vunpack.c.h.b16 %v635
  %v4094 = vunpack.c.l.b16 %v636
  %v4095 = vunpack.c.h.b16 %v636
  %v4096 = vunpack.c.l.b16 %v637
  %v4097 = vunpack.c.h.b16 %v637
  %v4098 = vunpack.c.l.b16 %v638
  %v4099 = vunpack.c.h.b16 %v638
  %v4100 = vunpack.c.l.b16 %v639
  %v4101 = vunpack.c.h.b16 %v639
  %v4102 = vunpack.c.l.b16 %v640
  %v4103 = vunpack.c.h.b16 %v640
  %v4104 = vunpack.c.l.b16 %v641
  %v4105 = vunpack.c.h.b16 %v641
  %v4106 = vunpack.c.l.b16 %v642
  %v4107 = vunpack.c.h.b16 %v642
  %v4108 = vunpack.c.l.b16 %v643
  %v4109 = vunpack.c.h.b16 %v643
  %v4110 = vunpack.c.l.b16 %v644
  %v4111 = vunpack.c.h.b16 %v644
  %v4112 = vunpack.c.l.b16 %v645
  %v4113 = vunpack.c.h.b16 %v645
  %v4114 = vunpack.c.l.b16 %v646
  %v4115 = vunpack.c.h.b16 %v646
  %v4116 = vunpack.c.l.b16 %v647
  %v4117 = vunpack.c.h.b16 %v647
  %v4118 = vunpack.c.l.b16 %v648
  %v4119 = vunpack.c.h.b16 %v648
  %v4120 = vunpack.c.l.b16 %v649
  %v4121 = vunpack.c.h.b16 %v649
  %v4122 = vunpack.c.l.b16 %v650
  %v4123 = vunpack.c.h.b16 %v650
  %v4124 = vunpack.c.l.b16 %v651
  %v4125 = vunpack.c.h.b16 %v651
  %v4126 = vunpack.c.l.b16 %v652
  %v4127 = vunpack.c.h.b16 %v652
  %v4128 = vunpack.c.l.b16 %v653
  %v4129 = vunpack.c.h.b16 %v653
  %v4130 = vunpack.c.l.b16 %v654
  %v4131 = vunpack.c.h.b16 %v654
  %v4132 = vunpack.c.l.b16 %v655
  %v4133 = vunpack.c.h.b16 %v655
  %v4134 = vunpack.c.l.b16 %v656
  %v4135 = vunpack.c.h.b16 %v656
  %v4136 = vunpack.c.l.b16 %v657
  %v4137 = vunpack.c.h.b16 %v657
  %v4138 = vunpack.c.l.b16 %v658
  %v4139 = vunpack.c.h.b16 %v658
  %v4140 = vunpack.c.l.b16 %v659
  %v4141 = vunpack.c.h.b16 %v659
  %v4142 = vunpack.c.l.b16 %v660
  %v4143 = vunpack.c.h.b16 %v660
  %v4144 = vunpack.c.l.b16 %v661
  %v4145 = vunpack.c.h.b16 %v661
  %v4146 = vunpack.c.l.b16 %v662
  %v4147 = vunpack.c.h.b16 %v662
  %v4148 = vunpack.c.l.b16 %v663
  %v4149 = vunpack.c.h.b16 %v663
  %v4150 = vunpack.c.l.b16 %v664
  %v4151 = vunpack.c.h.b16 %v664
  %v4152 = vunpack.c.l.b16 %v665
  %v4153 = vunpack.c.h.b16 %v665
  %v4154 = vunpack.c.l.b16 %v666
  %v4155 = vunpack.c.h.b16 %v666
  %v4156 = vunpack.c.l.b16 %v667
  %v4157 = vunpack.c.h.b16 %v667
  %v4158 = vunpack.c.l.b16 %v668
  %v4159 = vunpack.c.h.b16 %v668
  %v4160 = vunpack.c.l.b16 %v669
  %v4161 = vunpack.c.h.b16 %v669
  %v4162 = vunpack.c.l.b16 %v670
  %v4163 = vunpack.c.h.b16 %v670
  %v4164 = vunpack.c.l.b16 %v671
  %v4165 = vunpack.c.h.b16 %v671
  %v4166 = vunpack.c.l.b16 %v672
  %v4167 = vunpack.c.h.b16 %v672
  %v4168 = vunpack.c.l.b16 %v673
  %v4169 = vunpack.c.h.b16 %v673
  %v4170 = vunpack.c.l.b16 %v674
  %v4171 = vunpack.c.h.b16 %v674
  %v4172 = vunpack.c.l.b16 %v675
  %v4173 = vunpack.c.h.b16 %v675
  %v4174 = vunpack.c.l.b16 %v676
  %v4175 = vunpack.c.h.b16 %v676
  %v4176 = vunpack.c.l.b16 %v677
  %v4177 = vunpack.c.h.b16 %v677
  %v4178 = vunpack.c.l.b16 %v678
  %v4179 = vunpack.c.h.b16 %v678
  %v4180 = vunpack.c.l.b16 %v679
  %v4181 = vunpack.c.h.b16 %v679
  %v4182 = vunpack.c.l.b16 %v680
  %v4183 = vunpack.c.h.b16 %v680
  %v4184 = vunpack.c.l.b16 %v681
  %v4185 = vunpack.c.h.b16 %v681
  %v4186 = vunpack.c.l.b16 %v682
  %v4187 = vunpack.c.h.b16 %v682
  %v4188 = vunpack.c.l.b16 %v683
  %v4189 = vunpack.c.h.b16 %v683
  %v4190 = vunpack.c.l.b16 %v684
  %v4191 = vunpack.c.h.b16 %v684
  %v4192 = vunpack.c.l.b16 %v685
  %v4193 = vunpack.c.h.b16 %v685
  %v4194 = vunpack.c.l.b16 %v686
  %v4195 = vunpack.c.h.b16 %v686
  %v4196 = vunpack.c.l.b16 %v687
  %v4197 = vunpack.c.h.b16 %v687
  %v4198 = vunpack.c.l.b16 %v688
  %v4199 = vunpack.c.h.b16 %v688
  %v4200 = vunpack.c.l.b16 %v689
  %v4201 = vunpack.c.h.b16 %v689
  %v4202 = vunpack.c.l.b16 %v690
  %v4203 = vunpack.c.h.b16 %v690
  %v4204 = vunpack.c.l.b16 %v691
  %v4205 = vunpack.c.h.b16 %v691
  %v4206 = vunpack.c.l.b16 %v692
  %v4207 = vunpack.c.h.b16 %v692
  %v4208 = vunpack.c.l.b16 %v693
  %v4209 = vunpack.c.h.b16 %v693
  %v4210 = vunpack.c.l.b16 %v694
  %v4211 = vunpack.c.h.b16 %v694
  %v4212 = vunpack.c.l.b16 %v695
  %v4213 = vunpack.c.h.b16 %v695
  %v4214 = vunpack.c.l.b16 %v696
  %v4215 = vunpack.c.h.b16 %v696
  %v4216 = vunpack.c.l.b16 %v697
  %v4217 = vunpack.c.h.b16 %v697
  %v4218 = vunpack.c.l.b16 %v698
  %v4219 = vunpack.c.h.b16 %v698
  %v4220 = vunpack.c.l.b16 %v699
  %v4221 = vunpack.c.h.b16 %v699
  %v4222 = vunpack.c.l.b16 %v700
  %v4223 = vunpack.c.h.b16 %v700
  %v4224 = vunpack.c.l.b16 %v701
  %v4225 = vunpack.c.h.b16 %v701
  %v4226 = vunpack.c.l.b16 %v702
  %v4227 = vunpack.c.h.b16 %v702
  %v4228 = vunpack.c.l.b16 %v703
  %v4229 = vunpack.c.h.b16 %v703
  %v4230 = vunpack.c.l.b16 %v704
  %v4231 = vunpack.c.h.b16 %v704
  %v4232 = vunpack.c.l.b16 %v705
  %v4233 = vunpack.c.h.b16 %v705
  %v4234 = vunpack.c.l.b16 %v706
  %v4235 = vunpack.c.h.b16 %v706
  %v4236 = vunpack.c.l.b16 %v707
  %v4237 = vunpack.c.h.b16 %v707
  %v4238 = vunpack.c.l.b16 %v708
  %v4239 = vunpack.c.h.b16 %v708
  %v4240 = vunpack.c.l.b16 %v709
  %v4241 = vunpack.c.h.b16 %v709
  %v4242 = vunpack.c.l.b16 %v710
  %v4243 = vunpack.c.h.b16 %v710
  %v4244 = vunpack.c.l.b16 %v711
  %v4245 = vunpack.c.h.b16 %v711
  %v4246 = vunpack.c.l.b16 %v712
  %v4247 = vunpack.c.h.b16 %v712
  %v4248 = vunpack.c.l.b16 %v713
  %v4249 = vunpack.c.h.b16 %v713
  %v4250 = vunpack.c.l.b16 %v714
  %v4251 = vunpack.c.h.b16 %v714
  %v4252 = vunpack.c.l.b16 %v715
  %v4253 = vunpack.c.h.b16 %v715
  %v4254 = vunpack.c.l.b16 %v716
  %v4255 = vunpack.c.h.b16 %v716
  %v4256 = vunpack.c.l.b16 %v717
  %v4257 = vunpack.c.h.b16 %v717
  %v4258 = vunpack.c.l.b16 %v718
  %v4259 = vunpack.c.h.b16 %v718
  %v4260 = vunpack.c.l.b16 %v719
  %v4261 = vunpack.c.h.b16 %v719
  %v4262 = vunpack.c.l.b16 %v720
  %v4263 = vunpack.c.h.b16 %v720
  %v4264 = vunpack.c.l.b16 %v721
  %v4265 = vunpack.c.h.b16 %v721
  %v4266 = vunpack.c.l.b16 %v722
  %v4267 = vunpack.c.h.b16 %v722
  %v4268 = vunpack.c.l.b16 %v723
  %v4269 = vunpack.c.h.b16 %v723
  %v4270 = vunpack.c.l.b16 %v724
  %v4271 = vunpack.c.h.b16 %v724
  %v4272 = vunpack.c.l.b16 %v725
  %v4273 = vunpack.c.h.b16 %v725
  %v4274 = vunpack.c.l.b16 %v726
  %v4275 = vunpack.c.h.b16 %v726
  %v4276 = vunpack.c.l.b16 %v727
  %v4277 = vunpack.c.h.b16 %v727
  %v4278 = vunpack.c.l.b16 %v728
  %v4279 = vunpack.c.h.b16 %v728
  %v4280 = vunpack.c.l.b16 %v729
  %v4281 = vunpack.c.h.b16 %v729
  %v4282 = vunpack.c.l.b16 %v730
  %v4283 = vunpack.c.h.b16 %v730
  %v4284 = vunpack.c.l.b16 %v731
  %v4285 = vunpack.c.h.b16 %v731
  %v4286 = vunpack.c.l.b16 %v732
  %v4287 = vunpack.c.h.b16 %v732
  %v4288 = vunpack.c.l.b16 %v733
  %v4289 = vunpack.c.h.b16 %v733
  %v4290 = vunpack.c.l.b16 %v734
  %v4291 = vunpack.c.h.b16 %v734
  %v4292 = vunpack.c.l.b16 %v735
  %v4293 = vunpack.c.h.b16 %v735
  %v4294 = vunpack.c.l.b16 %v736
  %v4295 = vunpack.c.h.b16 %v736
  %v4296 = vunpack.c.l.b16 %v737
  %v4297 = vunpack.c.h.b16 %v737
  %v4298 = vunpack.c.l.b16 %v738
  %v4299 = vunpack.c.h.b16 %v738
  %v4300 = vunpack.c.l.b16 %v739
  %v4301 = vunpack.c.h.b16 %v739
  %v4302 = vunpack.c.l.b16 %v740
  %v4303 = vunpack.c.h.b16 %v740
  %v4304 = vunpack.c.l.b16 %v741
  %v4305 = vunpack.c.h.b16 %v741
  %v4306 = vunpack.c.l.b16 %v742
  %v4307 = vunpack.c.h.b16 %v742
  %v4308 = vunpack.c.l.b16 %v743
  %v4309 = vunpack.c.h.b16 %v743
  %v4310 = vunpack.c.l.b16 %v744
  %v4311 = vunpack.c.h.b16 %v744
  %v4312 = vunpack.c.l.b16 %v745
  %v4313 = vunpack.c.h.b16 %v745
  %v4314 = vunpack.c.l.b16 %v746
  %v4315 = vunpack.c.h.b16 %v746
  %v4316 = vunpack.c.l.b16 %v747
  %v4317 = vunpack.c.h.b16 %v747
  %v4318 = vunpack.c.l.b16 %v748
  %v4319 = vunpack.c.h.b16 %v748
  %v4320 = vunpack.c.l.b16 %v749
  %v4321 = vunpack.c.h.b16 %v749
  %v4322 = vunpack.c.l.b16 %v750
  %v4323 = vunpack.c.h.b16 %v750
  %v4324 = vunpack.c.l.b16 %v751
  %v4325 = vunpack.c.h.b16 %v751
  %v4326 = vunpack.c.l.b16 %v752
  %v4327 = vunpack.c.h.b16 %v752
  %v4328 = vunpack.c.l.b16 %v753
  %v4329 = vunpack.c.h.b16 %v753
  %v4330 = vunpack.c.l.b16 %v754
  %v4331 = vunpack.c.h.b16 %v754
  %v4332 = vunpack.c.l.b16 %v755
  %v4333 = vunpack.c.h.b16 %v755
  %v4334 = vunpack.c.l.b16 %v756
  %v4335 = vunpack.c.h.b16 %v756
  %v4336 = vunpack.c.l.b16 %v757
  %v4337 = vunpack.c.h.b16 %v757
  %v4338 = vunpack.c.l.b16 %v758
  %v4339 = vunpack.c.h.b16 %v758
  %v4340 = vunpack.c.l.b16 %v759
  %v4341 = vunpack.c.h.b16 %v759
  %v4342 = vunpack.c.l.b16 %v760
  %v4343 = vunpack.c.h.b16 %v760
  %v4344 = vunpack.c.l.b16 %v761
  %v4345 = vunpack.c.h.b16 %v761
  %v4346 = vunpack.c.l.b16 %v762
  %v4347 = vunpack.c.h.b16 %v762
  %v4348 = vunpack.c.l.b16 %v763
  %v4349 = vunpack.c.h.b16 %v763
  %v4350 = vunpack.c.l.b16 %v764
  %v4351 = vunpack.c.h.b16 %v764
  %v4352 = vunpack.c.l.b16 %v765
  %v4353 = vunpack.c.h.b16 %v765
  %v4354 = vunpack.c.l.b16 %v766
  %v4355 = vunpack.c.h.b16 %v766
  %v4356 = vunpack.c.l.b16 %v767
  %v4357 = vunpack.c.h.b16 %v767
  %v4358 = vunpack.c.l.b16 %v768
  %v4359 = vunpack.c.h.b16 %v768
  %v4360 = vunpack.c.l.b16 %v769
  %v4361 = vunpack.c.h.b16 %v769
  %v4362 = vunpack.c.l.b16 %v770
  %v4363 = vunpack.c.h.b16 %v770
  %v4364 = vunpack.c.l.b16 %v771
  %v4365 = vunpack.c.h.b16 %v771
  %v4366 = vunpack.c.l.b16 %v772
  %v4367 = vunpack.c.h.b16 %v772
  %v4368 = vunpack.c.l.b16 %v773
  %v4369 = vunpack.c.h.b16 %v773
  %v4370 = vunpack.c.l.b16 %v774
  %v4371 = vunpack.c.h.b16 %v774
  %v4372 = vunpack.c.l.b16 %v775
  %v4373 = vunpack.c.h.b16 %v775
  %v4374 = vunpack.c.l.b16 %v776
  %v4375 = vunpack.c.h.b16 %v776
  %v4376 = vunpack.c.l.b16 %v777
  %v4377 = vunpack.c.h.b16 %v777
  %v4378 = vunpack.c.l.b16 %v778
  %v4379 = vunpack.c.h.b16 %v778
  %v4380 = vunpack.c.l.b16 %v779
  %v4381 = vunpack.c.h.b16 %v779
  %v4382 = vunpack.c.l.b16 %v780
  %v4383 = vunpack.c.h.b16 %v780
  %v4384 = vunpack.c.l.b16 %v781
  %v4385 = vunpack.c.h.b16 %v781
  %v4386 = vunpack.c.l.b16 %v782
  %v4387 = vunpack.c.h.b16 %v782
  %v4388 = vunpack.c.l.b16 %v783
  %v4389 = vunpack.c.h.b16 %v783
  %v4390 = vunpack.c.l.b16 %v784
  %v4391 = vunpack.c.h.b16 %v784
  %v4392 = vunpack.c.l.b16 %v785
  %v4393 = vunpack.c.h.b16 %v785
  %v4394 = vunpack.c.l.b16 %v786
  %v4395 = vunpack.c.h.b16 %v786
  %v4396 = vunpack.c.l.b16 %v787
  %v4397 = vunpack.c.h.b16 %v787
  %v4398 = vunpack.c.l.b16 %v788
  %v4399 = vunpack.c.h.b16 %v788
  %v4400 = vunpack.c.l.b16 %v789
  %v4401 = vunpack.c.h.b16 %v789
  %v4402 = vunpack.c.l.b16 %v790
  %v4403 = vunpack.c.h.b16 %v790
  %v4404 = vunpack.c.l.b16 %v791
  %v4405 = vunpack.c.h.b16 %v791
  %v4406 = vunpack.c.l.b16 %v792
  %v4407 = vunpack.c.h.b16 %v792
  %v4408 = vunpack.c.l.b16 %v793
  %v4409 = vunpack.c.h.b16 %v793
  %v4410 = vunpack.c.l.b16 %v794
  %v4411 = vunpack.c.h.b16 %v794
  %v4412 = vunpack.c.l.b16 %v795
  %v4413 = vunpack.c.h.b16 %v795
  %v4414 = vunpack.c.l.b16 %v796
  %v4415 = vunpack.c.h.b16 %v796
  %v4416 = vunpack.c.l.b16 %v797
  %v4417 = vunpack.c.h.b16 %v797
  %v4418 = vunpack.c.l.b16 %v798
  %v4419 = vunpack.c.h.b16 %v798
  %v4420 = vunpack.c.l.b16 %v799
  %v4421 = vunpack.c.h.b16 %v799
  %v4422 = vunpack.c.l.b16 %v800
  %v4423 = vunpack.c.h.b16 %v800
  %v4424 = vunpack.c.l.b16 %v801
  %v4425 = vunpack.c.h.b16 %v801
  %v4426 = vunpack.c.l.b16 %v802
  %v4427 = vunpack.c.h.b16 %v802
  %v4428 = vunpack.c.l.b16 %v803
  %v4429 = vunpack.c.h.b16 %v803
  %v4430 = vunpack.c.l.b16 %v804
  %v4431 = vunpack.c.h.b16 %v804
  %v4432 = vpack.c.b16 %v3672, %v3664
  %v4433 = vpack.c.b16 %v3673, %v3665
  %v4434 = vpack.c.b16 %v3674, %v3666
  %v4435 = vpack.c.b16 %v3675, %v3667
  %v4436 = vpack.c.b16 %v3676, %v3668
  %v4437 = vpack.c.b16 %v3677, %v3669
  %v4438 = vpack.c.b16 %v3678, %v3670
  %v4439 = vpack.c.b16 %v3679, %v3671
  %v4440 = vpack.c.b16 %v3688, %v3680
  %v4441 = vpack.c.b16 %v3689, %v3681
  %v4442 = vpack.c.b16 %v3690, %v3682
  %v4443 = vpack.c.b16 %v3691, %v3683
  %v4444 = vpack.c.b16 %v3692, %v3684
  %v4445 = vpack.c.b16 %v3693, %v3685
  %v4446 = vpack.c.b16 %v3694, %v3686
  %v4447 = vpack.c.b16 %v3695, %v3687
  %v4448 = vpack.c.b16 %v3704, %v3696
  %v4449 = vpack.c.b16 %v3705, %v3697
  %v4450 = vpack.c.b16 %v3706, %v3698
  %v4451 = vpack.c.b16 %v3707, %v3699
  %v4452 = vpack.c.b16 %v3708, %v3700
  %v4453 = vpack.c.b16 %v3709, %v3701
  %v4454 = vpack.c.b16 %v3710, %v3702
  %v4455 = vpack.c.b16 %v3711, %v3703
  %v4456 = vpack.c.b16 %v3720, %v3712
  %v4457 = vpack.c.b16 %v3721, %v3713
  %v4458 = vpack.c.b16 %v3722, %v3714
  %v4459 = vpack.c.b16 %v3723, %v3715
  %v4460 = vpack.c.b16 %v3724, %v3716
  %v4461 = vpack.c.b16 %v3725, %v3717
  %v4462 = vpack.c.b16 %v3726, %v3718
  %v4463 = vpack.c.b16 %v3727, %v3719
  %v4464 = vpack.c.b16 %v3736, %v3728
  %v4465 = vpack.c.b16 %v3737, %v3729
  %v4466 = vpack.c.b16 %v3738, %v3730
  %v4467 = vpack.c.b16 %v3739, %v3731
  %v4468 = vpack.c.b16 %v3740, %v3732
  %v4469 = vpack.c.b16 %v3741, %v3733
  %v4470 = vpack.c.b16 %v3742, %v3734
  %v4471 = vpack.c.b16 %v3743, %v3735
  %v4472 = vpack.c.b16 %v3752, %v3744
  %v4473 = vpack.c.b16 %v3753, %v3745
  %v4474 = vpack.c.b16 %v3754, %v3746
  %v4475 = vpack.c.b16 %v3755, %v3747
  %v4476 = vpack.c.b16 %v3756, %v3748
  %v4477 = vpack.c.b16 %v3757, %v3749
  %v4478 = vpack.c.b16 %v3758, %v3750
  %v4479 = vpack.c.b16 %v3759, %v3751
  %v4480 = vpack.c.b16 %v3768, %v3760
  %v4481 = vpack.c.b16 %v3769, %v3761
  %v4482 = vpack.c.b16 %v3770, %v3762
  %v4483 = vpack.c.b16 %v3771, %v3763
  %v4484 = vpack.c.b16 %v3772, %v3764
  %v4485 = vpack.c.b16 %v3773, %v3765
  %v4486 = vpack.c.b16 %v3774, %v3766
  %v4487 = vpack.c.b16 %v3775, %v3767
  %v4488 = vpack.c.b16 %v3784, %v3776
  %v4489 = vpack.c.b16 %v3785, %v3777
  %v4490 = vpack.c.b16 %v3786, %v3778
  %v4491 = vpack.c.b16 %v3787, %v3779
  %v4492 = vpack.c.b16 %v3788, %v3780
  %v4493 = vpack.c.b16 %v3789, %v3781
  %v4494 = vpack.c.b16 %v3790, %v3782
  %v4495 = vpack.c.b16 %v3791, %v3783
  %v4496 = vpack.c.b16 %v3800, %v3792
  %v4497 = vpack.c.b16 %v3801, %v3793
  %v4498 = vpack.c.b16 %v3802, %v3794
  %v4499 = vpack.c.b16 %v3803, %v3795
  %v4500 = vpack.c.b16 %v3804, %v3796
  %v4501 = vpack.c.b16 %v3805, %v3797
  %v4502 = vpack.c.b16 %v3806, %v3798
  %v4503 = vpack.c.b16 %v3807, %v3799
  %v4504 = vpack.c.b16 %v3816, %v3808
  %v4505 = vpack.c.b16 %v3817, %v3809
  %v4506 = vpack.c.b16 %v3818, %v3810
  %v4507 = vpack.c.b16 %v3819, %v3811
  %v4508 = vpack.c.b16 %v3820, %v3812
  %v4509 = vpack.c.b16 %v3821, %v3813
  %v4510 = vpack.c.b16 %v3822, %v3814
  %v4511 = vpack.c.b16 %v3823, %v3815
  %v4512 = vpack.c.b16 %v3832, %v3824
  %v4513 = vpack.c.b16 %v3833, %v3825
  %v4514 = vpack.c.b16 %v3834, %v3826
  %v4515 = vpack.c.b16 %v3835, %v3827
  %v4516 = vpack.c.b16 %v3836, %v3828
  %v4517 = vpack.c.b16 %v3837, %v3829
  %v4518 = vpack.c.b16 %v3838, %v3830
  %v4519 = vpack.c.b16 %v3839, %v3831
  %v4520 = vpack.c.b16 %v3848, %v3840
  %v4521 = vpack.c.b16 %v3849, %v3841
  %v4522 = vpack.c.b16 %v3850, %v3842
  %v4523 = vpack.c.b16 %v3851, %v3843
  %v4524 = vpack.c.b16 %v3852, %v3844
  %v4525 = vpack.c.b16 %v3853, %v3845
  %v4526 = vpack.c.b16 %v3854, %v3846
  %v4527 = vpack.c.b16 %v3855, %v3847
  %v4528 = vpack.c.b16 %v3864, %v3856
  %v4529 = vpack.c.b16 %v3865, %v3857
  %v4530 = vpack.c.b16 %v3866, %v3858
  %v4531 = vpack.c.b16 %v3867, %v3859
  %v4532 = vpack.c.b16 %v3868, %v3860
  %v4533 = vpack.c.b16 %v3869, %v3861
  %v4534 = vpack.c.b16 %v3870, %v3862
  %v4535 = vpack.c.b16 %v3871, %v3863
  %v4536 = vpack.c.b16 %v3880, %v3872
  %v4537 = vpack.c.b16 %v3881, %v3873
  %v4538 = vpack.c.b16 %v3882, %v3874
  %v4539 = vpack.c.b16 %v3883, %v3875
  %v4540 = vpack.c.b16 %v3884, %v3876
  %v4541 = vpack.c.b16 %v3885, %v3877
  %v4542 = vpack.c.b16 %v3886, %v3878
  %v4543 = vpack.c.b16 %v3887, %v3879
  %v4544 = vpack.c.b16 %v3896, %v3888
  %v4545 = vpack.c.b16 %v3897, %v3889
  %v4546 = vpack.c.b16 %v3898, %v3890
  %v4547 = vpack.c.b16 %v3899, %v3891
  %v4548 = vpack.c.b16 %v3900, %v3892
  %v4549 = vpack.c.b16 %v3901, %v3893
  %v4550 = vpack.c.b16 %v3902, %v3894
  %v4551 = vpack.c.b16 %v3903, %v3895
  %v4552 = vpack.c.b16 %v3912, %v3904
  %v4553 = vpack.c.b16 %v3913, %v3905
  %v4554 = vpack.c.b16 %v3914, %v3906
  %v4555 = vpack.c.b16 %v3915, %v3907
  %v4556 = vpack.c.b16 %v3916, %v3908
  %v4557 = vpack.c.b16 %v3917, %v3909
  %v4558 = vpack.c.b16 %v3918, %v3910
  %v4559 = vpack.c.b16 %v3919, %v3911
  %v4560 = vpack.c.b16 %v3928, %v3920
  %v4561 = vpack.c.b16 %v3929, %v3921
  %v4562 = vpack.c.b16 %v3930, %v3922
  %v4563 = vpack.c.b16 %v3931, %v3923
  %v4564 = vpack.c.b16 %v3932, %v3924
  %v4565 = vpack.c.b16 %v3933, %v3925
  %v4566 = vpack.c.b16 %v3934, %v3926
  %v4567 = vpack.c.b16 %v3935, %v3927
  %v4568 = vpack.c.b16 %v3944, %v3936
  %v4569 = vpack.c.b16 %v3945, %v3937
  %v4570 = vpack.c.b16 %v3946, %v3938
  %v4571 = vpack.c.b16 %v3947, %v3939
  %v4572 = vpack.c.b16 %v3948, %v3940
  %v4573 = vpack.c.b16 %v3949, %v3941
  %v4574 = vpack.c.b16 %v3950, %v3942
  %v4575 = vpack.c.b16 %v3951, %v3943
  %v4576 = vpack.c.b16 %v3960, %v3952
  %v4577 = vpack.c.b16 %v3961, %v3953
  %v4578 = vpack.c.b16 %v3962, %v3954
  %v4579 = vpack.c.b16 %v3963, %v3955
  %v4580 = vpack.c.b16 %v3964, %v3956
  %v4581 = vpack.c.b16 %v3965, %v3957
  %v4582 = vpack.c.b16 %v3966, %v3958
  %v4583 = vpack.c.b16 %v3967, %v3959
  %v4584 = vpack.c.b16 %v3976, %v3968
  %v4585 = vpack.c.b16 %v3977, %v3969
  %v4586 = vpack.c.b16 %v3978, %v3970
  %v4587 = vpack.c.b16 %v3979, %v3971
  %v4588 = vpack.c.b16 %v3980, %v3972
  %v4589 = vpack.c.b16 %v3981, %v3973
  %v4590 = vpack.c.b16 %v3982, %v3974
  %v4591 = vpack.c.b16 %v3983, %v3975
  %v4592 = vpack.c.b16 %v3992, %v3984
  %v4593 = vpack.c.b16 %v3993, %v3985
  %v4594 = vpack.c.b16 %v3994, %v3986
  %v4595 = vpack.c.b16 %v3995, %v3987
  %v4596 = vpack.c.b16 %v3996, %v3988
  %v4597 = vpack.c.b16 %v3997, %v3989
  %v4598 = vpack.c.b16 %v3998, %v3990
  %v4599 = vpack.c.b16 %v3999, %v3991
  %v4600 = vpack.c.b16 %v4008, %v4000
  %v4601 = vpack.c.b16 %v4009, %v4001
  %v4602 = vpack.c.b16 %v4010, %v4002
  %v4603 = vpack.c.b16 %v4011, %v4003
  %v4604 = vpack.c.b16 %v4012, %v4004
  %v4605 = vpack.c.b16 %v4013, %v4005
  %v4606 = vpack.c.b16 %v4014, %v4006
  %v4607 = vpack.c.b16 %v4015, %v4007
  %v4608 = vpack.c.b16 %v4024, %v4016
  %v4609 = vpack.c.b16 %v4025, %v4017
  %v4610 = vpack.c.b16 %v4026, %v4018
  %v4611 = vpack.c.b16 %v4027, %v4019
  %v4612 = vpack.c.b16 %v4028, %v4020
  %v4613 = vpack.c.b16 %v4029, %v4021
  %v4614 = vpack.c.b16 %v4030, %v4022
  %v4615 = vpack.c.b16 %v4031, %v4023
  %v4616 = vpack.c.b16 %v4040, %v4032
  %v4617 = vpack.c.b16 %v4041, %v4033
  %v4618 = vpack.c.b16 %v4042, %v4034
  %v4619 = vpack.c.b16 %v4043, %v4035
  %v4620 = vpack.c.b16 %v4044, %v4036
  %v4621 = vpack.c.b16 %v4045, %v4037
  %v4622 = vpack.c.b16 %v4046, %v4038
  %v4623 = vpack.c.b16 %v4047, %v4039
  %v4624 = vpack.c.b16 %v4056, %v4048
  %v4625 = vpack.c.b16 %v4057, %v4049
  %v4626 = vpack.c.b16 %v4058, %v4050
  %v4627 = vpack.c.b16 %v4059, %v4051
  %v4628 = vpack.c.b16 %v4060, %v4052
  %v4629 = vpack.c.b16 %v4061, %v4053
  %v4630 = vpack.c.b16 %v4062, %v4054
  %v4631 = vpack.c.b16 %v4063, %v4055
  %v4632 = vpack.c.b16 %v4072, %v4064
  %v4633 = vpack.c.b16 %v4073, %v4065
  %v4634 = vpack.c.b16 %v4074, %v4066
  %v4635 = vpack.c.b16 %v4075, %v4067
  %v4636 = vpack.c.b16 %v4076, %v4068
  %v4637 = vpack.c.b16 %v4077, %v4069
  %v4638 = vpack.c.b16 %v4078, %v4070
  %v4639 = vpack.c.b16 %v4079, %v4071
  %v4640 = vpack.c.b16 %v4088, %v4080
  %v4641 = vpack.c.b16 %v4089, %v4081
  %v4642 = vpack.c.b16 %v4090, %v4082
  %v4643 = vpack.c.b16 %v4091, %v4083
  %v4644 = vpack.c.b16 %v4092, %v4084
  %v4645 = vpack.c.b16 %v4093, %v4085
  %v4646 = vpack.c.b16 %v4094, %v4086
  %v4647 = vpack.c.b16 %v4095, %v4087
  %v4648 = vpack.c.b16 %v4104, %v4096
  %v4649 = vpack.c.b16 %v4105, %v4097
  %v4650 = vpack.c.b16 %v4106, %v4098
  %v4651 = vpack.c.b16 %v4107, %v4099
  %v4652 = vpack.c.b16 %v4108, %v4100
  %v4653 = vpack.c.b16 %v4109, %v4101
  %v4654 = vpack.c.b16 %v4110, %v4102
  %v4655 = vpack.c.b16 %v4111, %v4103
  %v4656 = vpack.c.b16 %v4120, %v4112
  %v4657 = vpack.c.b16 %v4121, %v4113
  %v4658 = vpack.c.b16 %v4122, %v4114
  %v4659 = vpack.c.b16 %v4123, %v4115
  %v4660 = vpack.c.b16 %v4124, %v4116
  %v4661 = vpack.c.b16 %v4125, %v4117
  %v4662 = vpack.c.b16 %v4126, %v4118
  %v4663 = vpack.c.b16 %v4127, %v4119
  %v4664 = vpack.c.b16 %v4136, %v4128
  %v4665 = vpack.c.b16 %v4137, %v4129
  %v4666 = vpack.c.b16 %v4138, %v4130
  %v4667 = vpack.c.b16 %v4139, %v4131
  %v4668 = vpack.c.b16 %v4140, %v4132
  %v4669 = vpack.c.b16 %v4141, %v4133
  %v4670 = vpack.c.b16 %v4142, %v4134
  %v4671 = vpack.c.b16 %v4143, %v4135
  %v4672 = vpack.c.b16 %v4152, %v4144
  %v4673 = vpack.c.b16 %v4153, %v4145
  %v4674 = vpack.c.b16 %v4154, %v4146
  %v4675 = vpack.c.b16 %v4155, %v4147
  %v4676 = vpack.c.b16 %v4156, %v4148
  %v4677 = vpack.c.b16 %v4157, %v4149
  %v4678 = vpack.c.b16 %v4158, %v4150
  %v4679 = vpack.c.b16 %v4159, %v4151
  %v4680 = vpack.c.b16 %v4168, %v4160
  %v4681 = vpack.c.b16 %v4169, %v4161
  %v4682 = vpack.c.b16 %v4170, %v4162
  %v4683 = vpack.c.b16 %v4171, %v4163
  %v4684 = vpack.c.b16 %v4172, %v4164
  %v4685 = vpack.c.b16 %v4173, %v4165
  %v4686 = vpack.c.b16 %v4174, %v4166
  %v4687 = vpack.c.b16 %v4175, %v4167
  %v4688 = vpack.c.b16 %v4184, %v4176
  %v4689 = vpack.c.b16 %v4185, %v4177
  %v4690 = vpack.c.b16 %v4186, %v4178
  %v4691 = vpack.c.b16 %v4187, %v4179
  %v4692 = vpack.c.b16 %v4188, %v4180
  %v4693 = vpack.c.b16 %v4189, %v4181
  %v4694 = vpack.c.b16 %v4190, %v4182
  %v4695 = vpack.c.b16 %v4191, %v4183
  %v4696 = vpack.c.b16 %v4200, %v4192
  %v4697 = vpack.c.b16 %v4201, %v4193
  %v4698 = vpack.c.b16 %v4202, %v4194
  %v4699 = vpack.c.b16 %v4203, %v4195
  %v4700 = vpack.c.b16 %v4204, %v4196
  %v4701 = vpack.c.b16 %v4205, %v4197
  %v4702 = vpack.c.b16 %v4206, %v4198
  %v4703 = vpack.c.b16 %v4207, %v4199
  %v4704 = vpack.c.b16 %v4216, %v4208
  %v4705 = vpack.c.b16 %v4217, %v4209
  %v4706 = vpack.c.b16 %v4218, %v4210
  %v4707 = vpack.c.b16 %v4219, %v4211
  %v4708 = vpack.c.b16 %v4220, %v4212
  %v4709 = vpack.c.b16 %v4221, %v4213
  %v4710 = vpack.c.b16 %v4222, %v4214
  %v4711 = vpack.c.b16 %v4223, %v4215
  %v4712 = vpack.c.b16 %v4232, %v4224
  %v4713 = vpack.c.b16 %v4233, %v4225
  %v4714 = vpack.c.b16 %v4234, %v4226
  %v4715 = vpack.c.b16 %v4235, %v4227
  %v4716 = vpack.c.b16 %v4236, %v4228
  %v4717 = vpack.c.b16 %v4237, %v4229
  %v4718 = vpack.c.b16 %v4238, %v4230
  %v4719 = vpack.c.b16 %v4239, %v4231
  %v4720 = vpack.c.b16 %v4248, %v4240
  %v4721 = vpack.c.b16 %v4249, %v4241
  %v4722 = vpack.c.b16 %v4250, %v4242
  %v4723 = vpack.c.b16 %v4251, %v4243
  %v4724 = vpack.c.b16 %v4252, %v4244
  %v4725 = vpack.c.b16 %v4253, %v4245
  %v4726 = vpack.c.b16 %v4254, %v4246
  %v4727 = vpack.c.b16 %v4255, %v4247
  %v4728 = vpack.c.b16 %v4264, %v4256
  %v4729 = vpack.c.b16 %v4265, %v4257
  %v4730 = vpack.c.b16 %v4266, %v4258
  %v4731 = vpack.c.b16 %v4267, %v4259
  %v4732 = vpack.c.b16 %v4268, %v4260
  %v4733 = vpack.c.b16 %v4269, %v4261
  %v4734 = vpack.c.b16 %v4270, %v4262
  %v4735 = vpack.c.b16 %v4271, %v4263
  %v4736 = vpack.c.b16 %v4280, %v4272
  %v4737 = vpack.c.b16 %v4281, %v4273
  %v4738 = vpack.c.b16 %v4282, %v4274
  %v4739 = vpack.c.b16 %v4283, %v4275
  %v4740 = vpack.c.b16 %v4284, %v4276
  %v4741 = vpack.c.b16 %v4285, %v4277
  %v4742 = vpack.c.b16 %v4286, %v4278
  %v4743 = vpack.c.b16 %v4287, %v4279
  %v4744 = vpack.c.b16 %v4296, %v4288
  %v4745 = vpack.c.b16 %v4297, %v4289
  %v4746 = vpack.c.b16 %v4298, %v4290
  %v4747 = vpack.c.b16 %v4299, %v4291
  %v4748 = vpack.c.b16 %v4300, %v4292
  %v4749 = vpack.c.b16 %v4301, %v4293
  %v4750 = vpack.c.b16 %v4302, %v4294
  %v4751 = vpack.c.b16 %v4303, %v4295
  %v4752 = vpack.c.b16 %v4312, %v4304
  %v4753 = vpack.c.b16 %v4313, %v4305
  %v4754 = vpack.c.b16 %v4314, %v4306
  %v4755 = vpack.c.b16 %v4315, %v4307
  %v4756 = vpack.c.b16 %v4316, %v4308
  %v4757 = vpack.c.b16 %v4317, %v4309
  %v4758 = vpack.c.b16 %v4318, %v4310
  %v4759 = vpack.c.b16 %v4319, %v4311
  %v4760 = vpack.c.b16 %v4328, %v4320
  %v4761 = vpack.c.b16 %v4329, %v4321
  %v4762 = vpack.c.b16 %v4330, %v4322
  %v4763 = vpack.c.b16 %v4331, %v4323
  %v4764 = vpack.c.b16 %v4332, %v4324
  %v4765 = vpack.c.b16 %v4333, %v4325
  %v4766 = vpack.c.b16 %v4334, %v4326
  %v4767 = vpack.c.b16 %v4335, %v4327
  %v4768 = vpack.c.b16 %v4344, %v4336
  %v4769 = vpack.c.b16 %v4345, %v4337
  %v4770 = vpack.c.b16 %v4346, %v4338
  %v4771 = vpack.c.b16 %v4347, %v4339
  %v4772 = vpack.c.b16 %v4348, %v4340
  %v4773 = vpack.c.b16 %v4349, %v4341
  %v4774 = vpack.c.b16 %v4350, %v4342
  %v4775 = vpack.c.b16 %v4351, %v4343
  %v4776 = vpack.c.b16 %v4360, %v4352
  %v4777 = vpack.c.b16 %v4361, %v4353
  %v4778 = vpack.c.b16 %v4362, %v4354
  %v4779 = vpack.c.b16 %v4363, %v4355
  %v4780 = vpack.c.b16 %v4364, %v4356
  %v4781 = vpack.c.b16 %v4365, %v4357
  %v4782 = vpack.c.b16 %v4366, %v4358
  %v4783 = vpack.c.b16 %v4367, %v4359
  %v4784 = vpack.c.b16 %v4376, %v4368
  %v4785 = vpack.c.b16 %v4377, %v4369
  %v4786 = vpack.c.b16 %v4378, %v4370
  %v4787 = vpack.c.b16 %v4379, %v4371
  %v4788 = vpack.c.b16 %v4380, %v4372
  %v4789 = vpack.c.b16 %v4381, %v4373
  %v4790 = vpack.c.b16 %v4382, %v4374
  %v4791 = vpack.c.b16 %v4383, %v4375
  %v4792 = vpack.c.b16 %v4392, %v4384
  %v4793 = vpack.c.b16 %v4393, %v4385
  %v4794 = vpack.c.b16 %v4394, %v4386
  %v4795 = vpack.c.b16 %v4395, %v4387
  %v4796 = vpack.c.b16 %v4396, %v4388
  %v4797 = vpack.c.b16 %v4397, %v4389
  %v4798 = vpack.c.b16 %v4398, %v4390
  %v4799 = vpack.c.b16 %v4399, %v4391
  %v4800 = vpack.c.b16 %v4408, %v4400
  %v4801 = vpack.c.b16 %v4409, %v4401
  %v4802 = vpack.c.b16 %v4410, %v4402
  %v4803 = vpack.c.b16 %v4411, %v4403
  %v4804 = vpack.c.b16 %v4412, %v4404
  %v4805 = vpack.c.b16 %v4413, %v4405
  %v4806 = vpack.c.b16 %v4414, %v4406
  %v4807 = vpack.c.b16 %v4415, %v4407
  %v4808 = vpack.c.b16 %v4424, %v4416
  %v4809 = vpack.c.b16 %v4425, %v4417
  %v4810 = vpack.c.b16 %v4426, %v4418
  %v4811 = vpack.c.b16 %v4427, %v4419
  %v4812 = vpack.c.b16 %v4428, %v4420
  %v4813 = vpack.c.b16 %v4429, %v4421
  %v4814 = vpack.c.b16 %v4430, %v4422
  %v4815 = vpack.c.b16 %v4431, %v4423
  %5200 = vmatprep.subr.bf16.mxu0 %v4433
  %5201 = vmatpush1.bf16.msra.mxu0 %v4432
  %5202 = vmatprep.subr.bf16.mxu0 %v4441
  %5203 = vmatpush1.bf16.msra.mxu0 %v4440
  %5204 = vmatprep.subr.bf16.mxu0 %v4449
  %5205 = vmatpush1.bf16.msra.mxu0 %v4448
  %5206 = vmatprep.subr.bf16.mxu0 %v4457
  %5207 = vmatpush1.bf16.msra.mxu0 %v4456
  %5208 = vmatprep.subr.bf16.mxu0 %v4465
  %5209 = vmatpush1.bf16.msra.mxu0 %v4464
  %5210 = vmatprep.subr.bf16.mxu0 %v4473
  %5211 = vmatpush1.bf16.msra.mxu0 %v4472
  %5212 = vmatprep.subr.bf16.mxu0 %v4481
  %5213 = vmatpush1.bf16.msra.mxu0 %v4480
  %5214 = vmatprep.subr.bf16.mxu0 %v4489
  %5215 = vmatpush1.bf16.msra.mxu0 %v4488
  %5216 = vmatprep.subr.bf16.mxu0 %v4497
  %5217 = vmatpush1.bf16.msra.mxu0 %v4496
  %5218 = vmatprep.subr.bf16.mxu0 %v4505
  %5219 = vmatpush1.bf16.msra.mxu0 %v4504
  %5220 = vmatprep.subr.bf16.mxu0 %v4513
  %5221 = vmatpush1.bf16.msra.mxu0 %v4512
  %5222 = vmatprep.subr.bf16.mxu0 %v4521
  %5223 = vmatpush1.bf16.msra.mxu0 %v4520
  %5224 = vmatprep.subr.bf16.mxu0 %v4529
  %5225 = vmatpush1.bf16.msra.mxu0 %v4528
  %5226 = vmatprep.subr.bf16.mxu0 %v4537
  %5227 = vmatpush1.bf16.msra.mxu0 %v4536
  %5228 = vmatprep.subr.bf16.mxu0 %v4545
  %5229 = vmatpush1.bf16.msra.mxu0 %v4544
  %5230 = vmatprep.subr.bf16.mxu0 %v4553
  %5231 = vmatpush1.bf16.msra.mxu0 %v4552
  %5232 = vmatprep.mubr.bf16.mxu0 %v857
  %5233 = vmatmul.mubr.bf16.gmra.mrb[0].mxu0 %v856
  %v5234 = vpop.f32.mrb[0].mxu0
  %v5235 = vadd.f32 %v810, %v5234
  %v5236 = vpop.f32.mrb[0].mxu0
  %v5237 = vadd.f32 %v814, %v5236
  %v5238 = vpop.f32.mrb[0].mxu0
  %v5239 = vpop.f32.mrb[0].mxu0
  %5240 = vdwg.mxu0
  %5241 = vmatprep.subr.bf16.mxu0 %v4561
  %5242 = vmatpush1.bf16.msra.mxu0 %v4560
  %5243 = vmatprep.subr.bf16.mxu0 %v4569
  %5244 = vmatpush1.bf16.msra.mxu0 %v4568
  %5245 = vmatprep.subr.bf16.mxu0 %v4577
  %5246 = vmatpush1.bf16.msra.mxu0 %v4576
  %5247 = vmatprep.subr.bf16.mxu0 %v4585
  %5248 = vmatpush1.bf16.msra.mxu0 %v4584
  %5249 = vmatprep.subr.bf16.mxu0 %v4593
  %5250 = vmatpush1.bf16.msra.mxu0 %v4592
  %5251 = vmatprep.subr.bf16.mxu0 %v4601
  %5252 = vmatpush1.bf16.msra.mxu0 %v4600
  %5253 = vmatprep.subr.bf16.mxu0 %v4609
  %5254 = vmatpush1.bf16.msra.mxu0 %v4608
  %5255 = vmatprep.subr.bf16.mxu0 %v4617
  %5256 = vmatpush1.bf16.msra.mxu0 %v4616
  %5257 = vmatprep.subr.bf16.mxu0 %v4625
  %5258 = vmatpush1.bf16.msra.mxu0 %v4624
  %5259 = vmatprep.subr.bf16.mxu0 %v4633
  %5260 = vmatpush1.bf16.msra.mxu0 %v4632
  %5261 = vmatprep.subr.bf16.mxu0 %v4641
  %5262 = vmatpush1.bf16.msra.mxu0 %v4640
  %5263 = vmatprep.subr.bf16.mxu0 %v4649
  %5264 = vmatpush1.bf16.msra.mxu0 %v4648
  %5265 = vmatprep.subr.bf16.mxu0 %v4657
  %5266 = vmatpush1.bf16.msra.mxu0 %v4656
  %5267 = vmatprep.subr.bf16.mxu0 %v4665
  %5268 = vmatpush1.bf16.msra.mxu0 %v4664
  %5269 = vmatprep.subr.bf16.mxu0 %v4673
  %5270 = vmatpush1.bf16.msra.mxu0 %v4672
  %5271 = vmatprep.subr.bf16.mxu0 %v4681
  %5272 = vmatpush1.bf16.msra.mxu0 %v4680
  %5273 = vmatprep.mubr.bf16.mxu0 %v859
  %5274 = vmatmul.mubr.bf16.gmra.mrb[0].mxu0 %v858
  %v5275 = vpop.f32.mrb[0].mxu0
  %v5276 = vadd.f32 %v5235, %v5275
  %v5277 = vpop.f32.mrb[0].mxu0
  %v5278 = vadd.f32 %v5237, %v5277
  %v5279 = vpop.f32.mrb[0].mxu0
  %v5280 = vpop.f32.mrb[0].mxu0
  %5281 = vdwg.mxu0
  %5282 = vmatprep.subr.bf16.mxu0 %v4689
  %5283 = vmatpush1.bf16.msra.mxu0 %v4688
  %5284 = vmatprep.subr.bf16.mxu0 %v4697
  %5285 = vmatpush1.bf16.msra.mxu0 %v4696
  %5286 = vmatprep.subr.bf16.mxu0 %v4705
  %5287 = vmatpush1.bf16.msra.mxu0 %v4704
  %5288 = vmatprep.subr.bf16.mxu0 %v4713
  %5289 = vmatpush1.bf16.msra.mxu0 %v4712
  %5290 = vmatprep.subr.bf16.mxu0 %v4721
  %5291 = vmatpush1.bf16.msra.mxu0 %v4720
  %5292 = vmatprep.subr.bf16.mxu0 %v4729
  %5293 = vmatpush1.bf16.msra.mxu0 %v4728
  %5294 = vmatprep.subr.bf16.mxu0 %v4737
  %5295 = vmatpush1.bf16.msra.mxu0 %v4736
  %5296 = vmatprep.subr.bf16.mxu0 %v4745
  %5297 = vmatpush1.bf16.msra.mxu0 %v4744
  %5298 = vmatprep.subr.bf16.mxu0 %v4753
  %5299 = vmatpush1.bf16.msra.mxu0 %v4752
  %5300 = vmatprep.subr.bf16.mxu0 %v4761
  %5301 = vmatpush1.bf16.msra.mxu0 %v4760
  %5302 = vmatprep.subr.bf16.mxu0 %v4769
  %5303 = vmatpush1.bf16.msra.mxu0 %v4768
  %5304 = vmatprep.subr.bf16.mxu0 %v4777
  %5305 = vmatpush1.bf16.msra.mxu0 %v4776
  %5306 = vmatprep.subr.bf16.mxu0 %v4785
  %5307 = vmatpush1.bf16.msra.mxu0 %v4784
  %5308 = vmatprep.subr.bf16.mxu0 %v4793
  %5309 = vmatpush1.bf16.msra.mxu0 %v4792
  %5310 = vmatprep.subr.bf16.mxu0 %v4801
  %5311 = vmatpush1.bf16.msra.mxu0 %v4800
  %5312 = vmatprep.subr.bf16.mxu0 %v4809
  %5313 = vmatpush1.bf16.msra.mxu0 %v4808
  %5314 = vmatprep.mubr.bf16.mxu0 %v861
  %5315 = vmatmul.mubr.bf16.gmra.mrb[0].mxu0 %v860
  %v5316 = vpop.f32.mrb[0].mxu0
  %v5317 = vadd.f32 %v5276, %v5316
  %v5318 = vpop.f32.mrb[0].mxu0
  %v5319 = vadd.f32 %v5278, %v5318
  %v5320 = vpop.f32.mrb[0].mxu0
  %v5321 = vpop.f32.mrb[0].mxu0
  %5322 = vdwg.mxu0
  %5323 = vmatprep.subr.bf16.mxu0 %v4435
  %5324 = vmatpush1.bf16.msra.mxu0 %v4434
  %5325 = vmatprep.subr.bf16.mxu0 %v4443
  %5326 = vmatpush1.bf16.msra.mxu0 %v4442
  %5327 = vmatprep.subr.bf16.mxu0 %v4451
  %5328 = vmatpush1.bf16.msra.mxu0 %v4450
  %5329 = vmatprep.subr.bf16.mxu0 %v4459
  %5330 = vmatpush1.bf16.msra.mxu0 %v4458
  %5331 = vmatprep.subr.bf16.mxu0 %v4467
  %5332 = vmatpush1.bf16.msra.mxu0 %v4466
  %5333 = vmatprep.subr.bf16.mxu0 %v4475
  %5334 = vmatpush1.bf16.msra.mxu0 %v4474
  %5335 = vmatprep.subr.bf16.mxu0 %v4483
  %5336 = vmatpush1.bf16.msra.mxu0 %v4482
  %5337 = vmatprep.subr.bf16.mxu0 %v4491
  %5338 = vmatpush1.bf16.msra.mxu0 %v4490
  %5339 = vmatprep.subr.bf16.mxu0 %v4499
  %5340 = vmatpush1.bf16.msra.mxu0 %v4498
  %5341 = vmatprep.subr.bf16.mxu0 %v4507
  %5342 = vmatpush1.bf16.msra.mxu0 %v4506
  %5343 = vmatprep.subr.bf16.mxu0 %v4515
  %5344 = vmatpush1.bf16.msra.mxu0 %v4514
  %5345 = vmatprep.subr.bf16.mxu0 %v4523
  %5346 = vmatpush1.bf16.msra.mxu0 %v4522
  %5347 = vmatprep.subr.bf16.mxu0 %v4531
  %5348 = vmatpush1.bf16.msra.mxu0 %v4530
  %5349 = vmatprep.subr.bf16.mxu0 %v4539
  %5350 = vmatpush1.bf16.msra.mxu0 %v4538
  %5351 = vmatprep.subr.bf16.mxu0 %v4547
  %5352 = vmatpush1.bf16.msra.mxu0 %v4546
  %5353 = vmatprep.subr.bf16.mxu0 %v4555
  %5354 = vmatpush1.bf16.msra.mxu0 %v4554
  %5355 = vmatprep.mubr.bf16.mxu0 %v857
  %5356 = vmatmul.mubr.bf16.gmra.mrb[0].mxu0 %v856
  %v5357 = vpop.f32.mrb[0].mxu0
  %v5358 = vadd.f32 %v818, %v5357
  %v5359 = vpop.f32.mrb[0].mxu0
  %v5360 = vadd.f32 %v822, %v5359
  %v5361 = vpop.f32.mrb[0].mxu0
  %v5362 = vpop.f32.mrb[0].mxu0
  %5363 = vdwg.mxu0
  %5364 = vmatprep.subr.bf16.mxu0 %v4563
  %5365 = vmatpush1.bf16.msra.mxu0 %v4562
  %5366 = vmatprep.subr.bf16.mxu0 %v4571
  %5367 = vmatpush1.bf16.msra.mxu0 %v4570
  %5368 = vmatprep.subr.bf16.mxu0 %v4579
  %5369 = vmatpush1.bf16.msra.mxu0 %v4578
  %5370 = vmatprep.subr.bf16.mxu0 %v4587
  %5371 = vmatpush1.bf16.msra.mxu0 %v4586
  %5372 = vmatprep.subr.bf16.mxu0 %v4595
  %5373 = vmatpush1.bf16.msra.mxu0 %v4594
  %5374 = vmatprep.subr.bf16.mxu0 %v4603
  %5375 = vmatpush1.bf16.msra.mxu0 %v4602
  %5376 = vmatprep.subr.bf16.mxu0 %v4611
  %5377 = vmatpush1.bf16.msra.mxu0 %v4610
  %5378 = vmatprep.subr.bf16.mxu0 %v4619
  %5379 = vmatpush1.bf16.msra.mxu0 %v4618
  %5380 = vmatprep.subr.bf16.mxu0 %v4627
  %5381 = vmatpush1.bf16.msra.mxu0 %v4626
  %5382 = vmatprep.subr.bf16.mxu0 %v4635
  %5383 = vmatpush1.bf16.msra.mxu0 %v4634
  %5384 = vmatprep.subr.bf16.mxu0 %v4643
  %5385 = vmatpush1.bf16.msra.mxu0 %v4642
  %5386 = vmatprep.subr.bf16.mxu0 %v4651
  %5387 = vmatpush1.bf16.msra.mxu0 %v4650
  %5388 = vmatprep.subr.bf16.mxu0 %v4659
  %5389 = vmatpush1.bf16.msra.mxu0 %v4658
  %5390 = vmatprep.subr.bf16.mxu0 %v4667
  %5391 = vmatpush1.bf16.msra.mxu0 %v4666
  %5392 = vmatprep.subr.bf16.mxu0 %v4675
  %5393 = vmatpush1.bf16.msra.mxu0 %v4674
  %5394 = vmatprep.subr.bf16.mxu0 %v4683
  %5395 = vmatpush1.bf16.msra.mxu0 %v4682
  %5396 = vmatprep.mubr.bf16.mxu0 %v859
  %5397 = vmatmul.mubr.bf16.gmra.mrb[0].mxu0 %v858
  %v5398 = vpop.f32.mrb[0].mxu0
  %v5399 = vadd.f32 %v5358, %v5398
  %v5400 = vpop.f32.mrb[0].mxu0
  %v5401 = vadd.f32 %v5360, %v5400
  %v5402 = vpop.f32.mrb[0].mxu0
  %v5403 = vpop.f32.mrb[0].mxu0
  %5404 = vdwg.mxu0
  %5405 = vmatprep.subr.bf16.mxu0 %v4691
  %5406 = vmatpush1.bf16.msra.mxu0 %v4690
  %5407 = vmatprep.subr.bf16.mxu0 %v4699
  %5408 = vmatpush1.bf16.msra.mxu0 %v4698
  %5409 = vmatprep.subr.bf16.mxu0 %v4707
  %5410 = vmatpush1.bf16.msra.mxu0 %v4706
  %5411 = vmatprep.subr.bf16.mxu0 %v4715
  %5412 = vmatpush1.bf16.msra.mxu0 %v4714
  %5413 = vmatprep.subr.bf16.mxu0 %v4723
  %5414 = vmatpush1.bf16.msra.mxu0 %v4722
  %5415 = vmatprep.subr.bf16.mxu0 %v4731
  %5416 = vmatpush1.bf16.msra.mxu0 %v4730
  %5417 = vmatprep.subr.bf16.mxu0 %v4739
  %5418 = vmatpush1.bf16.msra.mxu0 %v4738
  %5419 = vmatprep.subr.bf16.mxu0 %v4747
  %5420 = vmatpush1.bf16.msra.mxu0 %v4746
  %5421 = vmatprep.subr.bf16.mxu0 %v4755
  %5422 = vmatpush1.bf16.msra.mxu0 %v4754
  %5423 = vmatprep.subr.bf16.mxu0 %v4763
  %5424 = vmatpush1.bf16.msra.mxu0 %v4762
  %5425 = vmatprep.subr.bf16.mxu0 %v4771
  %5426 = vmatpush1.bf16.msra.mxu0 %v4770
  %5427 = vmatprep.subr.bf16.mxu0 %v4779
  %5428 = vmatpush1.bf16.msra.mxu0 %v4778
  %5429 = vmatprep.subr.bf16.mxu0 %v4787
  %5430 = vmatpush1.bf16.msra.mxu0 %v4786
  %5431 = vmatprep.subr.bf16.mxu0 %v4795
  %5432 = vmatpush1.bf16.msra.mxu0 %v4794
  %5433 = vmatprep.subr.bf16.mxu0 %v4803
  %5434 = vmatpush1.bf16.msra.mxu0 %v4802
  %5435 = vmatprep.subr.bf16.mxu0 %v4811
  %5436 = vmatpush1.bf16.msra.mxu0 %v4810
  %5437 = vmatprep.mubr.bf16.mxu0 %v861
  %5438 = vmatmul.mubr.bf16.gmra.mrb[0].mxu0 %v860
  %v5439 = vpop.f32.mrb[0].mxu0
  %v5440 = vadd.f32 %v5399, %v5439
  %v5441 = vpop.f32.mrb[0].mxu0
  %v5442 = vadd.f32 %v5401, %v5441
  %v5443 = vpop.f32.mrb[0].mxu0
  %v5444 = vpop.f32.mrb[0].mxu0
  %5445 = vdwg.mxu0
  %5446 = vmatprep.subr.bf16.mxu0 %v4437
  %5447 = vmatpush1.bf16.msra.mxu0 %v4436
  %5448 = vmatprep.subr.bf16.mxu0 %v4445
  %5449 = vmatpush1.bf16.msra.mxu0 %v4444
  %5450 = vmatprep.subr.bf16.mxu0 %v4453
  %5451 = vmatpush1.bf16.msra.mxu0 %v4452
  %5452 = vmatprep.subr.bf16.mxu0 %v4461
  %5453 = vmatpush1.bf16.msra.mxu0 %v4460
  %5454 = vmatprep.subr.bf16.mxu0 %v4469
  %5455 = vmatpush1.bf16.msra.mxu0 %v4468
  %5456 = vmatprep.subr.bf16.mxu0 %v4477
  %5457 = vmatpush1.bf16.msra.mxu0 %v4476
  %5458 = vmatprep.subr.bf16.mxu0 %v4485
  %5459 = vmatpush1.bf16.msra.mxu0 %v4484
  %5460 = vmatprep.subr.bf16.mxu0 %v4493
  %5461 = vmatpush1.bf16.msra.mxu0 %v4492
  %5462 = vmatprep.subr.bf16.mxu0 %v4501
  %5463 = vmatpush1.bf16.msra.mxu0 %v4500
  %5464 = vmatprep.subr.bf16.mxu0 %v4509
  %5465 = vmatpush1.bf16.msra.mxu0 %v4508
  %5466 = vmatprep.subr.bf16.mxu0 %v4517
  %5467 = vmatpush1.bf16.msra.mxu0 %v4516
  %5468 = vmatprep.subr.bf16.mxu0 %v4525
  %5469 = vmatpush1.bf16.msra.mxu0 %v4524
  %5470 = vmatprep.subr.bf16.mxu0 %v4533
  %5471 = vmatpush1.bf16.msra.mxu0 %v4532
  %5472 = vmatprep.subr.bf16.mxu0 %v4541
  %5473 = vmatpush1.bf16.msra.mxu0 %v4540
  %5474 = vmatprep.subr.bf16.mxu0 %v4549
  %5475 = vmatpush1.bf16.msra.mxu0 %v4548
  %5476 = vmatprep.subr.bf16.mxu0 %v4557
  %5477 = vmatpush1.bf16.msra.mxu0 %v4556
  %5478 = vmatprep.mubr.bf16.mxu0 %v857
  %5479 = vmatmul.mubr.bf16.gmra.mrb[0].mxu0 %v856
  %v5480 = vpop.f32.mrb[0].mxu0
  %v5481 = vadd.f32 %v826, %v5480
  %v5482 = vpop.f32.mrb[0].mxu0
  %v5483 = vadd.f32 %v830, %v5482
  %v5484 = vpop.f32.mrb[0].mxu0
  %v5485 = vpop.f32.mrb[0].mxu0
  %5486 = vdwg.mxu0
  %5487 = vmatprep.subr.bf16.mxu0 %v4565
  %5488 = vmatpush1.bf16.msra.mxu0 %v4564
  %5489 = vmatprep.subr.bf16.mxu0 %v4573
  %5490 = vmatpush1.bf16.msra.mxu0 %v4572
  %5491 = vmatprep.subr.bf16.mxu0 %v4581
  %5492 = vmatpush1.bf16.msra.mxu0 %v4580
  %5493 = vmatprep.subr.bf16.mxu0 %v4589
  %5494 = vmatpush1.bf16.msra.mxu0 %v4588
  %5495 = vmatprep.subr.bf16.mxu0 %v4597
  %5496 = vmatpush1.bf16.msra.mxu0 %v4596
  %5497 = vmatprep.subr.bf16.mxu0 %v4605
  %5498 = vmatpush1.bf16.msra.mxu0 %v4604
  %5499 = vmatprep.subr.bf16.mxu0 %v4613
  %5500 = vmatpush1.bf16.msra.mxu0 %v4612
  %5501 = vmatprep.subr.bf16.mxu0 %v4621
  %5502 = vmatpush1.bf16.msra.mxu0 %v4620
  %5503 = vmatprep.subr.bf16.mxu0 %v4629
  %5504 = vmatpush1.bf16.msra.mxu0 %v4628
  %5505 = vmatprep.subr.bf16.mxu0 %v4637
  %5506 = vmatpush1.bf16.msra.mxu0 %v4636
  %5507 = vmatprep.subr.bf16.mxu0 %v4645
  %5508 = vmatpush1.bf16.msra.mxu0 %v4644
  %5509 = vmatprep.subr.bf16.mxu0 %v4653
  %5510 = vmatpush1.bf16.msra.mxu0 %v4652
  %5511 = vmatprep.subr.bf16.mxu0 %v4661
  %5512 = vmatpush1.bf16.msra.mxu0 %v4660
  %5513 = vmatprep.subr.bf16.mxu0 %v4669
  %5514 = vmatpush1.bf16.msra.mxu0 %v4668
  %5515 = vmatprep.subr.bf16.mxu0 %v4677
  %5516 = vmatpush1.bf16.msra.mxu0 %v4676
  %5517 = vmatprep.subr.bf16.mxu0 %v4685
  %5518 = vmatpush1.bf16.msra.mxu0 %v4684
  %5519 = vmatprep.mubr.bf16.mxu0 %v859
  %5520 = vmatmul.mubr.bf16.gmra.mrb[0].mxu0 %v858
  %v5521 = vpop.f32.mrb[0].mxu0
  %v5522 = vadd.f32 %v5481, %v5521
  %v5523 = vpop.f32.mrb[0].mxu0
  %v5524 = vadd.f32 %v5483, %v5523
  %v5525 = vpop.f32.mrb[0].mxu0
  %v5526 = vpop.f32.mrb[0].mxu0
  %5527 = vdwg.mxu0
  %5528 = vmatprep.subr.bf16.mxu0 %v4693
  %5529 = vmatpush1.bf16.msra.mxu0 %v4692
  %5530 = vmatprep.subr.bf16.mxu0 %v4701
  %5531 = vmatpush1.bf16.msra.mxu0 %v4700
  %5532 = vmatprep.subr.bf16.mxu0 %v4709
  %5533 = vmatpush1.bf16.msra.mxu0 %v4708
  %5534 = vmatprep.subr.bf16.mxu0 %v4717
  %5535 = vmatpush1.bf16.msra.mxu0 %v4716
  %5536 = vmatprep.subr.bf16.mxu0 %v4725
  %5537 = vmatpush1.bf16.msra.mxu0 %v4724
  %5538 = vmatprep.subr.bf16.mxu0 %v4733
  %5539 = vmatpush1.bf16.msra.mxu0 %v4732
  %5540 = vmatprep.subr.bf16.mxu0 %v4741
  %5541 = vmatpush1.bf16.msra.mxu0 %v4740
  %5542 = vmatprep.subr.bf16.mxu0 %v4749
  %5543 = vmatpush1.bf16.msra.mxu0 %v4748
  %5544 = vmatprep.subr.bf16.mxu0 %v4757
  %5545 = vmatpush1.bf16.msra.mxu0 %v4756
  %5546 = vmatprep.subr.bf16.mxu0 %v4765
  %5547 = vmatpush1.bf16.msra.mxu0 %v4764
  %5548 = vmatprep.subr.bf16.mxu0 %v4773
  %5549 = vmatpush1.bf16.msra.mxu0 %v4772
  %5550 = vmatprep.subr.bf16.mxu0 %v4781
  %5551 = vmatpush1.bf16.msra.mxu0 %v4780
  %5552 = vmatprep.subr.bf16.mxu0 %v4789
  %5553 = vmatpush1.bf16.msra.mxu0 %v4788
  %5554 = vmatprep.subr.bf16.mxu0 %v4797
  %5555 = vmatpush1.bf16.msra.mxu0 %v4796
  %5556 = vmatprep.subr.bf16.mxu0 %v4805
  %5557 = vmatpush1.bf16.msra.mxu0 %v4804
  %5558 = vmatprep.subr.bf16.mxu0 %v4813
  %5559 = vmatpush1.bf16.msra.mxu0 %v4812
  %5560 = vmatprep.mubr.bf16.mxu0 %v861
  %5561 = vmatmul.mubr.bf16.gmra.mrb[0].mxu0 %v860
  %v5562 = vpop.f32.mrb[0].mxu0
  %v5563 = vadd.f32 %v5522, %v5562
  %v5564 = vpop.f32.mrb[0].mxu0
  %v5565 = vadd.f32 %v5524, %v5564
  %v5566 = vpop.f32.mrb[0].mxu0
  %v5567 = vpop.f32.mrb[0].mxu0
  %5568 = vdwg.mxu0
  %5569 = vmatprep.subr.bf16.mxu0 %v4439
  %5570 = vmatpush1.bf16.msra.mxu0 %v4438
  %5571 = vmatprep.subr.bf16.mxu0 %v4447
  %5572 = vmatpush1.bf16.msra.mxu0 %v4446
  %5573 = vmatprep.subr.bf16.mxu0 %v4455
  %5574 = vmatpush1.bf16.msra.mxu0 %v4454
  %5575 = vmatprep.subr.bf16.mxu0 %v4463
  %5576 = vmatpush1.bf16.msra.mxu0 %v4462
  %5577 = vmatprep.subr.bf16.mxu0 %v4471
  %5578 = vmatpush1.bf16.msra.mxu0 %v4470
  %5579 = vmatprep.subr.bf16.mxu0 %v4479
  %5580 = vmatpush1.bf16.msra.mxu0 %v4478
  %5581 = vmatprep.subr.bf16.mxu0 %v4487
  %5582 = vmatpush1.bf16.msra.mxu0 %v4486
  %5583 = vmatprep.subr.bf16.mxu0 %v4495
  %5584 = vmatpush1.bf16.msra.mxu0 %v4494
  %5585 = vmatprep.subr.bf16.mxu0 %v4503
  %5586 = vmatpush1.bf16.msra.mxu0 %v4502
  %5587 = vmatprep.subr.bf16.mxu0 %v4511
  %5588 = vmatpush1.bf16.msra.mxu0 %v4510
  %5589 = vmatprep.subr.bf16.mxu0 %v4519
  %5590 = vmatpush1.bf16.msra.mxu0 %v4518
  %5591 = vmatprep.subr.bf16.mxu0 %v4527
  %5592 = vmatpush1.bf16.msra.mxu0 %v4526
  %5593 = vmatprep.subr.bf16.mxu0 %v4535
  %5594 = vmatpush1.bf16.msra.mxu0 %v4534
  %5595 = vmatprep.subr.bf16.mxu0 %v4543
  %5596 = vmatpush1.bf16.msra.mxu0 %v4542
  %5597 = vmatprep.subr.bf16.mxu0 %v4551
  %5598 = vmatpush1.bf16.msra.mxu0 %v4550
  %5599 = vmatprep.subr.bf16.mxu0 %v4559
  %5600 = vmatpush1.bf16.msra.mxu0 %v4558
  %5601 = vmatprep.mubr.bf16.mxu0 %v857
  %5602 = vmatmul.mubr.bf16.gmra.mrb[0].mxu0 %v856
  %v5603 = vpop.f32.mrb[0].mxu0
  %v5604 = vadd.f32 %v834, %v5603
  %v5605 = vpop.f32.mrb[0].mxu0
  %v5606 = vadd.f32 %v838, %v5605
  %v5607 = vpop.f32.mrb[0].mxu0
  %v5608 = vpop.f32.mrb[0].mxu0
  %5609 = vdwg.mxu0
  %5610 = vmatprep.subr.bf16.mxu0 %v4567
  %5611 = vmatpush1.bf16.msra.mxu0 %v4566
  %5612 = vmatprep.subr.bf16.mxu0 %v4575
  %5613 = vmatpush1.bf16.msra.mxu0 %v4574
  %5614 = vmatprep.subr.bf16.mxu0 %v4583
  %5615 = vmatpush1.bf16.msra.mxu0 %v4582
  %5616 = vmatprep.subr.bf16.mxu0 %v4591
  %5617 = vmatpush1.bf16.msra.mxu0 %v4590
  %5618 = vmatprep.subr.bf16.mxu0 %v4599
  %5619 = vmatpush1.bf16.msra.mxu0 %v4598
  %5620 = vmatprep.subr.bf16.mxu0 %v4607
  %5621 = vmatpush1.bf16.msra.mxu0 %v4606
  %5622 = vmatprep.subr.bf16.mxu0 %v4615
  %5623 = vmatpush1.bf16.msra.mxu0 %v4614
  %5624 = vmatprep.subr.bf16.mxu0 %v4623
  %5625 = vmatpush1.bf16.msra.mxu0 %v4622
  %5626 = vmatprep.subr.bf16.mxu0 %v4631
  %5627 = vmatpush1.bf16.msra.mxu0 %v4630
  %5628 = vmatprep.subr.bf16.mxu0 %v4639
  %5629 = vmatpush1.bf16.msra.mxu0 %v4638
  %5630 = vmatprep.subr.bf16.mxu0 %v4647
  %5631 = vmatpush1.bf16.msra.mxu0 %v4646
  %5632 = vmatprep.subr.bf16.mxu0 %v4655
  %5633 = vmatpush1.bf16.msra.mxu0 %v4654
  %5634 = vmatprep.subr.bf16.mxu0 %v4663
  %5635 = vmatpush1.bf16.msra.mxu0 %v4662
  %5636 = vmatprep.subr.bf16.mxu0 %v4671
  %5637 = vmatpush1.bf16.msra.mxu0 %v4670
  %5638 = vmatprep.subr.bf16.mxu0 %v4679
  %5639 = vmatpush1.bf16.msra.mxu0 %v4678
  %5640 = vmatprep.subr.bf16.mxu0 %v4687
  %5641 = vmatpush1.bf16.msra.mxu0 %v4686
  %5642 = vmatprep.mubr.bf16.mxu0 %v859
  %5643 = vmatmul.mubr.bf16.gmra.mrb[0].mxu0 %v858
  %v5644 = vpop.f32.mrb[0].mxu0
  %v5645 = vadd.f32 %v5604, %v5644
  %v5646 = vpop.f32.mrb[0].mxu0
  %v5647 = vadd.f32 %v5606, %v5646
  %v5648 = vpop.f32.mrb[0].mxu0
  %v5649 = vpop.f32.mrb[0].mxu0
  %5650 = vdwg.mxu0
  %5651 = vmatprep.subr.bf16.mxu0 %v4695
  %5652 = vmatpush1.bf16.msra.mxu0 %v4694
  %5653 = vmatprep.subr.bf16.mxu0 %v4703
  %5654 = vmatpush1.bf16.msra.mxu0 %v4702
  %5655 = vmatprep.subr.bf16.mxu0 %v4711
  %5656 = vmatpush1.bf16.msra.mxu0 %v4710
  %5657 = vmatprep.subr.bf16.mxu0 %v4719
  %5658 = vmatpush1.bf16.msra.mxu0 %v4718
  %5659 = vmatprep.subr.bf16.mxu0 %v4727
  %5660 = vmatpush1.bf16.msra.mxu0 %v4726
  %5661 = vmatprep.subr.bf16.mxu0 %v4735
  %5662 = vmatpush1.bf16.msra.mxu0 %v4734
  %5663 = vmatprep.subr.bf16.mxu0 %v4743
  %5664 = vmatpush1.bf16.msra.mxu0 %v4742
  %5665 = vmatprep.subr.bf16.mxu0 %v4751
  %5666 = vmatpush1.bf16.msra.mxu0 %v4750
  %5667 = vmatprep.subr.bf16.mxu0 %v4759
  %5668 = vmatpush1.bf16.msra.mxu0 %v4758
  %5669 = vmatprep.subr.bf16.mxu0 %v4767
  %5670 = vmatpush1.bf16.msra.mxu0 %v4766
  %5671 = vmatprep.subr.bf16.mxu0 %v4775
  %5672 = vmatpush1.bf16.msra.mxu0 %v4774
  %5673 = vmatprep.subr.bf16.mxu0 %v4783
  %5674 = vmatpush1.bf16.msra.mxu0 %v4782
  %5675 = vmatprep.subr.bf16.mxu0 %v4791
  %5676 = vmatpush1.bf16.msra.mxu0 %v4790
  %5677 = vmatprep.subr.bf16.mxu0 %v4799
  %5678 = vmatpush1.bf16.msra.mxu0 %v4798
  %5679 = vmatprep.subr.bf16.mxu0 %v4807
  %5680 = vmatpush1.bf16.msra.mxu0 %v4806
  %5681 = vmatprep.subr.bf16.mxu0 %v4815
  %5682 = vmatpush1.bf16.msra.mxu0 %v4814
  %5683 = vmatprep.mubr.bf16.mxu0 %v861
  %5684 = vmatmul.mubr.bf16.gmra.mrb[0].mxu0 %v860
  %v5685 = vpop.f32.mrb[0].mxu0
  %v5686 = vadd.f32 %v5645, %v5685
  %v5687 = vpop.f32.mrb[0].mxu0
  %v5688 = vadd.f32 %v5647, %v5687
  %v5689 = vpop.f32.mrb[0].mxu0
  %v5690 = vpop.f32.mrb[0].mxu0
  %5691 = vdwg.mxu0
  %v5692 = vmul.f32 %v2905, 0.01
  %v5693 = vmul.f32 %v2907, 0.01
  %v5694 = vmul.f32 %v3028, 0.01
  %v5695 = vmul.f32 %v3030, 0.01
  %v5696 = vmul.f32 %v3151, 0.01
  %v5697 = vmul.f32 %v3153, 0.01
  %v5698 = vmul.f32 %v3274, 0.01
  %v5699 = vmul.f32 %v3276, 0.01
  %v5700 = vsub.f32 %v2905, 1.0
  %v5701 = vsub.f32 %v2907, 1.0
  %v5702 = vsub.f32 %v3028, 1.0
  %v5703 = vsub.f32 %v3030, 1.0
  %v5704 = vsub.f32 %v3151, 1.0
  %v5705 = vsub.f32 %v3153, 1.0
  %v5706 = vsub.f32 %v3274, 1.0
  %v5707 = vsub.f32 %v3276, 1.0
  %v5708 = vmul.f32 %v5700, 0.01
  %v5709 = vmul.f32 %v5701, 0.01
  %v5710 = vmul.f32 %v5702, 0.01
  %v5711 = vmul.f32 %v5703, 0.01
  %v5712 = vmul.f32 %v5704, 0.01
  %v5713 = vmul.f32 %v5705, 0.01
  %v5714 = vmul.f32 %v5706, 0.01
  %v5715 = vmul.f32 %v5707, 0.01
  %v5716 = vadd.f32 %v5708, 1.0
  %v5717 = vadd.f32 %v5709, 1.0
  %v5718 = vadd.f32 %v5710, 1.0
  %v5719 = vadd.f32 %v5711, 1.0
  %v5720 = vadd.f32 %v5712, 1.0
  %v5721 = vadd.f32 %v5713, 1.0
  %v5722 = vadd.f32 %v5714, 1.0
  %v5723 = vadd.f32 %v5715, 1.0
  %v5724 = vmul.f32 %v2905, %v2905
  %v5725 = vmul.f32 %v2907, %v2907
  %v5726 = vmul.f32 %v3028, %v3028
  %v5727 = vmul.f32 %v3030, %v3030
  %v5728 = vmul.f32 %v3151, %v3151
  %v5729 = vmul.f32 %v3153, %v3153
  %v5730 = vmul.f32 %v3274, %v3274
  %v5731 = vmul.f32 %v3276, %v3276
  %vm5732 = vcmp.lt.f32.partialorder %v2905, 0.0
  %vm5733 = vcmp.lt.f32.partialorder %v2907, 0.0
  %vm5734 = vcmp.lt.f32.partialorder %v3028, 0.0
  %vm5735 = vcmp.lt.f32.partialorder %v3030, 0.0
  %vm5736 = vcmp.lt.f32.partialorder %v3151, 0.0
  %vm5737 = vcmp.lt.f32.partialorder %v3153, 0.0
  %vm5738 = vcmp.lt.f32.partialorder %v3274, 0.0
  %vm5739 = vcmp.lt.f32.partialorder %v3276, 0.0
  %v5740 = vsel %vm5732, %v5692, %v5724
  %v5741 = vsel %vm5733, %v5693, %v5725
  %v5742 = vsel %vm5734, %v5694, %v5726
  %v5743 = vsel %vm5735, %v5695, %v5727
  %v5744 = vsel %vm5736, %v5696, %v5728
  %v5745 = vsel %vm5737, %v5697, %v5729
  %v5746 = vsel %vm5738, %v5698, %v5730
  %v5747 = vsel %vm5739, %v5699, %v5731
  %vm5748 = vcmp.gt.f32.partialorder %v2905, 1.0
  %vm5749 = vcmp.gt.f32.partialorder %v2907, 1.0
  %vm5750 = vcmp.gt.f32.partialorder %v3028, 1.0
  %vm5751 = vcmp.gt.f32.partialorder %v3030, 1.0
  %vm5752 = vcmp.gt.f32.partialorder %v3151, 1.0
  %vm5753 = vcmp.gt.f32.partialorder %v3153, 1.0
  %vm5754 = vcmp.gt.f32.partialorder %v3274, 1.0
  %vm5755 = vcmp.gt.f32.partialorder %v3276, 1.0
  %v5756 = vsel %vm5748, %v5716, %v5740
  %v5757 = vsel %vm5749, %v5717, %v5741
  %v5758 = vsel %vm5750, %v5718, %v5742
  %v5759 = vsel %vm5751, %v5719, %v5743
  %v5760 = vsel %vm5752, %v5720, %v5744
  %v5761 = vsel %vm5753, %v5721, %v5745
  %v5762 = vsel %vm5754, %v5722, %v5746
  %v5763 = vsel %vm5755, %v5723, %v5747
  %v5764 = vmul.f32 %v5317, 0.01
  %v5765 = vmul.f32 %v5319, 0.01
  %v5766 = vmul.f32 %v5440, 0.01
  %v5767 = vmul.f32 %v5442, 0.01
  %v5768 = vmul.f32 %v5563, 0.01
  %v5769 = vmul.f32 %v5565, 0.01
  %v5770 = vmul.f32 %v5686, 0.01
  %v5771 = vmul.f32 %v5688, 0.01
  %v5772 = vsub.f32 %v5317, 1.0
  %v5773 = vsub.f32 %v5319, 1.0
  %v5774 = vsub.f32 %v5440, 1.0
  %v5775 = vsub.f32 %v5442, 1.0
  %v5776 = vsub.f32 %v5563, 1.0
  %v5777 = vsub.f32 %v5565, 1.0
  %v5778 = vsub.f32 %v5686, 1.0
  %v5779 = vsub.f32 %v5688, 1.0
  %v5780 = vmul.f32 %v5772, 0.01
  %v5781 = vmul.f32 %v5773, 0.01
  %v5782 = vmul.f32 %v5774, 0.01
  %v5783 = vmul.f32 %v5775, 0.01
  %v5784 = vmul.f32 %v5776, 0.01
  %v5785 = vmul.f32 %v5777, 0.01
  %v5786 = vmul.f32 %v5778, 0.01
  %v5787 = vmul.f32 %v5779, 0.01
  %v5788 = vadd.f32 %v5780, 1.0
  %v5789 = vadd.f32 %v5781, 1.0
  %v5790 = vadd.f32 %v5782, 1.0
  %v5791 = vadd.f32 %v5783, 1.0
  %v5792 = vadd.f32 %v5784, 1.0
  %v5793 = vadd.f32 %v5785, 1.0
  %v5794 = vadd.f32 %v5786, 1.0
  %v5795 = vadd.f32 %v5787, 1.0
  %v5796 = vmul.f32 %v5317, %v5317
  %v5797 = vmul.f32 %v5319, %v5319
  %v5798 = vmul.f32 %v5440, %v5440
  %v5799 = vmul.f32 %v5442, %v5442
  %v5800 = vmul.f32 %v5563, %v5563
  %v5801 = vmul.f32 %v5565, %v5565
  %v5802 = vmul.f32 %v5686, %v5686
  %v5803 = vmul.f32 %v5688, %v5688
  %vm5804 = vcmp.lt.f32.partialorder %v5317, 0.0
  %vm5805 = vcmp.lt.f32.partialorder %v5319, 0.0
  %vm5806 = vcmp.lt.f32.partialorder %v5440, 0.0
  %vm5807 = vcmp.lt.f32.partialorder %v5442, 0.0
  %vm5808 = vcmp.lt.f32.partialorder %v5563, 0.0
  %vm5809 = vcmp.lt.f32.partialorder %v5565, 0.0
  %vm5810 = vcmp.lt.f32.partialorder %v5686, 0.0
  %vm5811 = vcmp.lt.f32.partialorder %v5688, 0.0
  %v5812 = vsel %vm5804, %v5764, %v5796
  %v5813 = vsel %vm5805, %v5765, %v5797
  %v5814 = vsel %vm5806, %v5766, %v5798
  %v5815 = vsel %vm5807, %v5767, %v5799
  %v5816 = vsel %vm5808, %v5768, %v5800
  %v5817 = vsel %vm5809, %v5769, %v5801
  %v5818 = vsel %vm5810, %v5770, %v5802
  %v5819 = vsel %vm5811, %v5771, %v5803
  %vm5820 = vcmp.gt.f32.partialorder %v5317, 1.0
  %vm5821 = vcmp.gt.f32.partialorder %v5319, 1.0
  %vm5822 = vcmp.gt.f32.partialorder %v5440, 1.0
  %vm5823 = vcmp.gt.f32.partialorder %v5442, 1.0
  %vm5824 = vcmp.gt.f32.partialorder %v5563, 1.0
  %vm5825 = vcmp.gt.f32.partialorder %v5565, 1.0
  %vm5826 = vcmp.gt.f32.partialorder %v5686, 1.0
  %vm5827 = vcmp.gt.f32.partialorder %v5688, 1.0
  %v5828 = vsel %vm5820, %v5788, %v5812
  %v5829 = vsel %vm5821, %v5789, %v5813
  %v5830 = vsel %vm5822, %v5790, %v5814
  %v5831 = vsel %vm5823, %v5791, %v5815
  %v5832 = vsel %vm5824, %v5792, %v5816
  %v5833 = vsel %vm5825, %v5793, %v5817
  %v5834 = vsel %vm5826, %v5794, %v5818
  %v5835 = vsel %vm5827, %v5795, %v5819
  %v5836 = vld [vmem:[%s6] sm:$0xff]
  %v5837 = vld [vmem:[%s6 + $0x8] sm:$0xff]
  %v5838 = vld [vmem:[%s6 + $0x10] sm:$0xff]
  %v5839 = vld [vmem:[%s6 + $0x18] sm:$0xff]
  %v5840 = vld [vmem:[%s6 + $0x20] sm:$0xff]
  %v5841 = vld [vmem:[%s6 + $0x28] sm:$0xff]
  %v5842 = vld [vmem:[%s6 + $0x30] sm:$0xff]
  %v5843 = vld [vmem:[%s6 + $0x38] sm:$0xff]
  %v5844 = vld [vmem:[%s6 + $0x40] sm:$0xff]
  %v5845 = vld [vmem:[%s6 + $0x48] sm:$0xff]
  %v5846 = vld [vmem:[%s6 + $0x50] sm:$0xff]
  %v5847 = vld [vmem:[%s6 + $0x58] sm:$0xff]
  %v5848 = vld [vmem:[%s6 + $0x60] sm:$0xff]
  %v5849 = vld [vmem:[%s6 + $0x68] sm:$0xff]
  %v5850 = vld [vmem:[%s6 + $0x70] sm:$0xff]
  %v5851 = vld [vmem:[%s6 + $0x78] sm:$0xff]
  %v5852 = vld [vmem:[%s6 + $0x80] sm:$0xff]
  %v5853 = vld [vmem:[%s6 + $0x88] sm:$0xff]
  %v5854 = vld [vmem:[%s6 + $0x90] sm:$0xff]
  %v5855 = vld [vmem:[%s6 + $0x98] sm:$0xff]
  %v5856 = vld [vmem:[%s6 + $0xa0] sm:$0xff]
  %v5857 = vld [vmem:[%s6 + $0xa8] sm:$0xff]
  %v5858 = vld [vmem:[%s6 + $0xb0] sm:$0xff]
  %v5859 = vld [vmem:[%s6 + $0xb8] sm:$0xff]
  %v5860 = vld [vmem:[%s6 + $0xc0] sm:$0xff]
  %v5861 = vld [vmem:[%s6 + $0xc8] sm:$0xff]
  %v5862 = vld [vmem:[%s6 + $0xd0] sm:$0xff]
  %v5863 = vld [vmem:[%s6 + $0xd8] sm:$0xff]
  %v5864 = vld [vmem:[%s6 + $0xe0] sm:$0xff]
  %v5865 = vld [vmem:[%s6 + $0xe8] sm:$0xff]
  %v5866 = vld [vmem:[%s6 + $0xf0] sm:$0xff]
  %v5867 = vld [vmem:[%s6 + $0xf8] sm:$0xff]
  %v5868 = vld [vmem:[%s6 + $0x100] sm:$0xff]
  %v5869 = vld [vmem:[%s6 + $0x108] sm:$0xff]
  %v5870 = vld [vmem:[%s6 + $0x110] sm:$0xff]
  %v5871 = vld [vmem:[%s6 + $0x118] sm:$0xff]
  %v5872 = vld [vmem:[%s6 + $0x120] sm:$0xff]
  %v5873 = vld [vmem:[%s6 + $0x128] sm:$0xff]
  %v5874 = vld [vmem:[%s6 + $0x130] sm:$0xff]
  %v5875 = vld [vmem:[%s6 + $0x138] sm:$0xff]
  %v5876 = vld [vmem:[%s6 + $0x140] sm:$0xff]
  %v5877 = vld [vmem:[%s6 + $0x148] sm:$0xff]
  %v5878 = vld [vmem:[%s6 + $0x150] sm:$0xff]
  %v5879 = vld [vmem:[%s6 + $0x158] sm:$0xff]
  %v5880 = vld [vmem:[%s6 + $0x160] sm:$0xff]
  %v5881 = vld [vmem:[%s6 + $0x168] sm:$0xff]
  %v5882 = vld [vmem:[%s6 + $0x170] sm:$0xff]
  %v5883 = vld [vmem:[%s6 + $0x178] sm:$0xff]
  %v5884 = vld [vmem:[%s6 + $0x180] sm:$0xff]
  %v5885 = vld [vmem:[%s6 + $0x188] sm:$0xff]
  %v5886 = vld [vmem:[%s6 + $0x190] sm:$0xff]
  %v5887 = vld [vmem:[%s6 + $0x198] sm:$0xff]
  %v5888 = vld [vmem:[%s6 + $0x1a0] sm:$0xff]
  %v5889 = vld [vmem:[%s6 + $0x1a8] sm:$0xff]
  %v5890 = vld [vmem:[%s6 + $0x1b0] sm:$0xff]
  %v5891 = vld [vmem:[%s6 + $0x1b8] sm:$0xff]
  %v5892 = vld [vmem:[%s6 + $0x1c0] sm:$0xff]
  %v5893 = vld [vmem:[%s6 + $0x1c8] sm:$0xff]
  %v5894 = vld [vmem:[%s6 + $0x1d0] sm:$0xff]
  %v5895 = vld [vmem:[%s6 + $0x1d8] sm:$0xff]
  %v5896 = vld [vmem:[%s6 + $0x1e0] sm:$0xff]
  %v5897 = vld [vmem:[%s6 + $0x1e8] sm:$0xff]
  %v5898 = vld [vmem:[%s6 + $0x1f0] sm:$0xff]
  %v5899 = vld [vmem:[%s6 + $0x1f8] sm:$0xff]
  %v5900 = vld [vmem:[%s6 + $0x200] sm:$0xff]
  %v5901 = vld [vmem:[%s6 + $0x208] sm:$0xff]
  %v5902 = vld [vmem:[%s6 + $0x210] sm:$0xff]
  %v5903 = vld [vmem:[%s6 + $0x218] sm:$0xff]
  %v5904 = vld [vmem:[%s6 + $0x220] sm:$0xff]
  %v5905 = vld [vmem:[%s6 + $0x228] sm:$0xff]
  %v5906 = vld [vmem:[%s6 + $0x230] sm:$0xff]
  %v5907 = vld [vmem:[%s6 + $0x238] sm:$0xff]
  %v5908 = vld [vmem:[%s6 + $0x240] sm:$0xff]
  %v5909 = vld [vmem:[%s6 + $0x248] sm:$0xff]
  %v5910 = vld [vmem:[%s6 + $0x250] sm:$0xff]
  %v5911 = vld [vmem:[%s6 + $0x258] sm:$0xff]
  %v5912 = vld [vmem:[%s6 + $0x260] sm:$0xff]
  %v5913 = vld [vmem:[%s6 + $0x268] sm:$0xff]
  %v5914 = vld [vmem:[%s6 + $0x270] sm:$0xff]
  %v5915 = vld [vmem:[%s6 + $0x278] sm:$0xff]
  %v5916 = vld [vmem:[%s6 + $0x280] sm:$0xff]
  %v5917 = vld [vmem:[%s6 + $0x288] sm:$0xff]
  %v5918 = vld [vmem:[%s6 + $0x290] sm:$0xff]
  %v5919 = vld [vmem:[%s6 + $0x298] sm:$0xff]
  %v5920 = vld [vmem:[%s6 + $0x2a0] sm:$0xff]
  %v5921 = vld [vmem:[%s6 + $0x2a8] sm:$0xff]
  %v5922 = vld [vmem:[%s6 + $0x2b0] sm:$0xff]
  %v5923 = vld [vmem:[%s6 + $0x2b8] sm:$0xff]
  %v5924 = vld [vmem:[%s6 + $0x2c0] sm:$0xff]
  %v5925 = vld [vmem:[%s6 + $0x2c8] sm:$0xff]
  %v5926 = vld [vmem:[%s6 + $0x2d0] sm:$0xff]
  %v5927 = vld [vmem:[%s6 + $0x2d8] sm:$0xff]
  %v5928 = vld [vmem:[%s6 + $0x2e0] sm:$0xff]
  %v5929 = vld [vmem:[%s6 + $0x2e8] sm:$0xff]
  %v5930 = vld [vmem:[%s6 + $0x2f0] sm:$0xff]
  %v5931 = vld [vmem:[%s6 + $0x2f8] sm:$0xff]
  %v5932 = vld [vmem:[%s6 + $0x300] sm:$0xff]
  %v5933 = vld [vmem:[%s6 + $0x308] sm:$0xff]
  %v5934 = vld [vmem:[%s6 + $0x310] sm:$0xff]
  %v5935 = vld [vmem:[%s6 + $0x318] sm:$0xff]
  %v5936 = vld [vmem:[%s6 + $0x320] sm:$0xff]
  %v5937 = vld [vmem:[%s6 + $0x328] sm:$0xff]
  %v5938 = vld [vmem:[%s6 + $0x330] sm:$0xff]
  %v5939 = vld [vmem:[%s6 + $0x338] sm:$0xff]
  %v5940 = vld [vmem:[%s6 + $0x340] sm:$0xff]
  %v5941 = vld [vmem:[%s6 + $0x348] sm:$0xff]
  %v5942 = vld [vmem:[%s6 + $0x350] sm:$0xff]
  %v5943 = vld [vmem:[%s6 + $0x358] sm:$0xff]
  %v5944 = vld [vmem:[%s6 + $0x360] sm:$0xff]
  %v5945 = vld [vmem:[%s6 + $0x368] sm:$0xff]
  %v5946 = vld [vmem:[%s6 + $0x370] sm:$0xff]
  %v5947 = vld [vmem:[%s6 + $0x378] sm:$0xff]
  %v5948 = vld [vmem:[%s6 + $0x380] sm:$0xff]
  %v5949 = vld [vmem:[%s6 + $0x388] sm:$0xff]
  %v5950 = vld [vmem:[%s6 + $0x390] sm:$0xff]
  %v5951 = vld [vmem:[%s6 + $0x398] sm:$0xff]
  %v5952 = vld [vmem:[%s6 + $0x3a0] sm:$0xff]
  %v5953 = vld [vmem:[%s6 + $0x3a8] sm:$0xff]
  %v5954 = vld [vmem:[%s6 + $0x3b0] sm:$0xff]
  %v5955 = vld [vmem:[%s6 + $0x3b8] sm:$0xff]
  %v5956 = vld [vmem:[%s6 + $0x3c0] sm:$0xff]
  %v5957 = vld [vmem:[%s6 + $0x3c8] sm:$0xff]
  %v5958 = vld [vmem:[%s6 + $0x3d0] sm:$0xff]
  %v5959 = vld [vmem:[%s6 + $0x3d8] sm:$0xff]
  %v5960 = vld [vmem:[%s6 + $0x3e0] sm:$0xff]
  %v5961 = vld [vmem:[%s6 + $0x3e8] sm:$0xff]
  %v5962 = vld [vmem:[%s6 + $0x3f0] sm:$0xff]
  %v5963 = vld [vmem:[%s6 + $0x3f8] sm:$0xff]
  %v5964 = vld [vmem:[%s7] sm:$0xff]
  %v5965 = vld [vmem:[%s7 + $0x8] sm:$0xff]
  %v5966 = vld [vmem:[%s7 + $0x10] sm:$0xff]
  %v5967 = vld [vmem:[%s7 + $0x18] sm:$0xff]
  %v5968 = vld [vmem:[%s7 + $0x20] sm:$0xff]
  %v5969 = vld [vmem:[%s7 + $0x28] sm:$0xff]
  %v5970 = vld [vmem:[%s7 + $0x30] sm:$0xff]
  %v5971 = vld [vmem:[%s7 + $0x38] sm:$0xff]
  %v5972 = vld [vmem:[%s7 + $0x40] sm:$0xff]
  %v5973 = vld [vmem:[%s7 + $0x48] sm:$0xff]
  %v5974 = vld [vmem:[%s7 + $0x50] sm:$0xff]
  %v5975 = vld [vmem:[%s7 + $0x58] sm:$0xff]
  %v5976 = vld [vmem:[%s7 + $0x60] sm:$0xff]
  %v5977 = vld [vmem:[%s7 + $0x68] sm:$0xff]
  %v5978 = vld [vmem:[%s7 + $0x70] sm:$0xff]
  %v5979 = vld [vmem:[%s7 + $0x78] sm:$0xff]
  %v5980 = vld [vmem:[%s7 + $0x80] sm:$0xff]
  %v5981 = vld [vmem:[%s7 + $0x88] sm:$0xff]
  %v5982 = vld [vmem:[%s7 + $0x90] sm:$0xff]
  %v5983 = vld [vmem:[%s7 + $0x98] sm:$0xff]
  %v5984 = vld [vmem:[%s7 + $0xa0] sm:$0xff]
  %v5985 = vld [vmem:[%s7 + $0xa8] sm:$0xff]
  %v5986 = vld [vmem:[%s7 + $0xb0] sm:$0xff]
  %v5987 = vld [vmem:[%s7 + $0xb8] sm:$0xff]
  %v5988 = vld [vmem:[%s7 + $0xc0] sm:$0xff]
  %v5989 = vld [vmem:[%s7 + $0xc8] sm:$0xff]
  %v5990 = vld [vmem:[%s7 + $0xd0] sm:$0xff]
  %v5991 = vld [vmem:[%s7 + $0xd8] sm:$0xff]
  %v5992 = vld [vmem:[%s7 + $0xe0] sm:$0xff]
  %v5993 = vld [vmem:[%s7 + $0xe8] sm:$0xff]
  %v5994 = vld [vmem:[%s7 + $0xf0] sm:$0xff]
  %v5995 = vld [vmem:[%s7 + $0xf8] sm:$0xff]
  %v5996 = vld [vmem:[%s7 + $0x100] sm:$0xff]
  %v5997 = vld [vmem:[%s7 + $0x108] sm:$0xff]
  %v5998 = vld [vmem:[%s7 + $0x110] sm:$0xff]
  %v5999 = vld [vmem:[%s7 + $0x118] sm:$0xff]
  %v6000 = vld [vmem:[%s7 + $0x120] sm:$0xff]
  %v6001 = vld [vmem:[%s7 + $0x128] sm:$0xff]
  %v6002 = vld [vmem:[%s7 + $0x130] sm:$0xff]
  %v6003 = vld [vmem:[%s7 + $0x138] sm:$0xff]
  %v6004 = vld [vmem:[%s7 + $0x140] sm:$0xff]
  %v6005 = vld [vmem:[%s7 + $0x148] sm:$0xff]
  %v6006 = vld [vmem:[%s7 + $0x150] sm:$0xff]
  %v6007 = vld [vmem:[%s7 + $0x158] sm:$0xff]
  %v6008 = vld [vmem:[%s7 + $0x160] sm:$0xff]
  %v6009 = vld [vmem:[%s7 + $0x168] sm:$0xff]
  %v6010 = vld [vmem:[%s7 + $0x170] sm:$0xff]
  %v6011 = vld [vmem:[%s7 + $0x178] sm:$0xff]
  %v6012 = vld [vmem:[%s7 + $0x180] sm:$0xff]
  %v6013 = vld [vmem:[%s7 + $0x188] sm:$0xff]
  %v6014 = vld [vmem:[%s7 + $0x190] sm:$0xff]
  %v6015 = vld [vmem:[%s7 + $0x198] sm:$0xff]
  %v6016 = vld [vmem:[%s7 + $0x1a0] sm:$0xff]
  %v6017 = vld [vmem:[%s7 + $0x1a8] sm:$0xff]
  %v6018 = vld [vmem:[%s7 + $0x1b0] sm:$0xff]
  %v6019 = vld [vmem:[%s7 + $0x1b8] sm:$0xff]
  %v6020 = vld [vmem:[%s7 + $0x1c0] sm:$0xff]
  %v6021 = vld [vmem:[%s7 + $0x1c8] sm:$0xff]
  %v6022 = vld [vmem:[%s7 + $0x1d0] sm:$0xff]
  %v6023 = vld [vmem:[%s7 + $0x1d8] sm:$0xff]
  %v6024 = vld [vmem:[%s7 + $0x1e0] sm:$0xff]
  %v6025 = vld [vmem:[%s7 + $0x1e8] sm:$0xff]
  %v6026 = vld [vmem:[%s7 + $0x1f0] sm:$0xff]
  %v6027 = vld [vmem:[%s7 + $0x1f8] sm:$0xff]
  %v6028 = vld [vmem:[%s7 + $0x200] sm:$0xff]
  %v6029 = vld [vmem:[%s7 + $0x208] sm:$0xff]
  %v6030 = vld [vmem:[%s7 + $0x210] sm:$0xff]
  %v6031 = vld [vmem:[%s7 + $0x218] sm:$0xff]
  %v6032 = vld [vmem:[%s7 + $0x220] sm:$0xff]
  %v6033 = vld [vmem:[%s7 + $0x228] sm:$0xff]
  %v6034 = vld [vmem:[%s7 + $0x230] sm:$0xff]
  %v6035 = vld [vmem:[%s7 + $0x238] sm:$0xff]
  %v6036 = vld [vmem:[%s7 + $0x240] sm:$0xff]
  %v6037 = vld [vmem:[%s7 + $0x248] sm:$0xff]
  %v6038 = vld [vmem:[%s7 + $0x250] sm:$0xff]
  %v6039 = vld [vmem:[%s7 + $0x258] sm:$0xff]
  %v6040 = vld [vmem:[%s7 + $0x260] sm:$0xff]
  %v6041 = vld [vmem:[%s7 + $0x268] sm:$0xff]
  %v6042 = vld [vmem:[%s7 + $0x270] sm:$0xff]
  %v6043 = vld [vmem:[%s7 + $0x278] sm:$0xff]
  %v6044 = vld [vmem:[%s7 + $0x280] sm:$0xff]
  %v6045 = vld [vmem:[%s7 + $0x288] sm:$0xff]
  %v6046 = vld [vmem:[%s7 + $0x290] sm:$0xff]
  %v6047 = vld [vmem:[%s7 + $0x298] sm:$0xff]
  %v6048 = vld [vmem:[%s7 + $0x2a0] sm:$0xff]
  %v6049 = vld [vmem:[%s7 + $0x2a8] sm:$0xff]
  %v6050 = vld [vmem:[%s7 + $0x2b0] sm:$0xff]
  %v6051 = vld [vmem:[%s7 + $0x2b8] sm:$0xff]
  %v6052 = vld [vmem:[%s7 + $0x2c0] sm:$0xff]
  %v6053 = vld [vmem:[%s7 + $0x2c8] sm:$0xff]
  %v6054 = vld [vmem:[%s7 + $0x2d0] sm:$0xff]
  %v6055 = vld [vmem:[%s7 + $0x2d8] sm:$0xff]
  %v6056 = vld [vmem:[%s7 + $0x2e0] sm:$0xff]
  %v6057 = vld [vmem:[%s7 + $0x2e8] sm:$0xff]
  %v6058 = vld [vmem:[%s7 + $0x2f0] sm:$0xff]
  %v6059 = vld [vmem:[%s7 + $0x2f8] sm:$0xff]
  %v6060 = vld [vmem:[%s7 + $0x300] sm:$0xff]
  %v6061 = vld [vmem:[%s7 + $0x308] sm:$0xff]
  %v6062 = vld [vmem:[%s7 + $0x310] sm:$0xff]
  %v6063 = vld [vmem:[%s7 + $0x318] sm:$0xff]
  %v6064 = vld [vmem:[%s7 + $0x320] sm:$0xff]
  %v6065 = vld [vmem:[%s7 + $0x328] sm:$0xff]
  %v6066 = vld [vmem:[%s7 + $0x330] sm:$0xff]
  %v6067 = vld [vmem:[%s7 + $0x338] sm:$0xff]
  %v6068 = vld [vmem:[%s7 + $0x340] sm:$0xff]
  %v6069 = vld [vmem:[%s7 + $0x348] sm:$0xff]
  %v6070 = vld [vmem:[%s7 + $0x350] sm:$0xff]
  %v6071 = vld [vmem:[%s7 + $0x358] sm:$0xff]
  %v6072 = vld [vmem:[%s7 + $0x360] sm:$0xff]
  %v6073 = vld [vmem:[%s7 + $0x368] sm:$0xff]
  %v6074 = vld [vmem:[%s7 + $0x370] sm:$0xff]
  %v6075 = vld [vmem:[%s7 + $0x378] sm:$0xff]
  %v6076 = vld [vmem:[%s7 + $0x380] sm:$0xff]
  %v6077 = vld [vmem:[%s7 + $0x388] sm:$0xff]
  %v6078 = vld [vmem:[%s7 + $0x390] sm:$0xff]
  %v6079 = vld [vmem:[%s7 + $0x398] sm:$0xff]
  %v6080 = vld [vmem:[%s7 + $0x3a0] sm:$0xff]
  %v6081 = vld [vmem:[%s7 + $0x3a8] sm:$0xff]
  %v6082 = vld [vmem:[%s7 + $0x3b0] sm:$0xff]
  %v6083 = vld [vmem:[%s7 + $0x3b8] sm:$0xff]
  %v6084 = vld [vmem:[%s7 + $0x3c0] sm:$0xff]
  %v6085 = vld [vmem:[%s7 + $0x3c8] sm:$0xff]
  %v6086 = vld [vmem:[%s7 + $0x3d0] sm:$0xff]
  %v6087 = vld [vmem:[%s7 + $0x3d8] sm:$0xff]
  %v6088 = vld [vmem:[%s7 + $0x3e0] sm:$0xff]
  %v6089 = vld [vmem:[%s7 + $0x3e8] sm:$0xff]
  %v6090 = vld [vmem:[%s7 + $0x3f0] sm:$0xff]
  %v6091 = vld [vmem:[%s7 + $0x3f8] sm:$0xff]
  %v6092 = vld [vmem:[%s8] sm:$0x1]
  %6093 = vmatprep.subr.mxu0 0.0
  %6094 = vmatpush1.msra.mxu0 %v5964
  %6095 = vmatprep.subr.mxu0 0.0
  %6096 = vmatpush1.msra.mxu0 %v5965
  %6097 = vmatprep.subr.mxu0 0.0
  %6098 = vmatpush1.msra.mxu0 %v5966
  %6099 = vmatprep.subr.mxu0 0.0
  %6100 = vmatpush1.msra.mxu0 %v5967
  %6101 = vmatprep.subr.mxu0 0.0
  %6102 = vmatpush1.msra.mxu0 %v5968
  %6103 = vmatprep.subr.mxu0 0.0
  %6104 = vmatpush1.msra.mxu0 %v5969
  %6105 = vmatprep.subr.mxu0 0.0
  %6106 = vmatpush1.msra.mxu0 %v5970
  %6107 = vmatprep.subr.mxu0 0.0
  %6108 = vmatpush1.msra.mxu0 %v5971
  %6109 = vmatprep.subr.mxu0 0.0
  %6110 = vmatpush1.msra.mxu0 %v5972
  %6111 = vmatprep.subr.mxu0 0.0
  %6112 = vmatpush1.msra.mxu0 %v5973
  %6113 = vmatprep.subr.mxu0 0.0
  %6114 = vmatpush1.msra.mxu0 %v5974
  %6115 = vmatprep.subr.mxu0 0.0
  %6116 = vmatpush1.msra.mxu0 %v5975
  %6117 = vmatprep.subr.mxu0 0.0
  %6118 = vmatpush1.msra.mxu0 %v5976
  %6119 = vmatprep.subr.mxu0 0.0
  %6120 = vmatpush1.msra.mxu0 %v5977
  %6121 = vmatprep.subr.mxu0 0.0
  %6122 = vmatpush1.msra.mxu0 %v5978
  %6123 = vmatprep.subr.mxu0 0.0
  %6124 = vmatpush1.msra.mxu0 %v5979
  %6125 = vmatprep.subr.mxu0 0.0
  %6126 = vmatpush1.msra.mxu0 %v5980
  %6127 = vmatprep.subr.mxu0 0.0
  %6128 = vmatpush1.msra.mxu0 %v5981
  %6129 = vmatprep.subr.mxu0 0.0
  %6130 = vmatpush1.msra.mxu0 %v5982
  %6131 = vmatprep.subr.mxu0 0.0
  %6132 = vmatpush1.msra.mxu0 %v5983
  %6133 = vmatprep.subr.mxu0 0.0
  %6134 = vmatpush1.msra.mxu0 %v5984
  %6135 = vmatprep.subr.mxu0 0.0
  %6136 = vmatpush1.msra.mxu0 %v5985
  %6137 = vmatprep.subr.mxu0 0.0
  %6138 = vmatpush1.msra.mxu0 %v5986
  %6139 = vmatprep.subr.mxu0 0.0
  %6140 = vmatpush1.msra.mxu0 %v5987
  %6141 = vmatprep.subr.mxu0 0.0
  %6142 = vmatpush1.msra.mxu0 %v5988
  %6143 = vmatprep.subr.mxu0 0.0
  %6144 = vmatpush1.msra.mxu0 %v5989
  %6145 = vmatprep.subr.mxu0 0.0
  %6146 = vmatpush1.msra.mxu0 %v5990
  %6147 = vmatprep.subr.mxu0 0.0
  %6148 = vmatpush1.msra.mxu0 %v5991
  %6149 = vmatprep.subr.mxu0 0.0
  %6150 = vmatpush1.msra.mxu0 %v5992
  %6151 = vmatprep.subr.mxu0 0.0
  %6152 = vmatpush1.msra.mxu0 %v5993
  %6153 = vmatprep.subr.mxu0 0.0
  %6154 = vmatpush1.msra.mxu0 %v5994
  %6155 = vmatprep.subr.mxu0 0.0
  %6156 = vmatpush1.msra.mxu0 %v5995
  %6157 = vmatprep.mubr.f32.mxu0 %v5829
  %6158 = vmatmul.mubr.f32.gmra.mrb[0].mxu0 %v5828
  %v6159 = vpop.f32.mrb[0].mxu0
  %v6160 = vadd.f32 0.0, %v6159
  %v6161 = vpop.f32.mrb[0].mxu0
  %6162 = vdwg.mxu0
  %6163 = vmatprep.subr.mxu0 0.0
  %6164 = vmatpush1.msra.mxu0 %v5996
  %6165 = vmatprep.subr.mxu0 0.0
  %6166 = vmatpush1.msra.mxu0 %v5997
  %6167 = vmatprep.subr.mxu0 0.0
  %6168 = vmatpush1.msra.mxu0 %v5998
  %6169 = vmatprep.subr.mxu0 0.0
  %6170 = vmatpush1.msra.mxu0 %v5999
  %6171 = vmatprep.subr.mxu0 0.0
  %6172 = vmatpush1.msra.mxu0 %v6000
  %6173 = vmatprep.subr.mxu0 0.0
  %6174 = vmatpush1.msra.mxu0 %v6001
  %6175 = vmatprep.subr.mxu0 0.0
  %6176 = vmatpush1.msra.mxu0 %v6002
  %6177 = vmatprep.subr.mxu0 0.0
  %6178 = vmatpush1.msra.mxu0 %v6003
  %6179 = vmatprep.subr.mxu0 0.0
  %6180 = vmatpush1.msra.mxu0 %v6004
  %6181 = vmatprep.subr.mxu0 0.0
  %6182 = vmatpush1.msra.mxu0 %v6005
  %6183 = vmatprep.subr.mxu0 0.0
  %6184 = vmatpush1.msra.mxu0 %v6006
  %6185 = vmatprep.subr.mxu0 0.0
  %6186 = vmatpush1.msra.mxu0 %v6007
  %6187 = vmatprep.subr.mxu0 0.0
  %6188 = vmatpush1.msra.mxu0 %v6008
  %6189 = vmatprep.subr.mxu0 0.0
  %6190 = vmatpush1.msra.mxu0 %v6009
  %6191 = vmatprep.subr.mxu0 0.0
  %6192 = vmatpush1.msra.mxu0 %v6010
  %6193 = vmatprep.subr.mxu0 0.0
  %6194 = vmatpush1.msra.mxu0 %v6011
  %6195 = vmatprep.subr.mxu0 0.0
  %6196 = vmatpush1.msra.mxu0 %v6012
  %6197 = vmatprep.subr.mxu0 0.0
  %6198 = vmatpush1.msra.mxu0 %v6013
  %6199 = vmatprep.subr.mxu0 0.0
  %6200 = vmatpush1.msra.mxu0 %v6014
  %6201 = vmatprep.subr.mxu0 0.0
  %6202 = vmatpush1.msra.mxu0 %v6015
  %6203 = vmatprep.subr.mxu0 0.0
  %6204 = vmatpush1.msra.mxu0 %v6016
  %6205 = vmatprep.subr.mxu0 0.0
  %6206 = vmatpush1.msra.mxu0 %v6017
  %6207 = vmatprep.subr.mxu0 0.0
  %6208 = vmatpush1.msra.mxu0 %v6018
  %6209 = vmatprep.subr.mxu0 0.0
  %6210 = vmatpush1.msra.mxu0 %v6019
  %6211 = vmatprep.subr.mxu0 0.0
  %6212 = vmatpush1.msra.mxu0 %v6020
  %6213 = vmatprep.subr.mxu0 0.0
  %6214 = vmatpush1.msra.mxu0 %v6021
  %6215 = vmatprep.subr.mxu0 0.0
  %6216 = vmatpush1.msra.mxu0 %v6022
  %6217 = vmatprep.subr.mxu0 0.0
  %6218 = vmatpush1.msra.mxu0 %v6023
  %6219 = vmatprep.subr.mxu0 0.0
  %6220 = vmatpush1.msra.mxu0 %v6024
  %6221 = vmatprep.subr.mxu0 0.0
  %6222 = vmatpush1.msra.mxu0 %v6025
  %6223 = vmatprep.subr.mxu0 0.0
  %6224 = vmatpush1.msra.mxu0 %v6026
  %6225 = vmatprep.subr.mxu0 0.0
  %6226 = vmatpush1.msra.mxu0 %v6027
  %6227 = vmatprep.mubr.f32.mxu0 %v5831
  %6228 = vmatmul.mubr.f32.gmra.mrb[0].mxu0 %v5830
  %v6229 = vpop.f32.mrb[0].mxu0
  %v6230 = vadd.f32 %v6160, %v6229
  %v6231 = vpop.f32.mrb[0].mxu0
  %6232 = vdwg.mxu0
  %6233 = vmatprep.subr.mxu0 0.0
  %6234 = vmatpush1.msra.mxu0 %v6028
  %6235 = vmatprep.subr.mxu0 0.0
  %6236 = vmatpush1.msra.mxu0 %v6029
  %6237 = vmatprep.subr.mxu0 0.0
  %6238 = vmatpush1.msra.mxu0 %v6030
  %6239 = vmatprep.subr.mxu0 0.0
  %6240 = vmatpush1.msra.mxu0 %v6031
  %6241 = vmatprep.subr.mxu0 0.0
  %6242 = vmatpush1.msra.mxu0 %v6032
  %6243 = vmatprep.subr.mxu0 0.0
  %6244 = vmatpush1.msra.mxu0 %v6033
  %6245 = vmatprep.subr.mxu0 0.0
  %6246 = vmatpush1.msra.mxu0 %v6034
  %6247 = vmatprep.subr.mxu0 0.0
  %6248 = vmatpush1.msra.mxu0 %v6035
  %6249 = vmatprep.subr.mxu0 0.0
  %6250 = vmatpush1.msra.mxu0 %v6036
  %6251 = vmatprep.subr.mxu0 0.0
  %6252 = vmatpush1.msra.mxu0 %v6037
  %6253 = vmatprep.subr.mxu0 0.0
  %6254 = vmatpush1.msra.mxu0 %v6038
  %6255 = vmatprep.subr.mxu0 0.0
  %6256 = vmatpush1.msra.mxu0 %v6039
  %6257 = vmatprep.subr.mxu0 0.0
  %6258 = vmatpush1.msra.mxu0 %v6040
  %6259 = vmatprep.subr.mxu0 0.0
  %6260 = vmatpush1.msra.mxu0 %v6041
  %6261 = vmatprep.subr.mxu0 0.0
  %6262 = vmatpush1.msra.mxu0 %v6042
  %6263 = vmatprep.subr.mxu0 0.0
  %6264 = vmatpush1.msra.mxu0 %v6043
  %6265 = vmatprep.subr.mxu0 0.0
  %6266 = vmatpush1.msra.mxu0 %v6044
  %6267 = vmatprep.subr.mxu0 0.0
  %6268 = vmatpush1.msra.mxu0 %v6045
  %6269 = vmatprep.subr.mxu0 0.0
  %6270 = vmatpush1.msra.mxu0 %v6046
  %6271 = vmatprep.subr.mxu0 0.0
  %6272 = vmatpush1.msra.mxu0 %v6047
  %6273 = vmatprep.subr.mxu0 0.0
  %6274 = vmatpush1.msra.mxu0 %v6048
  %6275 = vmatprep.subr.mxu0 0.0
  %6276 = vmatpush1.msra.mxu0 %v6049
  %6277 = vmatprep.subr.mxu0 0.0
  %6278 = vmatpush1.msra.mxu0 %v6050
  %6279 = vmatprep.subr.mxu0 0.0
  %6280 = vmatpush1.msra.mxu0 %v6051
  %6281 = vmatprep.subr.mxu0 0.0
  %6282 = vmatpush1.msra.mxu0 %v6052
  %6283 = vmatprep.subr.mxu0 0.0
  %6284 = vmatpush1.msra.mxu0 %v6053
  %6285 = vmatprep.subr.mxu0 0.0
  %6286 = vmatpush1.msra.mxu0 %v6054
  %6287 = vmatprep.subr.mxu0 0.0
  %6288 = vmatpush1.msra.mxu0 %v6055
  %6289 = vmatprep.subr.mxu0 0.0
  %6290 = vmatpush1.msra.mxu0 %v6056
  %6291 = vmatprep.subr.mxu0 0.0
  %6292 = vmatpush1.msra.mxu0 %v6057
  %6293 = vmatprep.subr.mxu0 0.0
  %6294 = vmatpush1.msra.mxu0 %v6058
  %6295 = vmatprep.subr.mxu0 0.0
  %6296 = vmatpush1.msra.mxu0 %v6059
  %6297 = vmatprep.mubr.f32.mxu0 %v5833
  %6298 = vmatmul.mubr.f32.gmra.mrb[0].mxu0 %v5832
  %v6299 = vpop.f32.mrb[0].mxu0
  %v6300 = vadd.f32 %v6230, %v6299
  %v6301 = vpop.f32.mrb[0].mxu0
  %6302 = vdwg.mxu0
  %6303 = vmatprep.subr.mxu0 0.0
  %6304 = vmatpush1.msra.mxu0 %v6060
  %6305 = vmatprep.subr.mxu0 0.0
  %6306 = vmatpush1.msra.mxu0 %v6061
  %6307 = vmatprep.subr.mxu0 0.0
  %6308 = vmatpush1.msra.mxu0 %v6062
  %6309 = vmatprep.subr.mxu0 0.0
  %6310 = vmatpush1.msra.mxu0 %v6063
  %6311 = vmatprep.subr.mxu0 0.0
  %6312 = vmatpush1.msra.mxu0 %v6064
  %6313 = vmatprep.subr.mxu0 0.0
  %6314 = vmatpush1.msra.mxu0 %v6065
  %6315 = vmatprep.subr.mxu0 0.0
  %6316 = vmatpush1.msra.mxu0 %v6066
  %6317 = vmatprep.subr.mxu0 0.0
  %6318 = vmatpush1.msra.mxu0 %v6067
  %6319 = vmatprep.subr.mxu0 0.0
  %6320 = vmatpush1.msra.mxu0 %v6068
  %6321 = vmatprep.subr.mxu0 0.0
  %6322 = vmatpush1.msra.mxu0 %v6069
  %6323 = vmatprep.subr.mxu0 0.0
  %6324 = vmatpush1.msra.mxu0 %v6070
  %6325 = vmatprep.subr.mxu0 0.0
  %6326 = vmatpush1.msra.mxu0 %v6071
  %6327 = vmatprep.subr.mxu0 0.0
  %6328 = vmatpush1.msra.mxu0 %v6072
  %6329 = vmatprep.subr.mxu0 0.0
  %6330 = vmatpush1.msra.mxu0 %v6073
  %6331 = vmatprep.subr.mxu0 0.0
  %6332 = vmatpush1.msra.mxu0 %v6074
  %6333 = vmatprep.subr.mxu0 0.0
  %6334 = vmatpush1.msra.mxu0 %v6075
  %6335 = vmatprep.subr.mxu0 0.0
  %6336 = vmatpush1.msra.mxu0 %v6076
  %6337 = vmatprep.subr.mxu0 0.0
  %6338 = vmatpush1.msra.mxu0 %v6077
  %6339 = vmatprep.subr.mxu0 0.0
  %6340 = vmatpush1.msra.mxu0 %v6078
  %6341 = vmatprep.subr.mxu0 0.0
  %6342 = vmatpush1.msra.mxu0 %v6079
  %6343 = vmatprep.subr.mxu0 0.0
  %6344 = vmatpush1.msra.mxu0 %v6080
  %6345 = vmatprep.subr.mxu0 0.0
  %6346 = vmatpush1.msra.mxu0 %v6081
  %6347 = vmatprep.subr.mxu0 0.0
  %6348 = vmatpush1.msra.mxu0 %v6082
  %6349 = vmatprep.subr.mxu0 0.0
  %6350 = vmatpush1.msra.mxu0 %v6083
  %6351 = vmatprep.subr.mxu0 0.0
  %6352 = vmatpush1.msra.mxu0 %v6084
  %6353 = vmatprep.subr.mxu0 0.0
  %6354 = vmatpush1.msra.mxu0 %v6085
  %6355 = vmatprep.subr.mxu0 0.0
  %6356 = vmatpush1.msra.mxu0 %v6086
  %6357 = vmatprep.subr.mxu0 0.0
  %6358 = vmatpush1.msra.mxu0 %v6087
  %6359 = vmatprep.subr.mxu0 0.0
  %6360 = vmatpush1.msra.mxu0 %v6088
  %6361 = vmatprep.subr.mxu0 0.0
  %6362 = vmatpush1.msra.mxu0 %v6089
  %6363 = vmatprep.subr.mxu0 0.0
  %6364 = vmatpush1.msra.mxu0 %v6090
  %6365 = vmatprep.subr.mxu0 0.0
  %6366 = vmatpush1.msra.mxu0 %v6091
  %6367 = vmatprep.mubr.f32.mxu0 %v5835
  %6368 = vmatmul.mubr.f32.gmra.mrb[0].mxu0 %v5834
  %v6369 = vpop.f32.mrb[0].mxu0
  %v6370 = vadd.f32 %v6300, %v6369
  %v6371 = vpop.f32.mrb[0].mxu0
  %6372 = vdwg.mxu0
  %6373 = vmatprep.subr.mxu0 0.0
  %6374 = vmatpush1.msra.mxu0 %v5836
  %6375 = vmatprep.subr.mxu0 0.0
  %6376 = vmatpush1.msra.mxu0 %v5837
  %6377 = vmatprep.subr.mxu0 0.0
  %6378 = vmatpush1.msra.mxu0 %v5838
  %6379 = vmatprep.subr.mxu0 0.0
  %6380 = vmatpush1.msra.mxu0 %v5839
  %6381 = vmatprep.subr.mxu0 0.0
  %6382 = vmatpush1.msra.mxu0 %v5840
  %6383 = vmatprep.subr.mxu0 0.0
  %6384 = vmatpush1.msra.mxu0 %v5841
  %6385 = vmatprep.subr.mxu0 0.0
  %6386 = vmatpush1.msra.mxu0 %v5842
  %6387 = vmatprep.subr.mxu0 0.0
  %6388 = vmatpush1.msra.mxu0 %v5843
  %6389 = vmatprep.subr.mxu0 0.0
  %6390 = vmatpush1.msra.mxu0 %v5844
  %6391 = vmatprep.subr.mxu0 0.0
  %6392 = vmatpush1.msra.mxu0 %v5845
  %6393 = vmatprep.subr.mxu0 0.0
  %6394 = vmatpush1.msra.mxu0 %v5846
  %6395 = vmatprep.subr.mxu0 0.0
  %6396 = vmatpush1.msra.mxu0 %v5847
  %6397 = vmatprep.subr.mxu0 0.0
  %6398 = vmatpush1.msra.mxu0 %v5848
  %6399 = vmatprep.subr.mxu0 0.0
  %6400 = vmatpush1.msra.mxu0 %v5849
  %6401 = vmatprep.subr.mxu0 0.0
  %6402 = vmatpush1.msra.mxu0 %v5850
  %6403 = vmatprep.subr.mxu0 0.0
  %6404 = vmatpush1.msra.mxu0 %v5851
  %6405 = vmatprep.subr.mxu0 0.0
  %6406 = vmatpush1.msra.mxu0 %v5852
  %6407 = vmatprep.subr.mxu0 0.0
  %6408 = vmatpush1.msra.mxu0 %v5853
  %6409 = vmatprep.subr.mxu0 0.0
  %6410 = vmatpush1.msra.mxu0 %v5854
  %6411 = vmatprep.subr.mxu0 0.0
  %6412 = vmatpush1.msra.mxu0 %v5855
  %6413 = vmatprep.subr.mxu0 0.0
  %6414 = vmatpush1.msra.mxu0 %v5856
  %6415 = vmatprep.subr.mxu0 0.0
  %6416 = vmatpush1.msra.mxu0 %v5857
  %6417 = vmatprep.subr.mxu0 0.0
  %6418 = vmatpush1.msra.mxu0 %v5858
  %6419 = vmatprep.subr.mxu0 0.0
  %6420 = vmatpush1.msra.mxu0 %v5859
  %6421 = vmatprep.subr.mxu0 0.0
  %6422 = vmatpush1.msra.mxu0 %v5860
  %6423 = vmatprep.subr.mxu0 0.0
  %6424 = vmatpush1.msra.mxu0 %v5861
  %6425 = vmatprep.subr.mxu0 0.0
  %6426 = vmatpush1.msra.mxu0 %v5862
  %6427 = vmatprep.subr.mxu0 0.0
  %6428 = vmatpush1.msra.mxu0 %v5863
  %6429 = vmatprep.subr.mxu0 0.0
  %6430 = vmatpush1.msra.mxu0 %v5864
  %6431 = vmatprep.subr.mxu0 0.0
  %6432 = vmatpush1.msra.mxu0 %v5865
  %6433 = vmatprep.subr.mxu0 0.0
  %6434 = vmatpush1.msra.mxu0 %v5866
  %6435 = vmatprep.subr.mxu0 0.0
  %6436 = vmatpush1.msra.mxu0 %v5867
  %6437 = vmatprep.mubr.f32.mxu0 %v5757
  %6438 = vmatmul.mubr.f32.gmra.mrb[0].mxu0 %v5756
  %v6439 = vpop.f32.mrb[0].mxu0
  %v6440 = vadd.f32 %v6370, %v6439
  %v6441 = vpop.f32.mrb[0].mxu0
  %6442 = vdwg.mxu0
  %6443 = vmatprep.subr.mxu0 0.0
  %6444 = vmatpush1.msra.mxu0 %v5868
  %6445 = vmatprep.subr.mxu0 0.0
  %6446 = vmatpush1.msra.mxu0 %v5869
  %6447 = vmatprep.subr.mxu0 0.0
  %6448 = vmatpush1.msra.mxu0 %v5870
  %6449 = vmatprep.subr.mxu0 0.0
  %6450 = vmatpush1.msra.mxu0 %v5871
  %6451 = vmatprep.subr.mxu0 0.0
  %6452 = vmatpush1.msra.mxu0 %v5872
  %6453 = vmatprep.subr.mxu0 0.0
  %6454 = vmatpush1.msra.mxu0 %v5873
  %6455 = vmatprep.subr.mxu0 0.0
  %6456 = vmatpush1.msra.mxu0 %v5874
  %6457 = vmatprep.subr.mxu0 0.0
  %6458 = vmatpush1.msra.mxu0 %v5875
  %6459 = vmatprep.subr.mxu0 0.0
  %6460 = vmatpush1.msra.mxu0 %v5876
  %6461 = vmatprep.subr.mxu0 0.0
  %6462 = vmatpush1.msra.mxu0 %v5877
  %6463 = vmatprep.subr.mxu0 0.0
  %6464 = vmatpush1.msra.mxu0 %v5878
  %6465 = vmatprep.subr.mxu0 0.0
  %6466 = vmatpush1.msra.mxu0 %v5879
  %6467 = vmatprep.subr.mxu0 0.0
  %6468 = vmatpush1.msra.mxu0 %v5880
  %6469 = vmatprep.subr.mxu0 0.0
  %6470 = vmatpush1.msra.mxu0 %v5881
  %6471 = vmatprep.subr.mxu0 0.0
  %6472 = vmatpush1.msra.mxu0 %v5882
  %6473 = vmatprep.subr.mxu0 0.0
  %6474 = vmatpush1.msra.mxu0 %v5883
  %6475 = vmatprep.subr.mxu0 0.0
  %6476 = vmatpush1.msra.mxu0 %v5884
  %6477 = vmatprep.subr.mxu0 0.0
  %6478 = vmatpush1.msra.mxu0 %v5885
  %6479 = vmatprep.subr.mxu0 0.0
  %6480 = vmatpush1.msra.mxu0 %v5886
  %6481 = vmatprep.subr.mxu0 0.0
  %6482 = vmatpush1.msra.mxu0 %v5887
  %6483 = vmatprep.subr.mxu0 0.0
  %6484 = vmatpush1.msra.mxu0 %v5888
  %6485 = vmatprep.subr.mxu0 0.0
  %6486 = vmatpush1.msra.mxu0 %v5889
  %6487 = vmatprep.subr.mxu0 0.0
  %6488 = vmatpush1.msra.mxu0 %v5890
  %6489 = vmatprep.subr.mxu0 0.0
  %6490 = vmatpush1.msra.mxu0 %v5891
  %6491 = vmatprep.subr.mxu0 0.0
  %6492 = vmatpush1.msra.mxu0 %v5892
  %6493 = vmatprep.subr.mxu0 0.0
  %6494 = vmatpush1.msra.mxu0 %v5893
  %6495 = vmatprep.subr.mxu0 0.0
  %6496 = vmatpush1.msra.mxu0 %v5894
  %6497 = vmatprep.subr.mxu0 0.0
  %6498 = vmatpush1.msra.mxu0 %v5895
  %6499 = vmatprep.subr.mxu0 0.0
  %6500 = vmatpush1.msra.mxu0 %v5896
  %6501 = vmatprep.subr.mxu0 0.0
  %6502 = vmatpush1.msra.mxu0 %v5897
  %6503 = vmatprep.subr.mxu0 0.0
  %6504 = vmatpush1.msra.mxu0 %v5898
  %6505 = vmatprep.subr.mxu0 0.0
  %6506 = vmatpush1.msra.mxu0 %v5899
  %6507 = vmatprep.mubr.f32.mxu0 %v5759
  %6508 = vmatmul.mubr.f32.gmra.mrb[0].mxu0 %v5758
  %v6509 = vpop.f32.mrb[0].mxu0
  %v6510 = vadd.f32 %v6440, %v6509
  %v6511 = vpop.f32.mrb[0].mxu0
  %6512 = vdwg.mxu0
  %6513 = vmatprep.subr.mxu0 0.0
  %6514 = vmatpush1.msra.mxu0 %v5900
  %6515 = vmatprep.subr.mxu0 0.0
  %6516 = vmatpush1.msra.mxu0 %v5901
  %6517 = vmatprep.subr.mxu0 0.0
  %6518 = vmatpush1.msra.mxu0 %v5902
  %6519 = vmatprep.subr.mxu0 0.0
  %6520 = vmatpush1.msra.mxu0 %v5903
  %6521 = vmatprep.subr.mxu0 0.0
  %6522 = vmatpush1.msra.mxu0 %v5904
  %6523 = vmatprep.subr.mxu0 0.0
  %6524 = vmatpush1.msra.mxu0 %v5905
  %6525 = vmatprep.subr.mxu0 0.0
  %6526 = vmatpush1.msra.mxu0 %v5906
  %6527 = vmatprep.subr.mxu0 0.0
  %6528 = vmatpush1.msra.mxu0 %v5907
  %6529 = vmatprep.subr.mxu0 0.0
  %6530 = vmatpush1.msra.mxu0 %v5908
  %6531 = vmatprep.subr.mxu0 0.0
  %6532 = vmatpush1.msra.mxu0 %v5909
  %6533 = vmatprep.subr.mxu0 0.0
  %6534 = vmatpush1.msra.mxu0 %v5910
  %6535 = vmatprep.subr.mxu0 0.0
  %6536 = vmatpush1.msra.mxu0 %v5911
  %6537 = vmatprep.subr.mxu0 0.0
  %6538 = vmatpush1.msra.mxu0 %v5912
  %6539 = vmatprep.subr.mxu0 0.0
  %6540 = vmatpush1.msra.mxu0 %v5913
  %6541 = vmatprep.subr.mxu0 0.0
  %6542 = vmatpush1.msra.mxu0 %v5914
  %6543 = vmatprep.subr.mxu0 0.0
  %6544 = vmatpush1.msra.mxu0 %v5915
  %6545 = vmatprep.subr.mxu0 0.0
  %6546 = vmatpush1.msra.mxu0 %v5916
  %6547 = vmatprep.subr.mxu0 0.0
  %6548 = vmatpush1.msra.mxu0 %v5917
  %6549 = vmatprep.subr.mxu0 0.0
  %6550 = vmatpush1.msra.mxu0 %v5918
  %6551 = vmatprep.subr.mxu0 0.0
  %6552 = vmatpush1.msra.mxu0 %v5919
  %6553 = vmatprep.subr.mxu0 0.0
  %6554 = vmatpush1.msra.mxu0 %v5920
  %6555 = vmatprep.subr.mxu0 0.0
  %6556 = vmatpush1.msra.mxu0 %v5921
  %6557 = vmatprep.subr.mxu0 0.0
  %6558 = vmatpush1.msra.mxu0 %v5922
  %6559 = vmatprep.subr.mxu0 0.0
  %6560 = vmatpush1.msra.mxu0 %v5923
  %6561 = vmatprep.subr.mxu0 0.0
  %6562 = vmatpush1.msra.mxu0 %v5924
  %6563 = vmatprep.subr.mxu0 0.0
  %6564 = vmatpush1.msra.mxu0 %v5925
  %6565 = vmatprep.subr.mxu0 0.0
  %6566 = vmatpush1.msra.mxu0 %v5926
  %6567 = vmatprep.subr.mxu0 0.0
  %6568 = vmatpush1.msra.mxu0 %v5927
  %6569 = vmatprep.subr.mxu0 0.0
  %6570 = vmatpush1.msra.mxu0 %v5928
  %6571 = vmatprep.subr.mxu0 0.0
  %6572 = vmatpush1.msra.mxu0 %v5929
  %6573 = vmatprep.subr.mxu0 0.0
  %6574 = vmatpush1.msra.mxu0 %v5930
  %6575 = vmatprep.subr.mxu0 0.0
  %6576 = vmatpush1.msra.mxu0 %v5931
  %6577 = vmatprep.mubr.f32.mxu0 %v5761
  %6578 = vmatmul.mubr.f32.gmra.mrb[0].mxu0 %v5760
  %v6579 = vpop.f32.mrb[0].mxu0
  %v6580 = vadd.f32 %v6510, %v6579
  %v6581 = vpop.f32.mrb[0].mxu0
  %6582 = vdwg.mxu0
  %6583 = vmatprep.subr.mxu0 0.0
  %6584 = vmatpush1.msra.mxu0 %v5932
  %6585 = vmatprep.subr.mxu0 0.0
  %6586 = vmatpush1.msra.mxu0 %v5933
  %6587 = vmatprep.subr.mxu0 0.0
  %6588 = vmatpush1.msra.mxu0 %v5934
  %6589 = vmatprep.subr.mxu0 0.0
  %6590 = vmatpush1.msra.mxu0 %v5935
  %6591 = vmatprep.subr.mxu0 0.0
  %6592 = vmatpush1.msra.mxu0 %v5936
  %6593 = vmatprep.subr.mxu0 0.0
  %6594 = vmatpush1.msra.mxu0 %v5937
  %6595 = vmatprep.subr.mxu0 0.0
  %6596 = vmatpush1.msra.mxu0 %v5938
  %6597 = vmatprep.subr.mxu0 0.0
  %6598 = vmatpush1.msra.mxu0 %v5939
  %6599 = vmatprep.subr.mxu0 0.0
  %6600 = vmatpush1.msra.mxu0 %v5940
  %6601 = vmatprep.subr.mxu0 0.0
  %6602 = vmatpush1.msra.mxu0 %v5941
  %6603 = vmatprep.subr.mxu0 0.0
  %6604 = vmatpush1.msra.mxu0 %v5942
  %6605 = vmatprep.subr.mxu0 0.0
  %6606 = vmatpush1.msra.mxu0 %v5943
  %6607 = vmatprep.subr.mxu0 0.0
  %6608 = vmatpush1.msra.mxu0 %v5944
  %6609 = vmatprep.subr.mxu0 0.0
  %6610 = vmatpush1.msra.mxu0 %v5945
  %6611 = vmatprep.subr.mxu0 0.0
  %6612 = vmatpush1.msra.mxu0 %v5946
  %6613 = vmatprep.subr.mxu0 0.0
  %6614 = vmatpush1.msra.mxu0 %v5947
  %6615 = vmatprep.subr.mxu0 0.0
  %6616 = vmatpush1.msra.mxu0 %v5948
  %6617 = vmatprep.subr.mxu0 0.0
  %6618 = vmatpush1.msra.mxu0 %v5949
  %6619 = vmatprep.subr.mxu0 0.0
  %6620 = vmatpush1.msra.mxu0 %v5950
  %6621 = vmatprep.subr.mxu0 0.0
  %6622 = vmatpush1.msra.mxu0 %v5951
  %6623 = vmatprep.subr.mxu0 0.0
  %6624 = vmatpush1.msra.mxu0 %v5952
  %6625 = vmatprep.subr.mxu0 0.0
  %6626 = vmatpush1.msra.mxu0 %v5953
  %6627 = vmatprep.subr.mxu0 0.0
  %6628 = vmatpush1.msra.mxu0 %v5954
  %6629 = vmatprep.subr.mxu0 0.0
  %6630 = vmatpush1.msra.mxu0 %v5955
  %6631 = vmatprep.subr.mxu0 0.0
  %6632 = vmatpush1.msra.mxu0 %v5956
  %6633 = vmatprep.subr.mxu0 0.0
  %6634 = vmatpush1.msra.mxu0 %v5957
  %6635 = vmatprep.subr.mxu0 0.0
  %6636 = vmatpush1.msra.mxu0 %v5958
  %6637 = vmatprep.subr.mxu0 0.0
  %6638 = vmatpush1.msra.mxu0 %v5959
  %6639 = vmatprep.subr.mxu0 0.0
  %6640 = vmatpush1.msra.mxu0 %v5960
  %6641 = vmatprep.subr.mxu0 0.0
  %6642 = vmatpush1.msra.mxu0 %v5961
  %6643 = vmatprep.subr.mxu0 0.0
  %6644 = vmatpush1.msra.mxu0 %v5962
  %6645 = vmatprep.subr.mxu0 0.0
  %6646 = vmatpush1.msra.mxu0 %v5963
  %6647 = vmatprep.mubr.f32.mxu0 %v5763
  %6648 = vmatmul.mubr.f32.gmra.mrb[0].mxu0 %v5762
  %v6649 = vpop.f32.mrb[0].mxu0
  %v6650 = vadd.f32 %v6580, %v6649
  %v6651 = vpop.f32.mrb[0].mxu0
  %6652 = vdwg.mxu0
  %v6654 = vlaneseq
  %v6655 = vshrl.u32 %v6654, 7
  %v6656 = vsub.s32 0, %v6655
  %v6657 = vrot.slane %v6092, %v6656
  %v6659 = vadd.f32 %v6650, %v6657
  %6660 = vmatprep.subr.mxu0 0.0
  %6661 = vmatpush1.msra.mxu0 %v5964
  %6662 = vmatprep.subr.mxu0 0.0
  %6663 = vmatpush1.msra.mxu0 %v5965
  %6664 = vmatprep.subr.mxu0 0.0
  %6665 = vmatpush1.msra.mxu0 %v5966
  %6666 = vmatprep.subr.mxu0 0.0
  %6667 = vmatpush1.msra.mxu0 %v5967
  %6668 = vmatprep.subr.mxu0 0.0
  %6669 = vmatpush1.msra.mxu0 %v5968
  %6670 = vmatprep.subr.mxu0 0.0
  %6671 = vmatpush1.msra.mxu0 %v5969
  %6672 = vmatprep.subr.mxu0 0.0
  %6673 = vmatpush1.msra.mxu0 %v5970
  %6674 = vmatprep.subr.mxu0 0.0
  %6675 = vmatpush1.msra.mxu0 %v5971
  %6676 = vmatprep.subr.mxu0 0.0
  %6677 = vmatpush1.msra.mxu0 %v5972
  %6678 = vmatprep.subr.mxu0 0.0
  %6679 = vmatpush1.msra.mxu0 %v5973
  %6680 = vmatprep.subr.mxu0 0.0
  %6681 = vmatpush1.msra.mxu0 %v5974
  %6682 = vmatprep.subr.mxu0 0.0
  %6683 = vmatpush1.msra.mxu0 %v5975
  %6684 = vmatprep.subr.mxu0 0.0
  %6685 = vmatpush1.msra.mxu0 %v5976
  %6686 = vmatprep.subr.mxu0 0.0
  %6687 = vmatpush1.msra.mxu0 %v5977
  %6688 = vmatprep.subr.mxu0 0.0
  %6689 = vmatpush1.msra.mxu0 %v5978
  %6690 = vmatprep.subr.mxu0 0.0
  %6691 = vmatpush1.msra.mxu0 %v5979
  %6692 = vmatprep.subr.mxu0 0.0
  %6693 = vmatpush1.msra.mxu0 %v5980
  %6694 = vmatprep.subr.mxu0 0.0
  %6695 = vmatpush1.msra.mxu0 %v5981
  %6696 = vmatprep.subr.mxu0 0.0
  %6697 = vmatpush1.msra.mxu0 %v5982
  %6698 = vmatprep.subr.mxu0 0.0
  %6699 = vmatpush1.msra.mxu0 %v5983
  %6700 = vmatprep.subr.mxu0 0.0
  %6701 = vmatpush1.msra.mxu0 %v5984
  %6702 = vmatprep.subr.mxu0 0.0
  %6703 = vmatpush1.msra.mxu0 %v5985
  %6704 = vmatprep.subr.mxu0 0.0
  %6705 = vmatpush1.msra.mxu0 %v5986
  %6706 = vmatprep.subr.mxu0 0.0
  %6707 = vmatpush1.msra.mxu0 %v5987
  %6708 = vmatprep.subr.mxu0 0.0
  %6709 = vmatpush1.msra.mxu0 %v5988
  %6710 = vmatprep.subr.mxu0 0.0
  %6711 = vmatpush1.msra.mxu0 %v5989
  %6712 = vmatprep.subr.mxu0 0.0
  %6713 = vmatpush1.msra.mxu0 %v5990
  %6714 = vmatprep.subr.mxu0 0.0
  %6715 = vmatpush1.msra.mxu0 %v5991
  %6716 = vmatprep.subr.mxu0 0.0
  %6717 = vmatpush1.msra.mxu0 %v5992
  %6718 = vmatprep.subr.mxu0 0.0
  %6719 = vmatpush1.msra.mxu0 %v5993
  %6720 = vmatprep.subr.mxu0 0.0
  %6721 = vmatpush1.msra.mxu0 %v5994
  %6722 = vmatprep.subr.mxu0 0.0
  %6723 = vmatpush1.msra.mxu0 %v5995
  %6724 = vmatprep.mubr.f32.mxu0 %v5757
  %6725 = vmatmul.mubr.f32.gmra.mrb[0].mxu0 %v5756
  %v6726 = vpop.f32.mrb[0].mxu0
  %v6727 = vadd.f32 0.0, %v6726
  %v6728 = vpop.f32.mrb[0].mxu0
  %6729 = vdwg.mxu0
  %6730 = vmatprep.subr.mxu0 0.0
  %6731 = vmatpush1.msra.mxu0 %v5996
  %6732 = vmatprep.subr.mxu0 0.0
  %6733 = vmatpush1.msra.mxu0 %v5997
  %6734 = vmatprep.subr.mxu0 0.0
  %6735 = vmatpush1.msra.mxu0 %v5998
  %6736 = vmatprep.subr.mxu0 0.0
  %6737 = vmatpush1.msra.mxu0 %v5999
  %6738 = vmatprep.subr.mxu0 0.0
  %6739 = vmatpush1.msra.mxu0 %v6000
  %6740 = vmatprep.subr.mxu0 0.0
  %6741 = vmatpush1.msra.mxu0 %v6001
  %6742 = vmatprep.subr.mxu0 0.0
  %6743 = vmatpush1.msra.mxu0 %v6002
  %6744 = vmatprep.subr.mxu0 0.0
  %6745 = vmatpush1.msra.mxu0 %v6003
  %6746 = vmatprep.subr.mxu0 0.0
  %6747 = vmatpush1.msra.mxu0 %v6004
  %6748 = vmatprep.subr.mxu0 0.0
  %6749 = vmatpush1.msra.mxu0 %v6005
  %6750 = vmatprep.subr.mxu0 0.0
  %6751 = vmatpush1.msra.mxu0 %v6006
  %6752 = vmatprep.subr.mxu0 0.0
  %6753 = vmatpush1.msra.mxu0 %v6007
  %6754 = vmatprep.subr.mxu0 0.0
  %6755 = vmatpush1.msra.mxu0 %v6008
  %6756 = vmatprep.subr.mxu0 0.0
  %6757 = vmatpush1.msra.mxu0 %v6009
  %6758 = vmatprep.subr.mxu0 0.0
  %6759 = vmatpush1.msra.mxu0 %v6010
  %6760 = vmatprep.subr.mxu0 0.0
  %6761 = vmatpush1.msra.mxu0 %v6011
  %6762 = vmatprep.subr.mxu0 0.0
  %6763 = vmatpush1.msra.mxu0 %v6012
  %6764 = vmatprep.subr.mxu0 0.0
  %6765 = vmatpush1.msra.mxu0 %v6013
  %6766 = vmatprep.subr.mxu0 0.0
  %6767 = vmatpush1.msra.mxu0 %v6014
  %6768 = vmatprep.subr.mxu0 0.0
  %6769 = vmatpush1.msra.mxu0 %v6015
  %6770 = vmatprep.subr.mxu0 0.0
  %6771 = vmatpush1.msra.mxu0 %v6016
  %6772 = vmatprep.subr.mxu0 0.0
  %6773 = vmatpush1.msra.mxu0 %v6017
  %6774 = vmatprep.subr.mxu0 0.0
  %6775 = vmatpush1.msra.mxu0 %v6018
  %6776 = vmatprep.subr.mxu0 0.0
  %6777 = vmatpush1.msra.mxu0 %v6019
  %6778 = vmatprep.subr.mxu0 0.0
  %6779 = vmatpush1.msra.mxu0 %v6020
  %6780 = vmatprep.subr.mxu0 0.0
  %6781 = vmatpush1.msra.mxu0 %v6021
  %6782 = vmatprep.subr.mxu0 0.0
  %6783 = vmatpush1.msra.mxu0 %v6022
  %6784 = vmatprep.subr.mxu0 0.0
  %6785 = vmatpush1.msra.mxu0 %v6023
  %6786 = vmatprep.subr.mxu0 0.0
  %6787 = vmatpush1.msra.mxu0 %v6024
  %6788 = vmatprep.subr.mxu0 0.0
  %6789 = vmatpush1.msra.mxu0 %v6025
  %6790 = vmatprep.subr.mxu0 0.0
  %6791 = vmatpush1.msra.mxu0 %v6026
  %6792 = vmatprep.subr.mxu0 0.0
  %6793 = vmatpush1.msra.mxu0 %v6027
  %6794 = vmatprep.mubr.f32.mxu0 %v5759
  %6795 = vmatmul.mubr.f32.gmra.mrb[0].mxu0 %v5758
  %v6796 = vpop.f32.mrb[0].mxu0
  %v6797 = vadd.f32 %v6727, %v6796
  %v6798 = vpop.f32.mrb[0].mxu0
  %6799 = vdwg.mxu0
  %6800 = vmatprep.subr.mxu0 0.0
  %6801 = vmatpush1.msra.mxu0 %v6028
  %6802 = vmatprep.subr.mxu0 0.0
  %6803 = vmatpush1.msra.mxu0 %v6029
  %6804 = vmatprep.subr.mxu0 0.0
  %6805 = vmatpush1.msra.mxu0 %v6030
  %6806 = vmatprep.subr.mxu0 0.0
  %6807 = vmatpush1.msra.mxu0 %v6031
  %6808 = vmatprep.subr.mxu0 0.0
  %6809 = vmatpush1.msra.mxu0 %v6032
  %6810 = vmatprep.subr.mxu0 0.0
  %6811 = vmatpush1.msra.mxu0 %v6033
  %6812 = vmatprep.subr.mxu0 0.0
  %6813 = vmatpush1.msra.mxu0 %v6034
  %6814 = vmatprep.subr.mxu0 0.0
  %6815 = vmatpush1.msra.mxu0 %v6035
  %6816 = vmatprep.subr.mxu0 0.0
  %6817 = vmatpush1.msra.mxu0 %v6036
  %6818 = vmatprep.subr.mxu0 0.0
  %6819 = vmatpush1.msra.mxu0 %v6037
  %6820 = vmatprep.subr.mxu0 0.0
  %6821 = vmatpush1.msra.mxu0 %v6038
  %6822 = vmatprep.subr.mxu0 0.0
  %6823 = vmatpush1.msra.mxu0 %v6039
  %6824 = vmatprep.subr.mxu0 0.0
  %6825 = vmatpush1.msra.mxu0 %v6040
  %6826 = vmatprep.subr.mxu0 0.0
  %6827 = vmatpush1.msra.mxu0 %v6041
  %6828 = vmatprep.subr.mxu0 0.0
  %6829 = vmatpush1.msra.mxu0 %v6042
  %6830 = vmatprep.subr.mxu0 0.0
  %6831 = vmatpush1.msra.mxu0 %v6043
  %6832 = vmatprep.subr.mxu0 0.0
  %6833 = vmatpush1.msra.mxu0 %v6044
  %6834 = vmatprep.subr.mxu0 0.0
  %6835 = vmatpush1.msra.mxu0 %v6045
  %6836 = vmatprep.subr.mxu0 0.0
  %6837 = vmatpush1.msra.mxu0 %v6046
  %6838 = vmatprep.subr.mxu0 0.0
  %6839 = vmatpush1.msra.mxu0 %v6047
  %6840 = vmatprep.subr.mxu0 0.0
  %6841 = vmatpush1.msra.mxu0 %v6048
  %6842 = vmatprep.subr.mxu0 0.0
  %6843 = vmatpush1.msra.mxu0 %v6049
  %6844 = vmatprep.subr.mxu0 0.0
  %6845 = vmatpush1.msra.mxu0 %v6050
  %6846 = vmatprep.subr.mxu0 0.0
  %6847 = vmatpush1.msra.mxu0 %v6051
  %6848 = vmatprep.subr.mxu0 0.0
  %6849 = vmatpush1.msra.mxu0 %v6052
  %6850 = vmatprep.subr.mxu0 0.0
  %6851 = vmatpush1.msra.mxu0 %v6053
  %6852 = vmatprep.subr.mxu0 0.0
  %6853 = vmatpush1.msra.mxu0 %v6054
  %6854 = vmatprep.subr.mxu0 0.0
  %6855 = vmatpush1.msra.mxu0 %v6055
  %6856 = vmatprep.subr.mxu0 0.0
  %6857 = vmatpush1.msra.mxu0 %v6056
  %6858 = vmatprep.subr.mxu0 0.0
  %6859 = vmatpush1.msra.mxu0 %v6057
  %6860 = vmatprep.subr.mxu0 0.0
  %6861 = vmatpush1.msra.mxu0 %v6058
  %6862 = vmatprep.subr.mxu0 0.0
  %6863 = vmatpush1.msra.mxu0 %v6059
  %6864 = vmatprep.mubr.f32.mxu0 %v5761
  %6865 = vmatmul.mubr.f32.gmra.mrb[0].mxu0 %v5760
  %v6866 = vpop.f32.mrb[0].mxu0
  %v6867 = vadd.f32 %v6797, %v6866
  %v6868 = vpop.f32.mrb[0].mxu0
  %6869 = vdwg.mxu0
  %6870 = vmatprep.subr.mxu0 0.0
  %6871 = vmatpush1.msra.mxu0 %v6060
  %6872 = vmatprep.subr.mxu0 0.0
  %6873 = vmatpush1.msra.mxu0 %v6061
  %6874 = vmatprep.subr.mxu0 0.0
  %6875 = vmatpush1.msra.mxu0 %v6062
  %6876 = vmatprep.subr.mxu0 0.0
  %6877 = vmatpush1.msra.mxu0 %v6063
  %6878 = vmatprep.subr.mxu0 0.0
  %6879 = vmatpush1.msra.mxu0 %v6064
  %6880 = vmatprep.subr.mxu0 0.0
  %6881 = vmatpush1.msra.mxu0 %v6065
  %6882 = vmatprep.subr.mxu0 0.0
  %6883 = vmatpush1.msra.mxu0 %v6066
  %6884 = vmatprep.subr.mxu0 0.0
  %6885 = vmatpush1.msra.mxu0 %v6067
  %6886 = vmatprep.subr.mxu0 0.0
  %6887 = vmatpush1.msra.mxu0 %v6068
  %6888 = vmatprep.subr.mxu0 0.0
  %6889 = vmatpush1.msra.mxu0 %v6069
  %6890 = vmatprep.subr.mxu0 0.0
  %6891 = vmatpush1.msra.mxu0 %v6070
  %6892 = vmatprep.subr.mxu0 0.0
  %6893 = vmatpush1.msra.mxu0 %v6071
  %6894 = vmatprep.subr.mxu0 0.0
  %6895 = vmatpush1.msra.mxu0 %v6072
  %6896 = vmatprep.subr.mxu0 0.0
  %6897 = vmatpush1.msra.mxu0 %v6073
  %6898 = vmatprep.subr.mxu0 0.0
  %6899 = vmatpush1.msra.mxu0 %v6074
  %6900 = vmatprep.subr.mxu0 0.0
  %6901 = vmatpush1.msra.mxu0 %v6075
  %6902 = vmatprep.subr.mxu0 0.0
  %6903 = vmatpush1.msra.mxu0 %v6076
  %6904 = vmatprep.subr.mxu0 0.0
  %6905 = vmatpush1.msra.mxu0 %v6077
  %6906 = vmatprep.subr.mxu0 0.0
  %6907 = vmatpush1.msra.mxu0 %v6078
  %6908 = vmatprep.subr.mxu0 0.0
  %6909 = vmatpush1.msra.mxu0 %v6079
  %6910 = vmatprep.subr.mxu0 0.0
  %6911 = vmatpush1.msra.mxu0 %v6080
  %6912 = vmatprep.subr.mxu0 0.0
  %6913 = vmatpush1.msra.mxu0 %v6081
  %6914 = vmatprep.subr.mxu0 0.0
  %6915 = vmatpush1.msra.mxu0 %v6082
  %6916 = vmatprep.subr.mxu0 0.0
  %6917 = vmatpush1.msra.mxu0 %v6083
  %6918 = vmatprep.subr.mxu0 0.0
  %6919 = vmatpush1.msra.mxu0 %v6084
  %6920 = vmatprep.subr.mxu0 0.0
  %6921 = vmatpush1.msra.mxu0 %v6085
  %6922 = vmatprep.subr.mxu0 0.0
  %6923 = vmatpush1.msra.mxu0 %v6086
  %6924 = vmatprep.subr.mxu0 0.0
  %6925 = vmatpush1.msra.mxu0 %v6087
  %6926 = vmatprep.subr.mxu0 0.0
  %6927 = vmatpush1.msra.mxu0 %v6088
  %6928 = vmatprep.subr.mxu0 0.0
  %6929 = vmatpush1.msra.mxu0 %v6089
  %6930 = vmatprep.subr.mxu0 0.0
  %6931 = vmatpush1.msra.mxu0 %v6090
  %6932 = vmatprep.subr.mxu0 0.0
  %6933 = vmatpush1.msra.mxu0 %v6091
  %6934 = vmatprep.mubr.f32.mxu0 %v5763
  %6935 = vmatmul.mubr.f32.gmra.mrb[0].mxu0 %v5762
  %v6936 = vpop.f32.mrb[0].mxu0
  %v6937 = vadd.f32 %v6867, %v6936
  %v6938 = vpop.f32.mrb[0].mxu0
  %6939 = vdwg.mxu0
  %6940 = vmatprep.subr.mxu0 0.0
  %6941 = vmatpush1.msra.mxu0 %v5836
  %6942 = vmatprep.subr.mxu0 0.0
  %6943 = vmatpush1.msra.mxu0 %v5837
  %6944 = vmatprep.subr.mxu0 0.0
  %6945 = vmatpush1.msra.mxu0 %v5838
  %6946 = vmatprep.subr.mxu0 0.0
  %6947 = vmatpush1.msra.mxu0 %v5839
  %6948 = vmatprep.subr.mxu0 0.0
  %6949 = vmatpush1.msra.mxu0 %v5840
  %6950 = vmatprep.subr.mxu0 0.0
  %6951 = vmatpush1.msra.mxu0 %v5841
  %6952 = vmatprep.subr.mxu0 0.0
  %6953 = vmatpush1.msra.mxu0 %v5842
  %6954 = vmatprep.subr.mxu0 0.0
  %6955 = vmatpush1.msra.mxu0 %v5843
  %6956 = vmatprep.subr.mxu0 0.0
  %6957 = vmatpush1.msra.mxu0 %v5844
  %6958 = vmatprep.subr.mxu0 0.0
  %6959 = vmatpush1.msra.mxu0 %v5845
  %6960 = vmatprep.subr.mxu0 0.0
  %6961 = vmatpush1.msra.mxu0 %v5846
  %6962 = vmatprep.subr.mxu0 0.0
  %6963 = vmatpush1.msra.mxu0 %v5847
  %6964 = vmatprep.subr.mxu0 0.0
  %6965 = vmatpush1.msra.mxu0 %v5848
  %6966 = vmatprep.subr.mxu0 0.0
  %6967 = vmatpush1.msra.mxu0 %v5849
  %6968 = vmatprep.subr.mxu0 0.0
  %6969 = vmatpush1.msra.mxu0 %v5850
  %6970 = vmatprep.subr.mxu0 0.0
  %6971 = vmatpush1.msra.mxu0 %v5851
  %6972 = vmatprep.subr.mxu0 0.0
  %6973 = vmatpush1.msra.mxu0 %v5852
  %6974 = vmatprep.subr.mxu0 0.0
  %6975 = vmatpush1.msra.mxu0 %v5853
  %6976 = vmatprep.subr.mxu0 0.0
  %6977 = vmatpush1.msra.mxu0 %v5854
  %6978 = vmatprep.subr.mxu0 0.0
  %6979 = vmatpush1.msra.mxu0 %v5855
  %6980 = vmatprep.subr.mxu0 0.0
  %6981 = vmatpush1.msra.mxu0 %v5856
  %6982 = vmatprep.subr.mxu0 0.0
  %6983 = vmatpush1.msra.mxu0 %v5857
  %6984 = vmatprep.subr.mxu0 0.0
  %6985 = vmatpush1.msra.mxu0 %v5858
  %6986 = vmatprep.subr.mxu0 0.0
  %6987 = vmatpush1.msra.mxu0 %v5859
  %6988 = vmatprep.subr.mxu0 0.0
  %6989 = vmatpush1.msra.mxu0 %v5860
  %6990 = vmatprep.subr.mxu0 0.0
  %6991 = vmatpush1.msra.mxu0 %v5861
  %6992 = vmatprep.subr.mxu0 0.0
  %6993 = vmatpush1.msra.mxu0 %v5862
  %6994 = vmatprep.subr.mxu0 0.0
  %6995 = vmatpush1.msra.mxu0 %v5863
  %6996 = vmatprep.subr.mxu0 0.0
  %6997 = vmatpush1.msra.mxu0 %v5864
  %6998 = vmatprep.subr.mxu0 0.0
  %6999 = vmatpush1.msra.mxu0 %v5865
  %7000 = vmatprep.subr.mxu0 0.0
  %7001 = vmatpush1.msra.mxu0 %v5866
  %7002 = vmatprep.subr.mxu0 0.0
  %7003 = vmatpush1.msra.mxu0 %v5867
  %7004 = vmatprep.mubr.f32.mxu0 %v5829
  %7005 = vmatmul.mubr.f32.gmra.mrb[0].mxu0 %v5828
  %v7006 = vpop.f32.mrb[0].mxu0
  %v7007 = vadd.f32 %v6937, %v7006
  %v7008 = vpop.f32.mrb[0].mxu0
  %7009 = vdwg.mxu0
  %7010 = vmatprep.subr.mxu0 0.0
  %7011 = vmatpush1.msra.mxu0 %v5868
  %7012 = vmatprep.subr.mxu0 0.0
  %7013 = vmatpush1.msra.mxu0 %v5869
  %7014 = vmatprep.subr.mxu0 0.0
  %7015 = vmatpush1.msra.mxu0 %v5870
  %7016 = vmatprep.subr.mxu0 0.0
  %7017 = vmatpush1.msra.mxu0 %v5871
  %7018 = vmatprep.subr.mxu0 0.0
  %7019 = vmatpush1.msra.mxu0 %v5872
  %7020 = vmatprep.subr.mxu0 0.0
  %7021 = vmatpush1.msra.mxu0 %v5873
  %7022 = vmatprep.subr.mxu0 0.0
  %7023 = vmatpush1.msra.mxu0 %v5874
  %7024 = vmatprep.subr.mxu0 0.0
  %7025 = vmatpush1.msra.mxu0 %v5875
  %7026 = vmatprep.subr.mxu0 0.0
  %7027 = vmatpush1.msra.mxu0 %v5876
  %7028 = vmatprep.subr.mxu0 0.0
  %7029 = vmatpush1.msra.mxu0 %v5877
  %7030 = vmatprep.subr.mxu0 0.0
  %7031 = vmatpush1.msra.mxu0 %v5878
  %7032 = vmatprep.subr.mxu0 0.0
  %7033 = vmatpush1.msra.mxu0 %v5879
  %7034 = vmatprep.subr.mxu0 0.0
  %7035 = vmatpush1.msra.mxu0 %v5880
  %7036 = vmatprep.subr.mxu0 0.0
  %7037 = vmatpush1.msra.mxu0 %v5881
  %7038 = vmatprep.subr.mxu0 0.0
  %7039 = vmatpush1.msra.mxu0 %v5882
  %7040 = vmatprep.subr.mxu0 0.0
  %7041 = vmatpush1.msra.mxu0 %v5883
  %7042 = vmatprep.subr.mxu0 0.0
  %7043 = vmatpush1.msra.mxu0 %v5884
  %7044 = vmatprep.subr.mxu0 0.0
  %7045 = vmatpush1.msra.mxu0 %v5885
  %7046 = vmatprep.subr.mxu0 0.0
  %7047 = vmatpush1.msra.mxu0 %v5886
  %7048 = vmatprep.subr.mxu0 0.0
  %7049 = vmatpush1.msra.mxu0 %v5887
  %7050 = vmatprep.subr.mxu0 0.0
  %7051 = vmatpush1.msra.mxu0 %v5888
  %7052 = vmatprep.subr.mxu0 0.0
  %7053 = vmatpush1.msra.mxu0 %v5889
  %7054 = vmatprep.subr.mxu0 0.0
  %7055 = vmatpush1.msra.mxu0 %v5890
  %7056 = vmatprep.subr.mxu0 0.0
  %7057 = vmatpush1.msra.mxu0 %v5891
  %7058 = vmatprep.subr.mxu0 0.0
  %7059 = vmatpush1.msra.mxu0 %v5892
  %7060 = vmatprep.subr.mxu0 0.0
  %7061 = vmatpush1.msra.mxu0 %v5893
  %7062 = vmatprep.subr.mxu0 0.0
  %7063 = vmatpush1.msra.mxu0 %v5894
  %7064 = vmatprep.subr.mxu0 0.0
  %7065 = vmatpush1.msra.mxu0 %v5895
  %7066 = vmatprep.subr.mxu0 0.0
  %7067 = vmatpush1.msra.mxu0 %v5896
  %7068 = vmatprep.subr.mxu0 0.0
  %7069 = vmatpush1.msra.mxu0 %v5897
  %7070 = vmatprep.subr.mxu0 0.0
  %7071 = vmatpush1.msra.mxu0 %v5898
  %7072 = vmatprep.subr.mxu0 0.0
  %7073 = vmatpush1.msra.mxu0 %v5899
  %7074 = vmatprep.mubr.f32.mxu0 %v5831
  %7075 = vmatmul.mubr.f32.gmra.mrb[0].mxu0 %v5830
  %v7076 = vpop.f32.mrb[0].mxu0
  %v7077 = vadd.f32 %v7007, %v7076
  %v7078 = vpop.f32.mrb[0].mxu0
  %7079 = vdwg.mxu0
  %7080 = vmatprep.subr.mxu0 0.0
  %7081 = vmatpush1.msra.mxu0 %v5900
  %7082 = vmatprep.subr.mxu0 0.0
  %7083 = vmatpush1.msra.mxu0 %v5901
  %7084 = vmatprep.subr.mxu0 0.0
  %7085 = vmatpush1.msra.mxu0 %v5902
  %7086 = vmatprep.subr.mxu0 0.0
  %7087 = vmatpush1.msra.mxu0 %v5903
  %7088 = vmatprep.subr.mxu0 0.0
  %7089 = vmatpush1.msra.mxu0 %v5904
  %7090 = vmatprep.subr.mxu0 0.0
  %7091 = vmatpush1.msra.mxu0 %v5905
  %7092 = vmatprep.subr.mxu0 0.0
  %7093 = vmatpush1.msra.mxu0 %v5906
  %7094 = vmatprep.subr.mxu0 0.0
  %7095 = vmatpush1.msra.mxu0 %v5907
  %7096 = vmatprep.subr.mxu0 0.0
  %7097 = vmatpush1.msra.mxu0 %v5908
  %7098 = vmatprep.subr.mxu0 0.0
  %7099 = vmatpush1.msra.mxu0 %v5909
  %7100 = vmatprep.subr.mxu0 0.0
  %7101 = vmatpush1.msra.mxu0 %v5910
  %7102 = vmatprep.subr.mxu0 0.0
  %7103 = vmatpush1.msra.mxu0 %v5911
  %7104 = vmatprep.subr.mxu0 0.0
  %7105 = vmatpush1.msra.mxu0 %v5912
  %7106 = vmatprep.subr.mxu0 0.0
  %7107 = vmatpush1.msra.mxu0 %v5913
  %7108 = vmatprep.subr.mxu0 0.0
  %7109 = vmatpush1.msra.mxu0 %v5914
  %7110 = vmatprep.subr.mxu0 0.0
  %7111 = vmatpush1.msra.mxu0 %v5915
  %7112 = vmatprep.subr.mxu0 0.0
  %7113 = vmatpush1.msra.mxu0 %v5916
  %7114 = vmatprep.subr.mxu0 0.0
  %7115 = vmatpush1.msra.mxu0 %v5917
  %7116 = vmatprep.subr.mxu0 0.0
  %7117 = vmatpush1.msra.mxu0 %v5918
  %7118 = vmatprep.subr.mxu0 0.0
  %7119 = vmatpush1.msra.mxu0 %v5919
  %7120 = vmatprep.subr.mxu0 0.0
  %7121 = vmatpush1.msra.mxu0 %v5920
  %7122 = vmatprep.subr.mxu0 0.0
  %7123 = vmatpush1.msra.mxu0 %v5921
  %7124 = vmatprep.subr.mxu0 0.0
  %7125 = vmatpush1.msra.mxu0 %v5922
  %7126 = vmatprep.subr.mxu0 0.0
  %7127 = vmatpush1.msra.mxu0 %v5923
  %7128 = vmatprep.subr.mxu0 0.0
  %7129 = vmatpush1.msra.mxu0 %v5924
  %7130 = vmatprep.subr.mxu0 0.0
  %7131 = vmatpush1.msra.mxu0 %v5925
  %7132 = vmatprep.subr.mxu0 0.0
  %7133 = vmatpush1.msra.mxu0 %v5926
  %7134 = vmatprep.subr.mxu0 0.0
  %7135 = vmatpush1.msra.mxu0 %v5927
  %7136 = vmatprep.subr.mxu0 0.0
  %7137 = vmatpush1.msra.mxu0 %v5928
  %7138 = vmatprep.subr.mxu0 0.0
  %7139 = vmatpush1.msra.mxu0 %v5929
  %7140 = vmatprep.subr.mxu0 0.0
  %7141 = vmatpush1.msra.mxu0 %v5930
  %7142 = vmatprep.subr.mxu0 0.0
  %7143 = vmatpush1.msra.mxu0 %v5931
  %7144 = vmatprep.mubr.f32.mxu0 %v5833
  %7145 = vmatmul.mubr.f32.gmra.mrb[0].mxu0 %v5832
  %v7146 = vpop.f32.mrb[0].mxu0
  %v7147 = vadd.f32 %v7077, %v7146
  %v7148 = vpop.f32.mrb[0].mxu0
  %7149 = vdwg.mxu0
  %7150 = vmatprep.subr.mxu0 0.0
  %7151 = vmatpush1.msra.mxu0 %v5932
  %7152 = vmatprep.subr.mxu0 0.0
  %7153 = vmatpush1.msra.mxu0 %v5933
  %7154 = vmatprep.subr.mxu0 0.0
  %7155 = vmatpush1.msra.mxu0 %v5934
  %7156 = vmatprep.subr.mxu0 0.0
  %7157 = vmatpush1.msra.mxu0 %v5935
  %7158 = vmatprep.subr.mxu0 0.0
  %7159 = vmatpush1.msra.mxu0 %v5936
  %7160 = vmatprep.subr.mxu0 0.0
  %7161 = vmatpush1.msra.mxu0 %v5937
  %7162 = vmatprep.subr.mxu0 0.0
  %7163 = vmatpush1.msra.mxu0 %v5938
  %7164 = vmatprep.subr.mxu0 0.0
  %7165 = vmatpush1.msra.mxu0 %v5939
  %7166 = vmatprep.subr.mxu0 0.0
  %7167 = vmatpush1.msra.mxu0 %v5940
  %7168 = vmatprep.subr.mxu0 0.0
  %7169 = vmatpush1.msra.mxu0 %v5941
  %7170 = vmatprep.subr.mxu0 0.0
  %7171 = vmatpush1.msra.mxu0 %v5942
  %7172 = vmatprep.subr.mxu0 0.0
  %7173 = vmatpush1.msra.mxu0 %v5943
  %7174 = vmatprep.subr.mxu0 0.0
  %7175 = vmatpush1.msra.mxu0 %v5944
  %7176 = vmatprep.subr.mxu0 0.0
  %7177 = vmatpush1.msra.mxu0 %v5945
  %7178 = vmatprep.subr.mxu0 0.0
  %7179 = vmatpush1.msra.mxu0 %v5946
  %7180 = vmatprep.subr.mxu0 0.0
  %7181 = vmatpush1.msra.mxu0 %v5947
  %7182 = vmatprep.subr.mxu0 0.0
  %7183 = vmatpush1.msra.mxu0 %v5948
  %7184 = vmatprep.subr.mxu0 0.0
  %7185 = vmatpush1.msra.mxu0 %v5949
  %7186 = vmatprep.subr.mxu0 0.0
  %7187 = vmatpush1.msra.mxu0 %v5950
  %7188 = vmatprep.subr.mxu0 0.0
  %7189 = vmatpush1.msra.mxu0 %v5951
  %7190 = vmatprep.subr.mxu0 0.0
  %7191 = vmatpush1.msra.mxu0 %v5952
  %7192 = vmatprep.subr.mxu0 0.0
  %7193 = vmatpush1.msra.mxu0 %v5953
  %7194 = vmatprep.subr.mxu0 0.0
  %7195 = vmatpush1.msra.mxu0 %v5954
  %7196 = vmatprep.subr.mxu0 0.0
  %7197 = vmatpush1.msra.mxu0 %v5955
  %7198 = vmatprep.subr.mxu0 0.0
  %7199 = vmatpush1.msra.mxu0 %v5956
  %7200 = vmatprep.subr.mxu0 0.0
  %7201 = vmatpush1.msra.mxu0 %v5957
  %7202 = vmatprep.subr.mxu0 0.0
  %7203 = vmatpush1.msra.mxu0 %v5958
  %7204 = vmatprep.subr.mxu0 0.0
  %7205 = vmatpush1.msra.mxu0 %v5959
  %7206 = vmatprep.subr.mxu0 0.0
  %7207 = vmatpush1.msra.mxu0 %v5960
  %7208 = vmatprep.subr.mxu0 0.0
  %7209 = vmatpush1.msra.mxu0 %v5961
  %7210 = vmatprep.subr.mxu0 0.0
  %7211 = vmatpush1.msra.mxu0 %v5962
  %7212 = vmatprep.subr.mxu0 0.0
  %7213 = vmatpush1.msra.mxu0 %v5963
  %7214 = vmatprep.mubr.f32.mxu0 %v5835
  %7215 = vmatmul.mubr.f32.gmra.mrb[0].mxu0 %v5834
  %v7216 = vpop.f32.mrb[0].mxu0
  %v7217 = vadd.f32 %v7147, %v7216
  %v7218 = vpop.f32.mrb[0].mxu0
  %7219 = vdwg.mxu0
  %v7220 = vadd.f32 %v7217, %v6657
  %vm7221 = vcmp.gt.s32.totalorder %v35, 0
  %v7222 = vsel %vm7221, 1, 0
  %7223 = vset.pattern.permute.xlu0 0
  %7224 = vperm.xlu0 %7223, %v7222
  %v7225 = vpop.permute.xlu0 %7224
  %vm7226 = vcmp.eq.s32.totalorder %v7225, 1
  %v7227 = vsel %vm7226, %v7220, %v6659
  %v7228 = vlaneseq
  %v7229 = vand.u32 %v7228, 127
  %7230 = vset.pattern.permute.xlu0 0
  %7231 = vperm.xlu0 %7230, %v36
  %v7232 = vpop.permute.xlu0 %7231
  %vm7233 = vcmp.eq.s32.totalorder %v7229, %v7232
  %v7234 = vsel %vm7233, 1, 0
  %v7235 = vcvt.s32.f32 %v7234
  %v7236 = vmul.f32 %v7227, %v7235
  %vm7237 = vcmask 64512
  %v7238 = vsel %vm7237, %v7236, 0.0
  %7239 = vadd.xlane.f32.xlu0 %v7238
  %v7240 = vpop.xlane.xlu0 %7239
  %v7241 = vsub.f32 0.0, %v7240
  %v7242 = vsel %vm7221, %v7241, %v7240
  %vm7243 = vcmask 7168
  %7244 = vst.msk [vmem:[%s9] sm:$0xff] %vm7243, %v7242
  // Predicated region
  $region38: #{nnue_forward.1} parent=0 // pred_check
    _
  $region39: #{nnue_forward.1} parent=0 // pred_check_branch
    %7246 = sbr.rel (0) target = $region41
  $region40: #{nnue_forward.1} parent=0 // pred_region
    _
  $region41: #{nnue_forward.1} parent=0 // pred_fallthru
    _
  // Predicated region
  $region42: #{nnue_forward.1} parent=0 // pred_check
    _
  $region43: #{nnue_forward.1} parent=0 // pred_check_branch
    %7248 = sbr.rel (0) target = $region45
  $region44: #{nnue_forward.1} parent=0 // pred_region
    _
  $region45: #{nnue_forward.1} parent=0 // pred_fallthru
    _

</llo_original>
